<compile_context>
chip_gen: v7x
topology: tpu7x:2x2x1
jax: 0.10.0
libtpu: 0.0.40
codegen_flags: <defaults>
</compile_context>

<pallas_src>
import numpy as np
import jax
import jax.numpy as jnp
from jax.experimental import pallas as pl
from jax.experimental.pallas import tpu as pltpu

# --- small, deterministic config (consistent with PunctLstmConfig) ---
VOCAB = 64
TYPE_VOCAB = 2
MAX_POS = 16
HIDDEN = 32            # config.hidden_size
HC = HIDDEN // 2       # LSTM hidden per direction (16)
NUM_PLABELS = 9        # config.num_plabels
PAD_P = 128            # lane-padded classifier width (outputs sliced to NUM_PLABELS)
B_BLK = 8              # sublane-tile batch block (one grid step per block)
LN_EPS = 1e-12


def punct_bilstm_kernel(emb_ref, gamma_ref, beta_ref,
                        wih0_ref, whh0_ref, b0_ref,
                        wih1_ref, whh1_ref, b1_ref,
                        cw_ref, cb_ref,
                        logits_ref, seq0_sc, seq1_sc):
    """LayerNorm -> 2x fused-bidirectional LSTM layers -> classifier (one batch block).

    emb_ref:            (T, Bb, H)   summed word+pos+type embeddings, time-major per block
    gamma/beta:         (1, H)       LayerNorm params
    wih{0,1}_ref:       (H, 8*HC)    bf16, fused input->gates weights, column layout
                                     [i_f,i_b,f_f,f_b,g_f,g_b,o_f,o_b] (each HC wide)
    whh{0,1}_ref:       (2*HC, 8*HC) bf16, block-diagonal fused recurrent weights
    b{0,1}_ref:         (1, 8*HC)    f32, combined b_ih+b_hh in fused layout
    cw_ref / cb_ref:    (H, 128) bf16 / (1, 128) f32, zero-padded classifier
    logits_ref:         (T, Bb, 128) lane-dense output
    seq{0,1}_sc:        (T*Bb, H) f32 VMEM scratch holding each layer's sequence output
    """
    T, Bb, H = emb_ref.shape
    Hc = H // 2
    G = 8 * Hc                      # fused gate width (=128)
    TB = T * Bb

    # ---- BertEmbeddings LayerNorm on the flat (T*Bb, H) slab (dropout = identity) ----
    x = emb_ref[...].reshape(TB, H)
    mean = jnp.mean(x, axis=-1, keepdims=True)
    var = jnp.mean(jnp.square(x - mean), axis=-1, keepdims=True)
    xln = (x - mean) * jax.lax.rsqrt(var + LN_EPS) * gamma_ref[...] + beta_ref[...]

    # hoisted lane mask: fused gate layout [i_f,i_b,f_f,f_b,g_f,g_b,o_f,o_b]
    lane_g = jax.lax.broadcasted_iota(jnp.int32, (Bb, G), 1)
    fwd_mask = (lane_g % (2 * Hc)) < Hc

    def bilstm_layer(x_in, wih_r, whh_r, b_r, out_sc):
        # (1) hoisted input->hidden projection for ALL timesteps and BOTH directions:
        #     one lane-dense (T*Bb, H) x (H, 8*HC) matmul, bias folded in once.
        gin_all = jnp.dot(x_in.astype(jnp.bfloat16), wih_r[...],
                          preferred_element_type=jnp.float32) + b_r[...]
        # (2) hoisted direction select (off the serial chain): fwd lanes read time s,
        #     bwd lanes read time T-1-s.  Per-step access below is one aligned 8-row load.
        gin_sel = jnp.concatenate(
            [jnp.where(fwd_mask,
                       gin_all[s * Bb:(s + 1) * Bb, :],
                       gin_all[(T - 1 - s) * Bb:(T - s) * Bb, :])
             for s in range(T)], axis=0)
        whh = whh_r[...]            # hoisted weight read
        # TODO(synk): pltpu.matmul_push_rhs(whh) once + matmul_acc_lhs/matmul_pop per step
        # would remove per-step MXU weight staging from the serial chain.

        h = jnp.zeros((Bb, 2 * Hc), jnp.float32)    # [h_fwd | h_bwd]
        c = jnp.zeros((Bb, 2 * Hc), jnp.float32)
        # (3) fused fwd+bwd recurrence, fully unrolled (T is static).
        for s in range(T):
            gates = gin_sel[s * Bb:(s + 1) * Bb, :] + jnp.dot(
                h.astype(jnp.bfloat16), whh, preferred_element_type=jnp.float32)
            # full-vreg transcendentals: 2 EUP pushes per step instead of 4 partial-lane
            sg = jax.nn.sigmoid(gates)
            tg = jnp.tanh(gates)
            # PyTorch gate order i, f, g, o (per-direction halves fused side by side)
            c = sg[:, 2 * Hc:4 * Hc] * c + sg[:, 0:2 * Hc] * tg[:, 4 * Hc:6 * Hc]
            h = sg[:, 6 * Hc:8 * Hc] * jnp.tanh(c)
            # (4) scatter h straight into its time-ordered rows of the VMEM scratch;
            #     these stores do not feed the recurrence, so they overlap under it.
            out_sc[s * Bb:(s + 1) * Bb, 0:Hc] = h[:, 0:Hc]                       # fwd @ t=s
            out_sc[(T - 1 - s) * Bb:(T - s) * Bb, Hc:2 * Hc] = h[:, Hc:2 * Hc]   # bwd @ t=T-1-s
        return out_sc[...]                           # (T*Bb, 2*Hc), time-ordered

    l0 = bilstm_layer(xln, wih0_ref, whh0_ref, b0_ref, seq0_sc)
    l1 = bilstm_layer(l0, wih1_ref, whh1_ref, b1_ref, seq1_sc)

    # ---- classifier: single lane-dense (T*Bb, H) x (H, 128) matmul; log_softmax and
    #      loss are computed in the wrapper on the 9 real classes. ----
    lg = jnp.dot(l1.astype(jnp.bfloat16), cw_ref[...],
                 preferred_element_type=jnp.float32) + cb_ref[...]
    logits_ref[...] = lg.reshape(T, Bb, PAD_P)       # unmasked 128-lane stores


def _full_spec(arr):
    """Whole-array VMEM block (constant block index) for weights/params."""
    zeros = (0,) * arr.ndim
    return pl.BlockSpec(arr.shape, lambda i, _z=zeros: _z)


def run_kernel(x_blocks, packed):
    """x_blocks: (n_blocks, T, B_BLK, H) -> logits (n_blocks, T, B_BLK, PAD_P)."""
    nb, T, Bb, H = x_blocks.shape
    weight_order = ['ln_gamma', 'ln_beta', 'wih0', 'whh0', 'b0',
                    'wih1', 'whh1', 'b1', 'clf_w', 'clf_b']
    in_specs = ([pl.BlockSpec((None, T, Bb, H), lambda i: (i, 0, 0, 0))]
                + [_full_spec(packed[k]) for k in weight_order])
    out_spec = pl.BlockSpec((None, T, Bb, PAD_P), lambda i: (i, 0, 0, 0))
    return pl.pallas_call(
        punct_bilstm_kernel,
        out_shape=jax.ShapeDtypeStruct((nb, T, Bb, PAD_P), jnp.float32),
        grid=(nb,),
        in_specs=in_specs,
        out_specs=out_spec,
        scratch_shapes=[pltpu.VMEM((T * Bb, H), jnp.float32),
                        pltpu.VMEM((T * Bb, H), jnp.float32)],
        compiler_params=pltpu.CompilerParams(
            dimension_semantics=("parallel",)),      # shards batch blocks across v7x TCs
    )(x_blocks, *[packed[k] for k in weight_order])


def pack_params(params):
    """Pack raw per-direction LSTM weights into the fused layouts used by the kernel."""
    Hc = HC

    def pack_wih(wf, wb):            # (H_in, 4*Hc) each -> (H_in, 8*Hc) interleaved
        h_in = wf.shape[0]
        return jnp.stack([wf.reshape(h_in, 4, Hc), wb.reshape(h_in, 4, Hc)],
                         axis=2).reshape(h_in, 8 * Hc)

    def pack_whh(wf, wb):            # (Hc, 4*Hc) each -> (2*Hc, 8*Hc) block-diagonal
        out = jnp.zeros((2 * Hc, 4, 2, Hc), jnp.float32)
        out = out.at[:Hc, :, 0, :].set(wf.reshape(Hc, 4, Hc))
        out = out.at[Hc:, :, 1, :].set(wb.reshape(Hc, 4, Hc))
        return out.reshape(2 * Hc, 8 * Hc)

    def pack_b(bf, bb):              # (1, 4*Hc) each -> (1, 8*Hc)
        return jnp.stack([bf.reshape(4, Hc), bb.reshape(4, Hc)],
                         axis=1).reshape(1, 8 * Hc)

    w_ih, w_hh, b = params['w_ih'], params['w_hh'], params['b']
    clf_w = jnp.zeros((HIDDEN, PAD_P), jnp.float32).at[:, :NUM_PLABELS].set(params['clf_w'])
    clf_b = jnp.zeros((1, PAD_P), jnp.float32).at[:, :NUM_PLABELS].set(params['clf_b'])
    return {
        'ln_gamma': params['ln_gamma'],
        'ln_beta': params['ln_beta'],
        'wih0': pack_wih(w_ih[0], w_ih[1]).astype(jnp.bfloat16),
        'whh0': pack_whh(w_hh[0], w_hh[1]).astype(jnp.bfloat16),
        'b0': pack_b(b[0], b[1]),
        'wih1': pack_wih(w_ih[2], w_ih[3]).astype(jnp.bfloat16),
        'whh1': pack_whh(w_hh[2], w_hh[3]).astype(jnp.bfloat16),
        'b1': pack_b(b[2], b[3]),
        'clf_w': clf_w.astype(jnp.bfloat16),
        'clf_b': clf_b,
    }


def punct_bilstm_forward(params, packed, input_ids, token_type_ids, plabels):
    B, S = input_ids.shape
    pos_ids = jnp.arange(S)
    # embedding gathers = glue (stay in plain JAX)
    emb = (params['word_emb'][input_ids]
           + params['pos_emb'][pos_ids][None, :, :]
           + params['type_emb'][token_type_ids]).astype(jnp.float32)
    # pad batch to full 8-sublane blocks so every per-step slice is tile-aligned
    nb = -(-B // B_BLK)
    B_pad = nb * B_BLK
    emb_p = jnp.zeros((B_pad, S, HIDDEN), jnp.float32).at[:B].set(emb)
    # (n_blocks, T, B_BLK, H): time-major inside each batch block
    x_blocks = jnp.transpose(emb_p.reshape(nb, B_BLK, S, HIDDEN), (0, 2, 1, 3))

    logits_p = run_kernel(x_blocks, packed)                    # (nb, T, B_BLK, 128)
    logits_full = jnp.transpose(logits_p, (0, 2, 1, 3)).reshape(B_pad, S, PAD_P)
    logits = logits_full[:B, :, :NUM_PLABELS]                  # (B, S, 9)

    # log_softmax over the 9 real classes (f32, wrapper side) — identical math to the
    # module's F.log_softmax / CrossEntropyLoss, and keeps the kernel to one output.
    logp = jax.nn.log_softmax(logits, axis=-1)
    ptags_all = jnp.argmax(logp, axis=-1)                      # (B, S)
    flat_logp = logp.reshape(-1, NUM_PLABELS)
    flat_lab = plabels.reshape(-1)
    loss = -jnp.mean(jnp.take_along_axis(flat_logp, flat_lab[:, None], axis=1))
    return logits, logp, ptags_all, loss


def reference_forward(params, input_ids, token_type_ids):
    """Pure-JAX f32 reference for a numerical sanity check."""
    B, S = input_ids.shape
    emb = (params['word_emb'][input_ids]
           + params['pos_emb'][jnp.arange(S)][None]
           + params['type_emb'][token_type_ids])
    mean = emb.mean(-1, keepdims=True)
    var = ((emb - mean) ** 2).mean(-1, keepdims=True)
    x = (emb - mean) / jnp.sqrt(var + LN_EPS) * params['ln_gamma'][0] + params['ln_beta'][0]

    def run_dir(inp, widx, reverse):
        wih = params['w_ih'][widx]
        whh = params['w_hh'][widx]
        bias = params['b'][widx, 0]
        h = jnp.zeros((B, HC), jnp.float32)
        c = jnp.zeros((B, HC), jnp.float32)
        outs = [None] * S
        order = range(S - 1, -1, -1) if reverse else range(S)
        for t in order:
            g = inp[:, t, :] @ wih + h @ whh + bias
            i = jax.nn.sigmoid(g[:, :HC])
            f = jax.nn.sigmoid(g[:, HC:2 * HC])
            gg = jnp.tanh(g[:, 2 * HC:3 * HC])
            o = jax.nn.sigmoid(g[:, 3 * HC:])
            c = f * c + i * gg
            h = o * jnp.tanh(c)
            outs[t] = h
        return jnp.stack(outs, axis=1)

    l0 = jnp.concatenate([run_dir(x, 0, False), run_dir(x, 1, True)], axis=-1)
    l1 = jnp.concatenate([run_dir(l0, 2, False), run_dir(l0, 3, True)], axis=-1)
    logits = l1 @ params['clf_w'] + params['clf_b'][0]
    logp = jax.nn.log_softmax(logits, axis=-1)
    return logits, logp


def init_params(key):
    ks = jax.random.split(key, 8)
    s = 0.02
    lim = 1.0 / np.sqrt(HC)
    b_ih = jax.random.uniform(ks[5], (4, 1, 4 * HC), jnp.float32, -lim, lim)
    b_hh = jax.random.uniform(ks[6], (4, 1, 4 * HC), jnp.float32, -lim, lim)
    return {
        'word_emb': jax.random.normal(ks[0], (VOCAB, HIDDEN), jnp.float32) * s,
        'pos_emb': jax.random.normal(ks[1], (MAX_POS, HIDDEN), jnp.float32) * s,
        'type_emb': jax.random.normal(ks[2], (TYPE_VOCAB, HIDDEN), jnp.float32) * s,
        'ln_gamma': jnp.ones((1, HIDDEN), jnp.float32),
        'ln_beta': jnp.zeros((1, HIDDEN), jnp.float32),
        'w_ih': jax.random.uniform(ks[3], (4, HIDDEN, 4 * HC), jnp.float32, -lim, lim),
        'w_hh': jax.random.uniform(ks[4], (4, HC, 4 * HC), jnp.float32, -lim, lim),
        'b': b_ih + b_hh,
        'clf_w': jax.random.uniform(ks[7], (HIDDEN, NUM_PLABELS), jnp.float32, -0.1, 0.1),
        'clf_b': jnp.zeros((1, NUM_PLABELS), jnp.float32),
    }


if __name__ == "__main__":
    key = jax.random.PRNGKey(0)
    kp, ki, kl, km = jax.random.split(key, 4)
    params = init_params(kp)
    packed = pack_params(params)

    B, S = 2, 8
    input_ids = jax.random.randint(ki, (B, S), 0, VOCAB)
    token_type_ids = jnp.zeros((B, S), jnp.int32)
    plabels = jax.random.randint(kl, (B, S), 0, NUM_PLABELS)
    label_masks = jax.random.randint(km, (B, S), 0, 2)

    p_logits, logp, ptags_all, loss = punct_bilstm_forward(
        params, packed, input_ids, token_type_ids, plabels)
    jax.block_until_ready((p_logits, logp, ptags_all, loss))

    # torch.masked_select is dynamic-shape -> done on host, mirroring the module
    mask = np.asarray(label_masks).reshape(-1) != 0
    seq_ptags = np.asarray(ptags_all).reshape(-1)[mask].tolist()

    # sanity check against a pure-JAX f32 reference (looser tol: bf16 MXU operands)
    ref_logits, ref_logp = reference_forward(params, input_ids, token_type_ids)
    np.testing.assert_allclose(np.asarray(p_logits), np.asarray(ref_logits),
                               rtol=5e-2, atol=5e-2)
    np.testing.assert_allclose(np.asarray(logp), np.asarray(ref_logp),
                               rtol=5e-2, atol=5e-2)
    # ptags are consumed via argmax downstream: check agreement with the f32 reference,
    # allowing disagreement only at genuine near-ties (bf16 MXU rounding).
    k_arg = np.argmax(np.asarray(logp), axis=-1)
    r_arg = np.argmax(np.asarray(ref_logp), axis=-1)
    if not np.array_equal(k_arg, r_arg):
        srt = np.sort(np.asarray(ref_logp), axis=-1)
        top_gap = srt[..., -1] - srt[..., -2]
        assert float(top_gap[k_arg != r_arg].max()) < 1e-2, \
            "argmax flipped on a non-near-tie class"
    assert np.isfinite(float(loss)) and len(seq_ptags) == int(mask.sum())

    print("KERNEL_OK")
</pallas_src>

<mosaic_0001>
module attributes {stable_mosaic.version = 11 : i64} {
  func.func @punct_bilstm_kernel(%arg0: i32, %arg1: memref<1x8x8x32xf32, #tpu.memory_space<vmem>>, %arg2: memref<1x32xf32, #tpu.memory_space<vmem>>, %arg3: memref<1x32xf32, #tpu.memory_space<vmem>>, %arg4: memref<32x128xbf16, #tpu.memory_space<vmem>>, %arg5: memref<32x128xbf16, #tpu.memory_space<vmem>>, %arg6: memref<1x128xf32, #tpu.memory_space<vmem>>, %arg7: memref<32x128xbf16, #tpu.memory_space<vmem>>, %arg8: memref<32x128xbf16, #tpu.memory_space<vmem>>, %arg9: memref<1x128xf32, #tpu.memory_space<vmem>>, %arg10: memref<32x128xbf16, #tpu.memory_space<vmem>>, %arg11: memref<1x128xf32, #tpu.memory_space<vmem>>, %arg12: memref<1x8x8x128xf32, #tpu.memory_space<vmem>>, %arg13: memref<64x32xf32, #tpu.memory_space<vmem>>, %arg14: memref<64x32xf32, #tpu.memory_space<vmem>>) attributes {dimension_semantics = [#tpu.dimension_semantics<parallel>], iteration_bounds = array<i64: 1>, scalar_prefetch = 0 : i64, scratch_operands = 2 : i64, tpu.core_type = #tpu.core_type<tc>, window_params = [{transform_indices = @transform_0, window_bounds = array<i64: 1, 8, 8, 32>}, {pipeline_mode = #tpu.pipeline_mode<synchronous>, transform_indices = @transform_1, window_bounds = array<i64: 1, 32>}, {pipeline_mode = #tpu.pipeline_mode<synchronous>, transform_indices = @transform_2, window_bounds = array<i64: 1, 32>}, {pipeline_mode = #tpu.pipeline_mode<synchronous>, transform_indices = @transform_3, window_bounds = array<i64: 32, 128>}, {pipeline_mode = #tpu.pipeline_mode<synchronous>, transform_indices = @transform_4, window_bounds = array<i64: 32, 128>}, {pipeline_mode = #tpu.pipeline_mode<synchronous>, transform_indices = @transform_5, window_bounds = array<i64: 1, 128>}, {pipeline_mode = #tpu.pipeline_mode<synchronous>, transform_indices = @transform_6, window_bounds = array<i64: 32, 128>}, {pipeline_mode = #tpu.pipeline_mode<synchronous>, transform_indices = @transform_7, window_bounds = array<i64: 32, 128>}, {pipeline_mode = #tpu.pipeline_mode<synchronous>, transform_indices = @transform_8, window_bounds = array<i64: 1, 128>}, {pipeline_mode = #tpu.pipeline_mode<synchronous>, transform_indices = @transform_9, window_bounds = array<i64: 32, 128>}, {pipeline_mode = #tpu.pipeline_mode<synchronous>, transform_indices = @transform_10, window_bounds = array<i64: 1, 128>}, {transform_indices = @transform_11, window_bounds = array<i64: 1, 8, 8, 128>}]} {
    %c0 = arith.constant 0 : index
    %c0_0 = arith.constant 0 : index
    %c0_1 = arith.constant 0 : index
    %c0_2 = arith.constant 0 : index
    %0 = vector.load %arg1[%c0, %c0_0, %c0_1, %c0_2] : memref<1x8x8x32xf32, #tpu.memory_space<vmem>>, vector<1x8x8x32xf32>
    %1 = vector.shape_cast %0 : vector<1x8x8x32xf32> to vector<8x8x32xf32>
    %2 = vector.shape_cast %1 : vector<8x8x32xf32> to vector<64x32xf32>
    %cst = arith.constant dense<0.000000e+00> : vector<64xf32>
    %3 = vector.multi_reduction <add>, %2, %cst [1] : vector<64x32xf32> to vector<64xf32>
    %4 = vector.shape_cast %3 : vector<64xf32> to vector<64x1xf32>
    %cst_3 = arith.constant 3.200000e+01 : f32
    %5 = vector.broadcast %cst_3 : f32 to vector<64x1xf32>
    %6 = arith.divf %4, %5 : vector<64x1xf32>
    %7 = vector.broadcast %6 : vector<64x1xf32> to vector<64x32xf32>
    %8 = arith.subf %2, %7 : vector<64x32xf32>
    %9 = arith.mulf %8, %8 : vector<64x32xf32>
    %cst_4 = arith.constant dense<0.000000e+00> : vector<64xf32>
    %10 = vector.multi_reduction <add>, %9, %cst_4 [1] : vector<64x32xf32> to vector<64xf32>
    %11 = vector.shape_cast %10 : vector<64xf32> to vector<64x1xf32>
    %cst_5 = arith.constant 3.200000e+01 : f32
    %12 = vector.broadcast %cst_5 : f32 to vector<64x1xf32>
    %13 = arith.divf %11, %12 : vector<64x1xf32>
    %14 = vector.broadcast %6 : vector<64x1xf32> to vector<64x32xf32>
    %15 = arith.subf %2, %14 : vector<64x32xf32>
    %cst_6 = arith.constant 9.99999996E-13 : f32
    %16 = vector.broadcast %cst_6 : f32 to vector<64x1xf32>
    %17 = arith.addf %13, %16 : vector<64x1xf32>
    %18 = math.rsqrt %17 : vector<64x1xf32>
    %19 = vector.broadcast %18 : vector<64x1xf32> to vector<64x32xf32>
    %20 = arith.mulf %15, %19 : vector<64x32xf32>
    %c0_7 = arith.constant 0 : index
    %c0_8 = arith.constant 0 : index
    %21 = vector.load %arg2[%c0_7, %c0_8] : memref<1x32xf32, #tpu.memory_space<vmem>>, vector<1x32xf32>
    %22 = vector.broadcast %21 : vector<1x32xf32> to vector<64x32xf32>
    %23 = arith.mulf %20, %22 : vector<64x32xf32>
    %c0_9 = arith.constant 0 : index
    %c0_10 = arith.constant 0 : index
    %24 = vector.load %arg3[%c0_9, %c0_10] : memref<1x32xf32, #tpu.memory_space<vmem>>, vector<1x32xf32>
    %25 = vector.broadcast %24 : vector<1x32xf32> to vector<64x32xf32>
    %26 = arith.addf %23, %25 : vector<64x32xf32>
    %27 = tpu.iota {dimensions = array<i32: 1>} : vector<8x128xi32>
    %c32_i32 = arith.constant 32 : i32
    %c0_i32 = arith.constant 0 : i32
    %28 = arith.cmpi eq, %c32_i32, %c0_i32 : i32
    %c1_i32 = arith.constant 1 : i32
    %29 = arith.select %28, %c1_i32, %c32_i32 : i32
    %30 = vector.broadcast %29 : i32 to vector<8x128xi32>
    %31 = arith.remsi %27, %30 : vector<8x128xi32>
    %c0_i32_11 = arith.constant 0 : i32
    %32 = vector.broadcast %c0_i32_11 : i32 to vector<8x128xi32>
    %33 = arith.cmpi ne, %31, %32 : vector<8x128xi32>
    %c0_i32_12 = arith.constant 0 : i32
    %34 = vector.broadcast %c0_i32_12 : i32 to vector<8x128xi32>
    %35 = arith.cmpi slt, %31, %34 : vector<8x128xi32>
    %c0_i32_13 = arith.constant 0 : i32
    %36 = arith.cmpi slt, %29, %c0_i32_13 : i32
    %37 = vector.broadcast %36 : i1 to vector<8x128xi1>
    %38 = vector.broadcast %37 : vector<8x128xi1> to vector<8x128xi1>
    %39 = arith.xori %35, %38 : vector<8x128xi1>
    %40 = arith.andi %39, %33 : vector<8x128xi1>
    %41 = vector.broadcast %29 : i32 to vector<8x128xi32>
    %42 = arith.addi %31, %41 : vector<8x128xi32>
    %43 = arith.select %40, %42, %31 : vector<8x128xi1>, vector<8x128xi32>
    %c16_i32 = arith.constant 16 : i32
    %44 = vector.broadcast %c16_i32 : i32 to vector<8x128xi32>
    %45 = arith.cmpi slt, %43, %44 : vector<8x128xi32>
    %46 = arith.truncf %26 : vector<64x32xf32> to vector<64x32xbf16>
    %c0_14 = arith.constant 0 : index
    %c0_15 = arith.constant 0 : index
    %47 = vector.load %arg4[%c0_14, %c0_15] : memref<32x128xbf16, #tpu.memory_space<vmem>>, vector<32x128xbf16>
    %cst_16 = arith.constant dense<0.000000e+00> : vector<64x128xf32>
    %48 = tpu.matmul %46, %47, %cst_16 {dimension_numbers = #tpu.dot_dimension_numbers<[1], [0], [0], [1], [0, 0, 1, 1], [], []>} : vector<64x32xbf16>, vector<32x128xbf16>, vector<64x128xf32> -> vector<64x128xf32>
    %c0_17 = arith.constant 0 : index
    %c0_18 = arith.constant 0 : index
    %49 = vector.load %arg6[%c0_17, %c0_18] : memref<1x128xf32, #tpu.memory_space<vmem>>, vector<1x128xf32>
    %50 = vector.broadcast %49 : vector<1x128xf32> to vector<64x128xf32>
    %51 = arith.addf %48, %50 : vector<64x128xf32>
    %52 = vector.extract_strided_slice %51 {offsets = [0, 0], sizes = [8, 128], strides = [1, 1]} : vector<64x128xf32> to vector<8x128xf32>
    %53 = vector.extract_strided_slice %51 {offsets = [56, 0], sizes = [8, 128], strides = [1, 1]} : vector<64x128xf32> to vector<8x128xf32>
    %54 = arith.select %45, %52, %53 : vector<8x128xi1>, vector<8x128xf32>
    %55 = vector.extract_strided_slice %51 {offsets = [8, 0], sizes = [8, 128], strides = [1, 1]} : vector<64x128xf32> to vector<8x128xf32>
    %56 = vector.extract_strided_slice %51 {offsets = [48, 0], sizes = [8, 128], strides = [1, 1]} : vector<64x128xf32> to vector<8x128xf32>
    %57 = arith.select %45, %55, %56 : vector<8x128xi1>, vector<8x128xf32>
    %58 = vector.extract_strided_slice %51 {offsets = [16, 0], sizes = [8, 128], strides = [1, 1]} : vector<64x128xf32> to vector<8x128xf32>
    %59 = vector.extract_strided_slice %51 {offsets = [40, 0], sizes = [8, 128], strides = [1, 1]} : vector<64x128xf32> to vector<8x128xf32>
    %60 = arith.select %45, %58, %59 : vector<8x128xi1>, vector<8x128xf32>
    %61 = vector.extract_strided_slice %51 {offsets = [24, 0], sizes = [8, 128], strides = [1, 1]} : vector<64x128xf32> to vector<8x128xf32>
    %62 = vector.extract_strided_slice %51 {offsets = [32, 0], sizes = [8, 128], strides = [1, 1]} : vector<64x128xf32> to vector<8x128xf32>
    %63 = arith.select %45, %61, %62 : vector<8x128xi1>, vector<8x128xf32>
    %64 = vector.extract_strided_slice %51 {offsets = [32, 0], sizes = [8, 128], strides = [1, 1]} : vector<64x128xf32> to vector<8x128xf32>
    %65 = vector.extract_strided_slice %51 {offsets = [24, 0], sizes = [8, 128], strides = [1, 1]} : vector<64x128xf32> to vector<8x128xf32>
    %66 = arith.select %45, %64, %65 : vector<8x128xi1>, vector<8x128xf32>
    %67 = vector.extract_strided_slice %51 {offsets = [40, 0], sizes = [8, 128], strides = [1, 1]} : vector<64x128xf32> to vector<8x128xf32>
    %68 = vector.extract_strided_slice %51 {offsets = [16, 0], sizes = [8, 128], strides = [1, 1]} : vector<64x128xf32> to vector<8x128xf32>
    %69 = arith.select %45, %67, %68 : vector<8x128xi1>, vector<8x128xf32>
    %70 = vector.extract_strided_slice %51 {offsets = [48, 0], sizes = [8, 128], strides = [1, 1]} : vector<64x128xf32> to vector<8x128xf32>
    %71 = vector.extract_strided_slice %51 {offsets = [8, 0], sizes = [8, 128], strides = [1, 1]} : vector<64x128xf32> to vector<8x128xf32>
    %72 = arith.select %45, %70, %71 : vector<8x128xi1>, vector<8x128xf32>
    %73 = vector.extract_strided_slice %51 {offsets = [56, 0], sizes = [8, 128], strides = [1, 1]} : vector<64x128xf32> to vector<8x128xf32>
    %74 = vector.extract_strided_slice %51 {offsets = [0, 0], sizes = [8, 128], strides = [1, 1]} : vector<64x128xf32> to vector<8x128xf32>
    %75 = arith.select %45, %73, %74 : vector<8x128xi1>, vector<8x128xf32>
    %76 = tpu.concatenate %54, %57, %60, %63, %66, %69, %72, %75 in 0 : vector<8x128xf32>, vector<8x128xf32>, vector<8x128xf32>, vector<8x128xf32>, vector<8x128xf32>, vector<8x128xf32>, vector<8x128xf32>, vector<8x128xf32> -> vector<64x128xf32>
    %c0_19 = arith.constant 0 : index
    %c0_20 = arith.constant 0 : index
    %77 = vector.load %arg5[%c0_19, %c0_20] : memref<32x128xbf16, #tpu.memory_space<vmem>>, vector<32x128xbf16>
    %cst_21 = arith.constant 0.000000e+00 : f32
    %78 = vector.broadcast %cst_21 : f32 to vector<8x32xf32>
    %cst_22 = arith.constant 0.000000e+00 : f32
    %79 = vector.broadcast %cst_22 : f32 to vector<8x32xf32>
    %80 = vector.extract_strided_slice %76 {offsets = [0, 0], sizes = [8, 128], strides = [1, 1]} : vector<64x128xf32> to vector<8x128xf32>
    %81 = arith.truncf %78 : vector<8x32xf32> to vector<8x32xbf16>
    %cst_23 = arith.constant dense<0.000000e+00> : vector<8x128xf32>
    %82 = tpu.matmul %81, %77, %cst_23 {dimension_numbers = #tpu.dot_dimension_numbers<[1], [0], [0], [1], [0, 0, 1, 1], [], []>} : vector<8x32xbf16>, vector<32x128xbf16>, vector<8x128xf32> -> vector<8x128xf32>
    %83 = arith.addf %80, %82 : vector<8x128xf32>
    %84 = arith.negf %83 : vector<8x128xf32>
    %85 = math.exp %84 : vector<8x128xf32>
    %cst_24 = arith.constant 1.000000e+00 : f32
    %86 = vector.broadcast %cst_24 : f32 to vector<8x128xf32>
    %87 = arith.addf %86, %85 : vector<8x128xf32>
    %88 = arith.divf %86, %87 : vector<8x128xf32>
    %89 = math.tanh %83 : vector<8x128xf32>
    %90 = vector.extract_strided_slice %88 {offsets = [0, 32], sizes = [8, 32], strides = [1, 1]} : vector<8x128xf32> to vector<8x32xf32>
    %91 = arith.mulf %90, %79 : vector<8x32xf32>
    %92 = vector.extract_strided_slice %88 {offsets = [0, 0], sizes = [8, 32], strides = [1, 1]} : vector<8x128xf32> to vector<8x32xf32>
    %93 = vector.extract_strided_slice %89 {offsets = [0, 64], sizes = [8, 32], strides = [1, 1]} : vector<8x128xf32> to vector<8x32xf32>
    %94 = arith.mulf %92, %93 : vector<8x32xf32>
    %95 = arith.addf %91, %94 : vector<8x32xf32>
    %96 = vector.extract_strided_slice %88 {offsets = [0, 96], sizes = [8, 32], strides = [1, 1]} : vector<8x128xf32> to vector<8x32xf32>
    %97 = math.tanh %95 : vector<8x32xf32>
    %98 = arith.mulf %96, %97 : vector<8x32xf32>
    %99 = vector.extract_strided_slice %98 {offsets = [0, 0], sizes = [8, 16], strides = [1, 1]} : vector<8x32xf32> to vector<8x16xf32>
    %c0_25 = arith.constant 0 : index
    %c0_26 = arith.constant 0 : index
    %100 = vector.load %arg13[%c0_25, %c0_26] : memref<64x32xf32, #tpu.memory_space<vmem>>, vector<8x16xf32>
    tpu.vector_store %arg13[%c0_25, %c0_26], %99 {strides = array<i32>} : memref<64x32xf32, #tpu.memory_space<vmem>>, vector<8x16xf32>,
    %101 = vector.extract_strided_slice %98 {offsets = [0, 16], sizes = [8, 16], strides = [1, 1]} : vector<8x32xf32> to vector<8x16xf32>
    %c56 = arith.constant 56 : index
    %c16 = arith.constant 16 : index
    %102 = vector.load %arg13[%c56, %c16] : memref<64x32xf32, #tpu.memory_space<vmem>>, vector<8x16xf32>
    tpu.vector_store %arg13[%c56, %c16], %101 {strides = array<i32>} : memref<64x32xf32, #tpu.memory_space<vmem>>, vector<8x16xf32>,
    %103 = vector.extract_strided_slice %76 {offsets = [8, 0], sizes = [8, 128], strides = [1, 1]} : vector<64x128xf32> to vector<8x128xf32>
    %104 = arith.truncf %98 : vector<8x32xf32> to vector<8x32xbf16>
    %cst_27 = arith.constant dense<0.000000e+00> : vector<8x128xf32>
    %105 = tpu.matmul %104, %77, %cst_27 {dimension_numbers = #tpu.dot_dimension_numbers<[1], [0], [0], [1], [0, 0, 1, 1], [], []>} : vector<8x32xbf16>, vector<32x128xbf16>, vector<8x128xf32> -> vector<8x128xf32>
    %106 = arith.addf %103, %105 : vector<8x128xf32>
    %107 = arith.negf %106 : vector<8x128xf32>
    %108 = math.exp %107 : vector<8x128xf32>
    %cst_28 = arith.constant 1.000000e+00 : f32
    %109 = vector.broadcast %cst_28 : f32 to vector<8x128xf32>
    %110 = arith.addf %109, %108 : vector<8x128xf32>
    %111 = arith.divf %109, %110 : vector<8x128xf32>
    %112 = math.tanh %106 : vector<8x128xf32>
    %113 = vector.extract_strided_slice %111 {offsets = [0, 32], sizes = [8, 32], strides = [1, 1]} : vector<8x128xf32> to vector<8x32xf32>
    %114 = arith.mulf %113, %95 : vector<8x32xf32>
    %115 = vector.extract_strided_slice %111 {offsets = [0, 0], sizes = [8, 32], strides = [1, 1]} : vector<8x128xf32> to vector<8x32xf32>
    %116 = vector.extract_strided_slice %112 {offsets = [0, 64], sizes = [8, 32], strides = [1, 1]} : vector<8x128xf32> to vector<8x32xf32>
    %117 = arith.mulf %115, %116 : vector<8x32xf32>
    %118 = arith.addf %114, %117 : vector<8x32xf32>
    %119 = vector.extract_strided_slice %111 {offsets = [0, 96], sizes = [8, 32], strides = [1, 1]} : vector<8x128xf32> to vector<8x32xf32>
    %120 = math.tanh %118 : vector<8x32xf32>
    %121 = arith.mulf %119, %120 : vector<8x32xf32>
    %122 = vector.extract_strided_slice %121 {offsets = [0, 0], sizes = [8, 16], strides = [1, 1]} : vector<8x32xf32> to vector<8x16xf32>
    %c8 = arith.constant 8 : index
    %c0_29 = arith.constant 0 : index
    %123 = vector.load %arg13[%c8, %c0_29] : memref<64x32xf32, #tpu.memory_space<vmem>>, vector<8x16xf32>
    tpu.vector_store %arg13[%c8, %c0_29], %122 {strides = array<i32>} : memref<64x32xf32, #tpu.memory_space<vmem>>, vector<8x16xf32>,
    %124 = vector.extract_strided_slice %121 {offsets = [0, 16], sizes = [8, 16], strides = [1, 1]} : vector<8x32xf32> to vector<8x16xf32>
    %c48 = arith.constant 48 : index
    %c16_30 = arith.constant 16 : index
    %125 = vector.load %arg13[%c48, %c16_30] : memref<64x32xf32, #tpu.memory_space<vmem>>, vector<8x16xf32>
    tpu.vector_store %arg13[%c48, %c16_30], %124 {strides = array<i32>} : memref<64x32xf32, #tpu.memory_space<vmem>>, vector<8x16xf32>,
    %126 = vector.extract_strided_slice %76 {offsets = [16, 0], sizes = [8, 128], strides = [1, 1]} : vector<64x128xf32> to vector<8x128xf32>
    %127 = arith.truncf %121 : vector<8x32xf32> to vector<8x32xbf16>
    %cst_31 = arith.constant dense<0.000000e+00> : vector<8x128xf32>
    %128 = tpu.matmul %127, %77, %cst_31 {dimension_numbers = #tpu.dot_dimension_numbers<[1], [0], [0], [1], [0, 0, 1, 1], [], []>} : vector<8x32xbf16>, vector<32x128xbf16>, vector<8x128xf32> -> vector<8x128xf32>
    %129 = arith.addf %126, %128 : vector<8x128xf32>
    %130 = arith.negf %129 : vector<8x128xf32>
    %131 = math.exp %130 : vector<8x128xf32>
    %cst_32 = arith.constant 1.000000e+00 : f32
    %132 = vector.broadcast %cst_32 : f32 to vector<8x128xf32>
    %133 = arith.addf %132, %131 : vector<8x128xf32>
    %134 = arith.divf %132, %133 : vector<8x128xf32>
    %135 = math.tanh %129 : vector<8x128xf32>
    %136 = vector.extract_strided_slice %134 {offsets = [0, 32], sizes = [8, 32], strides = [1, 1]} : vector<8x128xf32> to vector<8x32xf32>
    %137 = arith.mulf %136, %118 : vector<8x32xf32>
    %138 = vector.extract_strided_slice %134 {offsets = [0, 0], sizes = [8, 32], strides = [1, 1]} : vector<8x128xf32> to vector<8x32xf32>
    %139 = vector.extract_strided_slice %135 {offsets = [0, 64], sizes = [8, 32], strides = [1, 1]} : vector<8x128xf32> to vector<8x32xf32>
    %140 = arith.mulf %138, %139 : vector<8x32xf32>
    %141 = arith.addf %137, %140 : vector<8x32xf32>
    %142 = vector.extract_strided_slice %134 {offsets = [0, 96], sizes = [8, 32], strides = [1, 1]} : vector<8x128xf32> to vector<8x32xf32>
    %143 = math.tanh %141 : vector<8x32xf32>
    %144 = arith.mulf %142, %143 : vector<8x32xf32>
    %145 = vector.extract_strided_slice %144 {offsets = [0, 0], sizes = [8, 16], strides = [1, 1]} : vector<8x32xf32> to vector<8x16xf32>
    %c16_33 = arith.constant 16 : index
    %c0_34 = arith.constant 0 : index
    %146 = vector.load %arg13[%c16_33, %c0_34] : memref<64x32xf32, #tpu.memory_space<vmem>>, vector<8x16xf32>
    tpu.vector_store %arg13[%c16_33, %c0_34], %145 {strides = array<i32>} : memref<64x32xf32, #tpu.memory_space<vmem>>, vector<8x16xf32>,
    %147 = vector.extract_strided_slice %144 {offsets = [0, 16], sizes = [8, 16], strides = [1, 1]} : vector<8x32xf32> to vector<8x16xf32>
    %c40 = arith.constant 40 : index
    %c16_35 = arith.constant 16 : index
    %148 = vector.load %arg13[%c40, %c16_35] : memref<64x32xf32, #tpu.memory_space<vmem>>, vector<8x16xf32>
    tpu.vector_store %arg13[%c40, %c16_35], %147 {strides = array<i32>} : memref<64x32xf32, #tpu.memory_space<vmem>>, vector<8x16xf32>,
    %149 = vector.extract_strided_slice %76 {offsets = [24, 0], sizes = [8, 128], strides = [1, 1]} : vector<64x128xf32> to vector<8x128xf32>
    %150 = arith.truncf %144 : vector<8x32xf32> to vector<8x32xbf16>
    %cst_36 = arith.constant dense<0.000000e+00> : vector<8x128xf32>
    %151 = tpu.matmul %150, %77, %cst_36 {dimension_numbers = #tpu.dot_dimension_numbers<[1], [0], [0], [1], [0, 0, 1, 1], [], []>} : vector<8x32xbf16>, vector<32x128xbf16>, vector<8x128xf32> -> vector<8x128xf32>
    %152 = arith.addf %149, %151 : vector<8x128xf32>
    %153 = arith.negf %152 : vector<8x128xf32>
    %154 = math.exp %153 : vector<8x128xf32>
    %cst_37 = arith.constant 1.000000e+00 : f32
    %155 = vector.broadcast %cst_37 : f32 to vector<8x128xf32>
    %156 = arith.addf %155, %154 : vector<8x128xf32>
    %157 = arith.divf %155, %156 : vector<8x128xf32>
    %158 = math.tanh %152 : vector<8x128xf32>
    %159 = vector.extract_strided_slice %157 {offsets = [0, 32], sizes = [8, 32], strides = [1, 1]} : vector<8x128xf32> to vector<8x32xf32>
    %160 = arith.mulf %159, %141 : vector<8x32xf32>
    %161 = vector.extract_strided_slice %157 {offsets = [0, 0], sizes = [8, 32], strides = [1, 1]} : vector<8x128xf32> to vector<8x32xf32>
    %162 = vector.extract_strided_slice %158 {offsets = [0, 64], sizes = [8, 32], strides = [1, 1]} : vector<8x128xf32> to vector<8x32xf32>
    %163 = arith.mulf %161, %162 : vector<8x32xf32>
    %164 = arith.addf %160, %163 : vector<8x32xf32>
    %165 = vector.extract_strided_slice %157 {offsets = [0, 96], sizes = [8, 32], strides = [1, 1]} : vector<8x128xf32> to vector<8x32xf32>
    %166 = math.tanh %164 : vector<8x32xf32>
    %167 = arith.mulf %165, %166 : vector<8x32xf32>
    %168 = vector.extract_strided_slice %167 {offsets = [0, 0], sizes = [8, 16], strides = [1, 1]} : vector<8x32xf32> to vector<8x16xf32>
    %c24 = arith.constant 24 : index
    %c0_38 = arith.constant 0 : index
    %169 = vector.load %arg13[%c24, %c0_38] : memref<64x32xf32, #tpu.memory_space<vmem>>, vector<8x16xf32>
    tpu.vector_store %arg13[%c24, %c0_38], %168 {strides = array<i32>} : memref<64x32xf32, #tpu.memory_space<vmem>>, vector<8x16xf32>,
    %170 = vector.extract_strided_slice %167 {offsets = [0, 16], sizes = [8, 16], strides = [1, 1]} : vector<8x32xf32> to vector<8x16xf32>
    %c32 = arith.constant 32 : index
    %c16_39 = arith.constant 16 : index
    %171 = vector.load %arg13[%c32, %c16_39] : memref<64x32xf32, #tpu.memory_space<vmem>>, vector<8x16xf32>
    tpu.vector_store %arg13[%c32, %c16_39], %170 {strides = array<i32>} : memref<64x32xf32, #tpu.memory_space<vmem>>, vector<8x16xf32>,
    %172 = vector.extract_strided_slice %76 {offsets = [32, 0], sizes = [8, 128], strides = [1, 1]} : vector<64x128xf32> to vector<8x128xf32>
    %173 = arith.truncf %167 : vector<8x32xf32> to vector<8x32xbf16>
    %cst_40 = arith.constant dense<0.000000e+00> : vector<8x128xf32>
    %174 = tpu.matmul %173, %77, %cst_40 {dimension_numbers = #tpu.dot_dimension_numbers<[1], [0], [0], [1], [0, 0, 1, 1], [], []>} : vector<8x32xbf16>, vector<32x128xbf16>, vector<8x128xf32> -> vector<8x128xf32>
    %175 = arith.addf %172, %174 : vector<8x128xf32>
    %176 = arith.negf %175 : vector<8x128xf32>
    %177 = math.exp %176 : vector<8x128xf32>
    %cst_41 = arith.constant 1.000000e+00 : f32
    %178 = vector.broadcast %cst_41 : f32 to vector<8x128xf32>
    %179 = arith.addf %178, %177 : vector<8x128xf32>
    %180 = arith.divf %178, %179 : vector<8x128xf32>
    %181 = math.tanh %175 : vector<8x128xf32>
    %182 = vector.extract_strided_slice %180 {offsets = [0, 32], sizes = [8, 32], strides = [1, 1]} : vector<8x128xf32> to vector<8x32xf32>
    %183 = arith.mulf %182, %164 : vector<8x32xf32>
    %184 = vector.extract_strided_slice %180 {offsets = [0, 0], sizes = [8, 32], strides = [1, 1]} : vector<8x128xf32> to vector<8x32xf32>
    %185 = vector.extract_strided_slice %181 {offsets = [0, 64], sizes = [8, 32], strides = [1, 1]} : vector<8x128xf32> to vector<8x32xf32>
    %186 = arith.mulf %184, %185 : vector<8x32xf32>
    %187 = arith.addf %183, %186 : vector<8x32xf32>
    %188 = vector.extract_strided_slice %180 {offsets = [0, 96], sizes = [8, 32], strides = [1, 1]} : vector<8x128xf32> to vector<8x32xf32>
    %189 = math.tanh %187 : vector<8x32xf32>
    %190 = arith.mulf %188, %189 : vector<8x32xf32>
    %191 = vector.extract_strided_slice %190 {offsets = [0, 0], sizes = [8, 16], strides = [1, 1]} : vector<8x32xf32> to vector<8x16xf32>
    %c32_42 = arith.constant 32 : index
    %c0_43 = arith.constant 0 : index
    %192 = vector.load %arg13[%c32_42, %c0_43] : memref<64x32xf32, #tpu.memory_space<vmem>>, vector<8x16xf32>
    tpu.vector_store %arg13[%c32_42, %c0_43], %191 {strides = array<i32>} : memref<64x32xf32, #tpu.memory_space<vmem>>, vector<8x16xf32>,
    %193 = vector.extract_strided_slice %190 {offsets = [0, 16], sizes = [8, 16], strides = [1, 1]} : vector<8x32xf32> to vector<8x16xf32>
    %c24_44 = arith.constant 24 : index
    %c16_45 = arith.constant 16 : index
    %194 = vector.load %arg13[%c24_44, %c16_45] : memref<64x32xf32, #tpu.memory_space<vmem>>, vector<8x16xf32>
    tpu.vector_store %arg13[%c24_44, %c16_45], %193 {strides = array<i32>} : memref<64x32xf32, #tpu.memory_space<vmem>>, vector<8x16xf32>,
    %195 = vector.extract_strided_slice %76 {offsets = [40, 0], sizes = [8, 128], strides = [1, 1]} : vector<64x128xf32> to vector<8x128xf32>
    %196 = arith.truncf %190 : vector<8x32xf32> to vector<8x32xbf16>
    %cst_46 = arith.constant dense<0.000000e+00> : vector<8x128xf32>
    %197 = tpu.matmul %196, %77, %cst_46 {dimension_numbers = #tpu.dot_dimension_numbers<[1], [0], [0], [1], [0, 0, 1, 1], [], []>} : vector<8x32xbf16>, vector<32x128xbf16>, vector<8x128xf32> -> vector<8x128xf32>
    %198 = arith.addf %195, %197 : vector<8x128xf32>
    %199 = arith.negf %198 : vector<8x128xf32>
    %200 = math.exp %199 : vector<8x128xf32>
    %cst_47 = arith.constant 1.000000e+00 : f32
    %201 = vector.broadcast %cst_47 : f32 to vector<8x128xf32>
    %202 = arith.addf %201, %200 : vector<8x128xf32>
    %203 = arith.divf %201, %202 : vector<8x128xf32>
    %204 = math.tanh %198 : vector<8x128xf32>
    %205 = vector.extract_strided_slice %203 {offsets = [0, 32], sizes = [8, 32], strides = [1, 1]} : vector<8x128xf32> to vector<8x32xf32>
    %206 = arith.mulf %205, %187 : vector<8x32xf32>
    %207 = vector.extract_strided_slice %203 {offsets = [0, 0], sizes = [8, 32], strides = [1, 1]} : vector<8x128xf32> to vector<8x32xf32>
    %208 = vector.extract_strided_slice %204 {offsets = [0, 64], sizes = [8, 32], strides = [1, 1]} : vector<8x128xf32> to vector<8x32xf32>
    %209 = arith.mulf %207, %208 : vector<8x32xf32>
    %210 = arith.addf %206, %209 : vector<8x32xf32>
    %211 = vector.extract_strided_slice %203 {offsets = [0, 96], sizes = [8, 32], strides = [1, 1]} : vector<8x128xf32> to vector<8x32xf32>
    %212 = math.tanh %210 : vector<8x32xf32>
    %213 = arith.mulf %211, %212 : vector<8x32xf32>
    %214 = vector.extract_strided_slice %213 {offsets = [0, 0], sizes = [8, 16], strides = [1, 1]} : vector<8x32xf32> to vector<8x16xf32>
    %c40_48 = arith.constant 40 : index
    %c0_49 = arith.constant 0 : index
    %215 = vector.load %arg13[%c40_48, %c0_49] : memref<64x32xf32, #tpu.memory_space<vmem>>, vector<8x16xf32>
    tpu.vector_store %arg13[%c40_48, %c0_49], %214 {strides = array<i32>} : memref<64x32xf32, #tpu.memory_space<vmem>>, vector<8x16xf32>,
    %216 = vector.extract_strided_slice %213 {offsets = [0, 16], sizes = [8, 16], strides = [1, 1]} : vector<8x32xf32> to vector<8x16xf32>
    %c16_50 = arith.constant 16 : index
    %c16_51 = arith.constant 16 : index
    %217 = vector.load %arg13[%c16_50, %c16_51] : memref<64x32xf32, #tpu.memory_space<vmem>>, vector<8x16xf32>
    tpu.vector_store %arg13[%c16_50, %c16_51], %216 {strides = array<i32>} : memref<64x32xf32, #tpu.memory_space<vmem>>, vector<8x16xf32>,
    %218 = vector.extract_strided_slice %76 {offsets = [48, 0], sizes = [8, 128], strides = [1, 1]} : vector<64x128xf32> to vector<8x128xf32>
    %219 = arith.truncf %213 : vector<8x32xf32> to vector<8x32xbf16>
    %cst_52 = arith.constant dense<0.000000e+00> : vector<8x128xf32>
    %220 = tpu.matmul %219, %77, %cst_52 {dimension_numbers = #tpu.dot_dimension_numbers<[1], [0], [0], [1], [0, 0, 1, 1], [], []>} : vector<8x32xbf16>, vector<32x128xbf16>, vector<8x128xf32> -> vector<8x128xf32>
    %221 = arith.addf %218, %220 : vector<8x128xf32>
    %222 = arith.negf %221 : vector<8x128xf32>
    %223 = math.exp %222 : vector<8x128xf32>
    %cst_53 = arith.constant 1.000000e+00 : f32
    %224 = vector.broadcast %cst_53 : f32 to vector<8x128xf32>
    %225 = arith.addf %224, %223 : vector<8x128xf32>
    %226 = arith.divf %224, %225 : vector<8x128xf32>
    %227 = math.tanh %221 : vector<8x128xf32>
    %228 = vector.extract_strided_slice %226 {offsets = [0, 32], sizes = [8, 32], strides = [1, 1]} : vector<8x128xf32> to vector<8x32xf32>
    %229 = arith.mulf %228, %210 : vector<8x32xf32>
    %230 = vector.extract_strided_slice %226 {offsets = [0, 0], sizes = [8, 32], strides = [1, 1]} : vector<8x128xf32> to vector<8x32xf32>
    %231 = vector.extract_strided_slice %227 {offsets = [0, 64], sizes = [8, 32], strides = [1, 1]} : vector<8x128xf32> to vector<8x32xf32>
    %232 = arith.mulf %230, %231 : vector<8x32xf32>
    %233 = arith.addf %229, %232 : vector<8x32xf32>
    %234 = vector.extract_strided_slice %226 {offsets = [0, 96], sizes = [8, 32], strides = [1, 1]} : vector<8x128xf32> to vector<8x32xf32>
    %235 = math.tanh %233 : vector<8x32xf32>
    %236 = arith.mulf %234, %235 : vector<8x32xf32>
    %237 = vector.extract_strided_slice %236 {offsets = [0, 0], sizes = [8, 16], strides = [1, 1]} : vector<8x32xf32> to vector<8x16xf32>
    %c48_54 = arith.constant 48 : index
    %c0_55 = arith.constant 0 : index
    %238 = vector.load %arg13[%c48_54, %c0_55] : memref<64x32xf32, #tpu.memory_space<vmem>>, vector<8x16xf32>
    tpu.vector_store %arg13[%c48_54, %c0_55], %237 {strides = array<i32>} : memref<64x32xf32, #tpu.memory_space<vmem>>, vector<8x16xf32>,
    %239 = vector.extract_strided_slice %236 {offsets = [0, 16], sizes = [8, 16], strides = [1, 1]} : vector<8x32xf32> to vector<8x16xf32>
    %c8_56 = arith.constant 8 : index
    %c16_57 = arith.constant 16 : index
    %240 = vector.load %arg13[%c8_56, %c16_57] : memref<64x32xf32, #tpu.memory_space<vmem>>, vector<8x16xf32>
    tpu.vector_store %arg13[%c8_56, %c16_57], %239 {strides = array<i32>} : memref<64x32xf32, #tpu.memory_space<vmem>>, vector<8x16xf32>,
    %241 = vector.extract_strided_slice %76 {offsets = [56, 0], sizes = [8, 128], strides = [1, 1]} : vector<64x128xf32> to vector<8x128xf32>
    %242 = arith.truncf %236 : vector<8x32xf32> to vector<8x32xbf16>
    %cst_58 = arith.constant dense<0.000000e+00> : vector<8x128xf32>
    %243 = tpu.matmul %242, %77, %cst_58 {dimension_numbers = #tpu.dot_dimension_numbers<[1], [0], [0], [1], [0, 0, 1, 1], [], []>} : vector<8x32xbf16>, vector<32x128xbf16>, vector<8x128xf32> -> vector<8x128xf32>
    %244 = arith.addf %241, %243 : vector<8x128xf32>
    %245 = arith.negf %244 : vector<8x128xf32>
    %246 = math.exp %245 : vector<8x128xf32>
    %cst_59 = arith.constant 1.000000e+00 : f32
    %247 = vector.broadcast %cst_59 : f32 to vector<8x128xf32>
    %248 = arith.addf %247, %246 : vector<8x128xf32>
    %249 = arith.divf %247, %248 : vector<8x128xf32>
    %250 = math.tanh %244 : vector<8x128xf32>
    %251 = vector.extract_strided_slice %249 {offsets = [0, 32], sizes = [8, 32], strides = [1, 1]} : vector<8x128xf32> to vector<8x32xf32>
    %252 = arith.mulf %251, %233 : vector<8x32xf32>
    %253 = vector.extract_strided_slice %249 {offsets = [0, 0], sizes = [8, 32], strides = [1, 1]} : vector<8x128xf32> to vector<8x32xf32>
    %254 = vector.extract_strided_slice %250 {offsets = [0, 64], sizes = [8, 32], strides = [1, 1]} : vector<8x128xf32> to vector<8x32xf32>
    %255 = arith.mulf %253, %254 : vector<8x32xf32>
    %256 = arith.addf %252, %255 : vector<8x32xf32>
    %257 = vector.extract_strided_slice %249 {offsets = [0, 96], sizes = [8, 32], strides = [1, 1]} : vector<8x128xf32> to vector<8x32xf32>
    %258 = math.tanh %256 : vector<8x32xf32>
    %259 = arith.mulf %257, %258 : vector<8x32xf32>
    %260 = vector.extract_strided_slice %259 {offsets = [0, 0], sizes = [8, 16], strides = [1, 1]} : vector<8x32xf32> to vector<8x16xf32>
    %c56_60 = arith.constant 56 : index
    %c0_61 = arith.constant 0 : index
    %261 = vector.load %arg13[%c56_60, %c0_61] : memref<64x32xf32, #tpu.memory_space<vmem>>, vector<8x16xf32>
    tpu.vector_store %arg13[%c56_60, %c0_61], %260 {strides = array<i32>} : memref<64x32xf32, #tpu.memory_space<vmem>>, vector<8x16xf32>,
    %262 = vector.extract_strided_slice %259 {offsets = [0, 16], sizes = [8, 16], strides = [1, 1]} : vector<8x32xf32> to vector<8x16xf32>
    %c0_62 = arith.constant 0 : index
    %c16_63 = arith.constant 16 : index
    %263 = vector.load %arg13[%c0_62, %c16_63] : memref<64x32xf32, #tpu.memory_space<vmem>>, vector<8x16xf32>
    tpu.vector_store %arg13[%c0_62, %c16_63], %262 {strides = array<i32>} : memref<64x32xf32, #tpu.memory_space<vmem>>, vector<8x16xf32>,
    %c0_64 = arith.constant 0 : index
    %c0_65 = arith.constant 0 : index
    %264 = vector.load %arg13[%c0_64, %c0_65] : memref<64x32xf32, #tpu.memory_space<vmem>>, vector<64x32xf32>
    %265 = arith.truncf %264 : vector<64x32xf32> to vector<64x32xbf16>
    %c0_66 = arith.constant 0 : index
    %c0_67 = arith.constant 0 : index
    %266 = vector.load %arg7[%c0_66, %c0_67] : memref<32x128xbf16, #tpu.memory_space<vmem>>, vector<32x128xbf16>
    %cst_68 = arith.constant dense<0.000000e+00> : vector<64x128xf32>
    %267 = tpu.matmul %265, %266, %cst_68 {dimension_numbers = #tpu.dot_dimension_numbers<[1], [0], [0], [1], [0, 0, 1, 1], [], []>} : vector<64x32xbf16>, vector<32x128xbf16>, vector<64x128xf32> -> vector<64x128xf32>
    %c0_69 = arith.constant 0 : index
    %c0_70 = arith.constant 0 : index
    %268 = vector.load %arg9[%c0_69, %c0_70] : memref<1x128xf32, #tpu.memory_space<vmem>>, vector<1x128xf32>
    %269 = vector.broadcast %268 : vector<1x128xf32> to vector<64x128xf32>
    %270 = arith.addf %267, %269 : vector<64x128xf32>
    %271 = vector.extract_strided_slice %270 {offsets = [0, 0], sizes = [8, 128], strides = [1, 1]} : vector<64x128xf32> to vector<8x128xf32>
    %272 = vector.extract_strided_slice %270 {offsets = [56, 0], sizes = [8, 128], strides = [1, 1]} : vector<64x128xf32> to vector<8x128xf32>
    %273 = arith.select %45, %271, %272 : vector<8x128xi1>, vector<8x128xf32>
    %274 = vector.extract_strided_slice %270 {offsets = [8, 0], sizes = [8, 128], strides = [1, 1]} : vector<64x128xf32> to vector<8x128xf32>
    %275 = vector.extract_strided_slice %270 {offsets = [48, 0], sizes = [8, 128], strides = [1, 1]} : vector<64x128xf32> to vector<8x128xf32>
    %276 = arith.select %45, %274, %275 : vector<8x128xi1>, vector<8x128xf32>
    %277 = vector.extract_strided_slice %270 {offsets = [16, 0], sizes = [8, 128], strides = [1, 1]} : vector<64x128xf32> to vector<8x128xf32>
    %278 = vector.extract_strided_slice %270 {offsets = [40, 0], sizes = [8, 128], strides = [1, 1]} : vector<64x128xf32> to vector<8x128xf32>
    %279 = arith.select %45, %277, %278 : vector<8x128xi1>, vector<8x128xf32>
    %280 = vector.extract_strided_slice %270 {offsets = [24, 0], sizes = [8, 128], strides = [1, 1]} : vector<64x128xf32> to vector<8x128xf32>
    %281 = vector.extract_strided_slice %270 {offsets = [32, 0], sizes = [8, 128], strides = [1, 1]} : vector<64x128xf32> to vector<8x128xf32>
    %282 = arith.select %45, %280, %281 : vector<8x128xi1>, vector<8x128xf32>
    %283 = vector.extract_strided_slice %270 {offsets = [32, 0], sizes = [8, 128], strides = [1, 1]} : vector<64x128xf32> to vector<8x128xf32>
    %284 = vector.extract_strided_slice %270 {offsets = [24, 0], sizes = [8, 128], strides = [1, 1]} : vector<64x128xf32> to vector<8x128xf32>
    %285 = arith.select %45, %283, %284 : vector<8x128xi1>, vector<8x128xf32>
    %286 = vector.extract_strided_slice %270 {offsets = [40, 0], sizes = [8, 128], strides = [1, 1]} : vector<64x128xf32> to vector<8x128xf32>
    %287 = vector.extract_strided_slice %270 {offsets = [16, 0], sizes = [8, 128], strides = [1, 1]} : vector<64x128xf32> to vector<8x128xf32>
    %288 = arith.select %45, %286, %287 : vector<8x128xi1>, vector<8x128xf32>
    %289 = vector.extract_strided_slice %270 {offsets = [48, 0], sizes = [8, 128], strides = [1, 1]} : vector<64x128xf32> to vector<8x128xf32>
    %290 = vector.extract_strided_slice %270 {offsets = [8, 0], sizes = [8, 128], strides = [1, 1]} : vector<64x128xf32> to vector<8x128xf32>
    %291 = arith.select %45, %289, %290 : vector<8x128xi1>, vector<8x128xf32>
    %292 = vector.extract_strided_slice %270 {offsets = [56, 0], sizes = [8, 128], strides = [1, 1]} : vector<64x128xf32> to vector<8x128xf32>
    %293 = vector.extract_strided_slice %270 {offsets = [0, 0], sizes = [8, 128], strides = [1, 1]} : vector<64x128xf32> to vector<8x128xf32>
    %294 = arith.select %45, %292, %293 : vector<8x128xi1>, vector<8x128xf32>
    %295 = tpu.concatenate %273, %276, %279, %282, %285, %288, %291, %294 in 0 : vector<8x128xf32>, vector<8x128xf32>, vector<8x128xf32>, vector<8x128xf32>, vector<8x128xf32>, vector<8x128xf32>, vector<8x128xf32>, vector<8x128xf32> -> vector<64x128xf32>
    %c0_71 = arith.constant 0 : index
    %c0_72 = arith.constant 0 : index
    %296 = vector.load %arg8[%c0_71, %c0_72] : memref<32x128xbf16, #tpu.memory_space<vmem>>, vector<32x128xbf16>
    %cst_73 = arith.constant 0.000000e+00 : f32
    %297 = vector.broadcast %cst_73 : f32 to vector<8x32xf32>
    %cst_74 = arith.constant 0.000000e+00 : f32
    %298 = vector.broadcast %cst_74 : f32 to vector<8x32xf32>
    %299 = vector.extract_strided_slice %295 {offsets = [0, 0], sizes = [8, 128], strides = [1, 1]} : vector<64x128xf32> to vector<8x128xf32>
    %300 = arith.truncf %297 : vector<8x32xf32> to vector<8x32xbf16>
    %cst_75 = arith.constant dense<0.000000e+00> : vector<8x128xf32>
    %301 = tpu.matmul %300, %296, %cst_75 {dimension_numbers = #tpu.dot_dimension_numbers<[1], [0], [0], [1], [0, 0, 1, 1], [], []>} : vector<8x32xbf16>, vector<32x128xbf16>, vector<8x128xf32> -> vector<8x128xf32>
    %302 = arith.addf %299, %301 : vector<8x128xf32>
    %303 = arith.negf %302 : vector<8x128xf32>
    %304 = math.exp %303 : vector<8x128xf32>
    %cst_76 = arith.constant 1.000000e+00 : f32
    %305 = vector.broadcast %cst_76 : f32 to vector<8x128xf32>
    %306 = arith.addf %305, %304 : vector<8x128xf32>
    %307 = arith.divf %305, %306 : vector<8x128xf32>
    %308 = math.tanh %302 : vector<8x128xf32>
    %309 = vector.extract_strided_slice %307 {offsets = [0, 32], sizes = [8, 32], strides = [1, 1]} : vector<8x128xf32> to vector<8x32xf32>
    %310 = arith.mulf %309, %298 : vector<8x32xf32>
    %311 = vector.extract_strided_slice %307 {offsets = [0, 0], sizes = [8, 32], strides = [1, 1]} : vector<8x128xf32> to vector<8x32xf32>
    %312 = vector.extract_strided_slice %308 {offsets = [0, 64], sizes = [8, 32], strides = [1, 1]} : vector<8x128xf32> to vector<8x32xf32>
    %313 = arith.mulf %311, %312 : vector<8x32xf32>
    %314 = arith.addf %310, %313 : vector<8x32xf32>
    %315 = vector.extract_strided_slice %307 {offsets = [0, 96], sizes = [8, 32], strides = [1, 1]} : vector<8x128xf32> to vector<8x32xf32>
    %316 = math.tanh %314 : vector<8x32xf32>
    %317 = arith.mulf %315, %316 : vector<8x32xf32>
    %318 = vector.extract_strided_slice %317 {offsets = [0, 0], sizes = [8, 16], strides = [1, 1]} : vector<8x32xf32> to vector<8x16xf32>
    %c0_77 = arith.constant 0 : index
    %c0_78 = arith.constant 0 : index
    %319 = vector.load %arg14[%c0_77, %c0_78] : memref<64x32xf32, #tpu.memory_space<vmem>>, vector<8x16xf32>
    tpu.vector_store %arg14[%c0_77, %c0_78], %318 {strides = array<i32>} : memref<64x32xf32, #tpu.memory_space<vmem>>, vector<8x16xf32>,
    %320 = vector.extract_strided_slice %317 {offsets = [0, 16], sizes = [8, 16], strides = [1, 1]} : vector<8x32xf32> to vector<8x16xf32>
    %c56_79 = arith.constant 56 : index
    %c16_80 = arith.constant 16 : index
    %321 = vector.load %arg14[%c56_79, %c16_80] : memref<64x32xf32, #tpu.memory_space<vmem>>, vector<8x16xf32>
    tpu.vector_store %arg14[%c56_79, %c16_80], %320 {strides = array<i32>} : memref<64x32xf32, #tpu.memory_space<vmem>>, vector<8x16xf32>,
    %322 = vector.extract_strided_slice %295 {offsets = [8, 0], sizes = [8, 128], strides = [1, 1]} : vector<64x128xf32> to vector<8x128xf32>
    %323 = arith.truncf %317 : vector<8x32xf32> to vector<8x32xbf16>
    %cst_81 = arith.constant dense<0.000000e+00> : vector<8x128xf32>
    %324 = tpu.matmul %323, %296, %cst_81 {dimension_numbers = #tpu.dot_dimension_numbers<[1], [0], [0], [1], [0, 0, 1, 1], [], []>} : vector<8x32xbf16>, vector<32x128xbf16>, vector<8x128xf32> -> vector<8x128xf32>
    %325 = arith.addf %322, %324 : vector<8x128xf32>
    %326 = arith.negf %325 : vector<8x128xf32>
    %327 = math.exp %326 : vector<8x128xf32>
    %cst_82 = arith.constant 1.000000e+00 : f32
    %328 = vector.broadcast %cst_82 : f32 to vector<8x128xf32>
    %329 = arith.addf %328, %327 : vector<8x128xf32>
    %330 = arith.divf %328, %329 : vector<8x128xf32>
    %331 = math.tanh %325 : vector<8x128xf32>
    %332 = vector.extract_strided_slice %330 {offsets = [0, 32], sizes = [8, 32], strides = [1, 1]} : vector<8x128xf32> to vector<8x32xf32>
    %333 = arith.mulf %332, %314 : vector<8x32xf32>
    %334 = vector.extract_strided_slice %330 {offsets = [0, 0], sizes = [8, 32], strides = [1, 1]} : vector<8x128xf32> to vector<8x32xf32>
    %335 = vector.extract_strided_slice %331 {offsets = [0, 64], sizes = [8, 32], strides = [1, 1]} : vector<8x128xf32> to vector<8x32xf32>
    %336 = arith.mulf %334, %335 : vector<8x32xf32>
    %337 = arith.addf %333, %336 : vector<8x32xf32>
    %338 = vector.extract_strided_slice %330 {offsets = [0, 96], sizes = [8, 32], strides = [1, 1]} : vector<8x128xf32> to vector<8x32xf32>
    %339 = math.tanh %337 : vector<8x32xf32>
    %340 = arith.mulf %338, %339 : vector<8x32xf32>
    %341 = vector.extract_strided_slice %340 {offsets = [0, 0], sizes = [8, 16], strides = [1, 1]} : vector<8x32xf32> to vector<8x16xf32>
    %c8_83 = arith.constant 8 : index
    %c0_84 = arith.constant 0 : index
    %342 = vector.load %arg14[%c8_83, %c0_84] : memref<64x32xf32, #tpu.memory_space<vmem>>, vector<8x16xf32>
    tpu.vector_store %arg14[%c8_83, %c0_84], %341 {strides = array<i32>} : memref<64x32xf32, #tpu.memory_space<vmem>>, vector<8x16xf32>,
    %343 = vector.extract_strided_slice %340 {offsets = [0, 16], sizes = [8, 16], strides = [1, 1]} : vector<8x32xf32> to vector<8x16xf32>
    %c48_85 = arith.constant 48 : index
    %c16_86 = arith.constant 16 : index
    %344 = vector.load %arg14[%c48_85, %c16_86] : memref<64x32xf32, #tpu.memory_space<vmem>>, vector<8x16xf32>
    tpu.vector_store %arg14[%c48_85, %c16_86], %343 {strides = array<i32>} : memref<64x32xf32, #tpu.memory_space<vmem>>, vector<8x16xf32>,
    %345 = vector.extract_strided_slice %295 {offsets = [16, 0], sizes = [8, 128], strides = [1, 1]} : vector<64x128xf32> to vector<8x128xf32>
    %346 = arith.truncf %340 : vector<8x32xf32> to vector<8x32xbf16>
    %cst_87 = arith.constant dense<0.000000e+00> : vector<8x128xf32>
    %347 = tpu.matmul %346, %296, %cst_87 {dimension_numbers = #tpu.dot_dimension_numbers<[1], [0], [0], [1], [0, 0, 1, 1], [], []>} : vector<8x32xbf16>, vector<32x128xbf16>, vector<8x128xf32> -> vector<8x128xf32>
    %348 = arith.addf %345, %347 : vector<8x128xf32>
    %349 = arith.negf %348 : vector<8x128xf32>
    %350 = math.exp %349 : vector<8x128xf32>
    %cst_88 = arith.constant 1.000000e+00 : f32
    %351 = vector.broadcast %cst_88 : f32 to vector<8x128xf32>
    %352 = arith.addf %351, %350 : vector<8x128xf32>
    %353 = arith.divf %351, %352 : vector<8x128xf32>
    %354 = math.tanh %348 : vector<8x128xf32>
    %355 = vector.extract_strided_slice %353 {offsets = [0, 32], sizes = [8, 32], strides = [1, 1]} : vector<8x128xf32> to vector<8x32xf32>
    %356 = arith.mulf %355, %337 : vector<8x32xf32>
    %357 = vector.extract_strided_slice %353 {offsets = [0, 0], sizes = [8, 32], strides = [1, 1]} : vector<8x128xf32> to vector<8x32xf32>
    %358 = vector.extract_strided_slice %354 {offsets = [0, 64], sizes = [8, 32], strides = [1, 1]} : vector<8x128xf32> to vector<8x32xf32>
    %359 = arith.mulf %357, %358 : vector<8x32xf32>
    %360 = arith.addf %356, %359 : vector<8x32xf32>
    %361 = vector.extract_strided_slice %353 {offsets = [0, 96], sizes = [8, 32], strides = [1, 1]} : vector<8x128xf32> to vector<8x32xf32>
    %362 = math.tanh %360 : vector<8x32xf32>
    %363 = arith.mulf %361, %362 : vector<8x32xf32>
    %364 = vector.extract_strided_slice %363 {offsets = [0, 0], sizes = [8, 16], strides = [1, 1]} : vector<8x32xf32> to vector<8x16xf32>
    %c16_89 = arith.constant 16 : index
    %c0_90 = arith.constant 0 : index
    %365 = vector.load %arg14[%c16_89, %c0_90] : memref<64x32xf32, #tpu.memory_space<vmem>>, vector<8x16xf32>
    tpu.vector_store %arg14[%c16_89, %c0_90], %364 {strides = array<i32>} : memref<64x32xf32, #tpu.memory_space<vmem>>, vector<8x16xf32>,
    %366 = vector.extract_strided_slice %363 {offsets = [0, 16], sizes = [8, 16], strides = [1, 1]} : vector<8x32xf32> to vector<8x16xf32>
    %c40_91 = arith.constant 40 : index
    %c16_92 = arith.constant 16 : index
    %367 = vector.load %arg14[%c40_91, %c16_92] : memref<64x32xf32, #tpu.memory_space<vmem>>, vector<8x16xf32>
    tpu.vector_store %arg14[%c40_91, %c16_92], %366 {strides = array<i32>} : memref<64x32xf32, #tpu.memory_space<vmem>>, vector<8x16xf32>,
    %368 = vector.extract_strided_slice %295 {offsets = [24, 0], sizes = [8, 128], strides = [1, 1]} : vector<64x128xf32> to vector<8x128xf32>
    %369 = arith.truncf %363 : vector<8x32xf32> to vector<8x32xbf16>
    %cst_93 = arith.constant dense<0.000000e+00> : vector<8x128xf32>
    %370 = tpu.matmul %369, %296, %cst_93 {dimension_numbers = #tpu.dot_dimension_numbers<[1], [0], [0], [1], [0, 0, 1, 1], [], []>} : vector<8x32xbf16>, vector<32x128xbf16>, vector<8x128xf32> -> vector<8x128xf32>
    %371 = arith.addf %368, %370 : vector<8x128xf32>
    %372 = arith.negf %371 : vector<8x128xf32>
    %373 = math.exp %372 : vector<8x128xf32>
    %cst_94 = arith.constant 1.000000e+00 : f32
    %374 = vector.broadcast %cst_94 : f32 to vector<8x128xf32>
    %375 = arith.addf %374, %373 : vector<8x128xf32>
    %376 = arith.divf %374, %375 : vector<8x128xf32>
    %377 = math.tanh %371 : vector<8x128xf32>
    %378 = vector.extract_strided_slice %376 {offsets = [0, 32], sizes = [8, 32], strides = [1, 1]} : vector<8x128xf32> to vector<8x32xf32>
    %379 = arith.mulf %378, %360 : vector<8x32xf32>
    %380 = vector.extract_strided_slice %376 {offsets = [0, 0], sizes = [8, 32], strides = [1, 1]} : vector<8x128xf32> to vector<8x32xf32>
    %381 = vector.extract_strided_slice %377 {offsets = [0, 64], sizes = [8, 32], strides = [1, 1]} : vector<8x128xf32> to vector<8x32xf32>
    %382 = arith.mulf %380, %381 : vector<8x32xf32>
    %383 = arith.addf %379, %382 : vector<8x32xf32>
    %384 = vector.extract_strided_slice %376 {offsets = [0, 96], sizes = [8, 32], strides = [1, 1]} : vector<8x128xf32> to vector<8x32xf32>
    %385 = math.tanh %383 : vector<8x32xf32>
    %386 = arith.mulf %384, %385 : vector<8x32xf32>
    %387 = vector.extract_strided_slice %386 {offsets = [0, 0], sizes = [8, 16], strides = [1, 1]} : vector<8x32xf32> to vector<8x16xf32>
    %c24_95 = arith.constant 24 : index
    %c0_96 = arith.constant 0 : index
    %388 = vector.load %arg14[%c24_95, %c0_96] : memref<64x32xf32, #tpu.memory_space<vmem>>, vector<8x16xf32>
    tpu.vector_store %arg14[%c24_95, %c0_96], %387 {strides = array<i32>} : memref<64x32xf32, #tpu.memory_space<vmem>>, vector<8x16xf32>,
    %389 = vector.extract_strided_slice %386 {offsets = [0, 16], sizes = [8, 16], strides = [1, 1]} : vector<8x32xf32> to vector<8x16xf32>
    %c32_97 = arith.constant 32 : index
    %c16_98 = arith.constant 16 : index
    %390 = vector.load %arg14[%c32_97, %c16_98] : memref<64x32xf32, #tpu.memory_space<vmem>>, vector<8x16xf32>
    tpu.vector_store %arg14[%c32_97, %c16_98], %389 {strides = array<i32>} : memref<64x32xf32, #tpu.memory_space<vmem>>, vector<8x16xf32>,
    %391 = vector.extract_strided_slice %295 {offsets = [32, 0], sizes = [8, 128], strides = [1, 1]} : vector<64x128xf32> to vector<8x128xf32>
    %392 = arith.truncf %386 : vector<8x32xf32> to vector<8x32xbf16>
    %cst_99 = arith.constant dense<0.000000e+00> : vector<8x128xf32>
    %393 = tpu.matmul %392, %296, %cst_99 {dimension_numbers = #tpu.dot_dimension_numbers<[1], [0], [0], [1], [0, 0, 1, 1], [], []>} : vector<8x32xbf16>, vector<32x128xbf16>, vector<8x128xf32> -> vector<8x128xf32>
    %394 = arith.addf %391, %393 : vector<8x128xf32>
    %395 = arith.negf %394 : vector<8x128xf32>
    %396 = math.exp %395 : vector<8x128xf32>
    %cst_100 = arith.constant 1.000000e+00 : f32
    %397 = vector.broadcast %cst_100 : f32 to vector<8x128xf32>
    %398 = arith.addf %397, %396 : vector<8x128xf32>
    %399 = arith.divf %397, %398 : vector<8x128xf32>
    %400 = math.tanh %394 : vector<8x128xf32>
    %401 = vector.extract_strided_slice %399 {offsets = [0, 32], sizes = [8, 32], strides = [1, 1]} : vector<8x128xf32> to vector<8x32xf32>
    %402 = arith.mulf %401, %383 : vector<8x32xf32>
    %403 = vector.extract_strided_slice %399 {offsets = [0, 0], sizes = [8, 32], strides = [1, 1]} : vector<8x128xf32> to vector<8x32xf32>
    %404 = vector.extract_strided_slice %400 {offsets = [0, 64], sizes = [8, 32], strides = [1, 1]} : vector<8x128xf32> to vector<8x32xf32>
    %405 = arith.mulf %403, %404 : vector<8x32xf32>
    %406 = arith.addf %402, %405 : vector<8x32xf32>
    %407 = vector.extract_strided_slice %399 {offsets = [0, 96], sizes = [8, 32], strides = [1, 1]} : vector<8x128xf32> to vector<8x32xf32>
    %408 = math.tanh %406 : vector<8x32xf32>
    %409 = arith.mulf %407, %408 : vector<8x32xf32>
    %410 = vector.extract_strided_slice %409 {offsets = [0, 0], sizes = [8, 16], strides = [1, 1]} : vector<8x32xf32> to vector<8x16xf32>
    %c32_101 = arith.constant 32 : index
    %c0_102 = arith.constant 0 : index
    %411 = vector.load %arg14[%c32_101, %c0_102] : memref<64x32xf32, #tpu.memory_space<vmem>>, vector<8x16xf32>
    tpu.vector_store %arg14[%c32_101, %c0_102], %410 {strides = array<i32>} : memref<64x32xf32, #tpu.memory_space<vmem>>, vector<8x16xf32>,
    %412 = vector.extract_strided_slice %409 {offsets = [0, 16], sizes = [8, 16], strides = [1, 1]} : vector<8x32xf32> to vector<8x16xf32>
    %c24_103 = arith.constant 24 : index
    %c16_104 = arith.constant 16 : index
    %413 = vector.load %arg14[%c24_103, %c16_104] : memref<64x32xf32, #tpu.memory_space<vmem>>, vector<8x16xf32>
    tpu.vector_store %arg14[%c24_103, %c16_104], %412 {strides = array<i32>} : memref<64x32xf32, #tpu.memory_space<vmem>>, vector<8x16xf32>,
    %414 = vector.extract_strided_slice %295 {offsets = [40, 0], sizes = [8, 128], strides = [1, 1]} : vector<64x128xf32> to vector<8x128xf32>
    %415 = arith.truncf %409 : vector<8x32xf32> to vector<8x32xbf16>
    %cst_105 = arith.constant dense<0.000000e+00> : vector<8x128xf32>
    %416 = tpu.matmul %415, %296, %cst_105 {dimension_numbers = #tpu.dot_dimension_numbers<[1], [0], [0], [1], [0, 0, 1, 1], [], []>} : vector<8x32xbf16>, vector<32x128xbf16>, vector<8x128xf32> -> vector<8x128xf32>
    %417 = arith.addf %414, %416 : vector<8x128xf32>
    %418 = arith.negf %417 : vector<8x128xf32>
    %419 = math.exp %418 : vector<8x128xf32>
    %cst_106 = arith.constant 1.000000e+00 : f32
    %420 = vector.broadcast %cst_106 : f32 to vector<8x128xf32>
    %421 = arith.addf %420, %419 : vector<8x128xf32>
    %422 = arith.divf %420, %421 : vector<8x128xf32>
    %423 = math.tanh %417 : vector<8x128xf32>
    %424 = vector.extract_strided_slice %422 {offsets = [0, 32], sizes = [8, 32], strides = [1, 1]} : vector<8x128xf32> to vector<8x32xf32>
    %425 = arith.mulf %424, %406 : vector<8x32xf32>
    %426 = vector.extract_strided_slice %422 {offsets = [0, 0], sizes = [8, 32], strides = [1, 1]} : vector<8x128xf32> to vector<8x32xf32>
    %427 = vector.extract_strided_slice %423 {offsets = [0, 64], sizes = [8, 32], strides = [1, 1]} : vector<8x128xf32> to vector<8x32xf32>
    %428 = arith.mulf %426, %427 : vector<8x32xf32>
    %429 = arith.addf %425, %428 : vector<8x32xf32>
    %430 = vector.extract_strided_slice %422 {offsets = [0, 96], sizes = [8, 32], strides = [1, 1]} : vector<8x128xf32> to vector<8x32xf32>
    %431 = math.tanh %429 : vector<8x32xf32>
    %432 = arith.mulf %430, %431 : vector<8x32xf32>
    %433 = vector.extract_strided_slice %432 {offsets = [0, 0], sizes = [8, 16], strides = [1, 1]} : vector<8x32xf32> to vector<8x16xf32>
    %c40_107 = arith.constant 40 : index
    %c0_108 = arith.constant 0 : index
    %434 = vector.load %arg14[%c40_107, %c0_108] : memref<64x32xf32, #tpu.memory_space<vmem>>, vector<8x16xf32>
    tpu.vector_store %arg14[%c40_107, %c0_108], %433 {strides = array<i32>} : memref<64x32xf32, #tpu.memory_space<vmem>>, vector<8x16xf32>,
    %435 = vector.extract_strided_slice %432 {offsets = [0, 16], sizes = [8, 16], strides = [1, 1]} : vector<8x32xf32> to vector<8x16xf32>
    %c16_109 = arith.constant 16 : index
    %c16_110 = arith.constant 16 : index
    %436 = vector.load %arg14[%c16_109, %c16_110] : memref<64x32xf32, #tpu.memory_space<vmem>>, vector<8x16xf32>
    tpu.vector_store %arg14[%c16_109, %c16_110], %435 {strides = array<i32>} : memref<64x32xf32, #tpu.memory_space<vmem>>, vector<8x16xf32>,
    %437 = vector.extract_strided_slice %295 {offsets = [48, 0], sizes = [8, 128], strides = [1, 1]} : vector<64x128xf32> to vector<8x128xf32>
    %438 = arith.truncf %432 : vector<8x32xf32> to vector<8x32xbf16>
    %cst_111 = arith.constant dense<0.000000e+00> : vector<8x128xf32>
    %439 = tpu.matmul %438, %296, %cst_111 {dimension_numbers = #tpu.dot_dimension_numbers<[1], [0], [0], [1], [0, 0, 1, 1], [], []>} : vector<8x32xbf16>, vector<32x128xbf16>, vector<8x128xf32> -> vector<8x128xf32>
    %440 = arith.addf %437, %439 : vector<8x128xf32>
    %441 = arith.negf %440 : vector<8x128xf32>
    %442 = math.exp %441 : vector<8x128xf32>
    %cst_112 = arith.constant 1.000000e+00 : f32
    %443 = vector.broadcast %cst_112 : f32 to vector<8x128xf32>
    %444 = arith.addf %443, %442 : vector<8x128xf32>
    %445 = arith.divf %443, %444 : vector<8x128xf32>
    %446 = math.tanh %440 : vector<8x128xf32>
    %447 = vector.extract_strided_slice %445 {offsets = [0, 32], sizes = [8, 32], strides = [1, 1]} : vector<8x128xf32> to vector<8x32xf32>
    %448 = arith.mulf %447, %429 : vector<8x32xf32>
    %449 = vector.extract_strided_slice %445 {offsets = [0, 0], sizes = [8, 32], strides = [1, 1]} : vector<8x128xf32> to vector<8x32xf32>
    %450 = vector.extract_strided_slice %446 {offsets = [0, 64], sizes = [8, 32], strides = [1, 1]} : vector<8x128xf32> to vector<8x32xf32>
    %451 = arith.mulf %449, %450 : vector<8x32xf32>
    %452 = arith.addf %448, %451 : vector<8x32xf32>
    %453 = vector.extract_strided_slice %445 {offsets = [0, 96], sizes = [8, 32], strides = [1, 1]} : vector<8x128xf32> to vector<8x32xf32>
    %454 = math.tanh %452 : vector<8x32xf32>
    %455 = arith.mulf %453, %454 : vector<8x32xf32>
    %456 = vector.extract_strided_slice %455 {offsets = [0, 0], sizes = [8, 16], strides = [1, 1]} : vector<8x32xf32> to vector<8x16xf32>
    %c48_113 = arith.constant 48 : index
    %c0_114 = arith.constant 0 : index
    %457 = vector.load %arg14[%c48_113, %c0_114] : memref<64x32xf32, #tpu.memory_space<vmem>>, vector<8x16xf32>
    tpu.vector_store %arg14[%c48_113, %c0_114], %456 {strides = array<i32>} : memref<64x32xf32, #tpu.memory_space<vmem>>, vector<8x16xf32>,
    %458 = vector.extract_strided_slice %455 {offsets = [0, 16], sizes = [8, 16], strides = [1, 1]} : vector<8x32xf32> to vector<8x16xf32>
    %c8_115 = arith.constant 8 : index
    %c16_116 = arith.constant 16 : index
    %459 = vector.load %arg14[%c8_115, %c16_116] : memref<64x32xf32, #tpu.memory_space<vmem>>, vector<8x16xf32>
    tpu.vector_store %arg14[%c8_115, %c16_116], %458 {strides = array<i32>} : memref<64x32xf32, #tpu.memory_space<vmem>>, vector<8x16xf32>,
    %460 = vector.extract_strided_slice %295 {offsets = [56, 0], sizes = [8, 128], strides = [1, 1]} : vector<64x128xf32> to vector<8x128xf32>
    %461 = arith.truncf %455 : vector<8x32xf32> to vector<8x32xbf16>
    %cst_117 = arith.constant dense<0.000000e+00> : vector<8x128xf32>
    %462 = tpu.matmul %461, %296, %cst_117 {dimension_numbers = #tpu.dot_dimension_numbers<[1], [0], [0], [1], [0, 0, 1, 1], [], []>} : vector<8x32xbf16>, vector<32x128xbf16>, vector<8x128xf32> -> vector<8x128xf32>
    %463 = arith.addf %460, %462 : vector<8x128xf32>
    %464 = arith.negf %463 : vector<8x128xf32>
    %465 = math.exp %464 : vector<8x128xf32>
    %cst_118 = arith.constant 1.000000e+00 : f32
    %466 = vector.broadcast %cst_118 : f32 to vector<8x128xf32>
    %467 = arith.addf %466, %465 : vector<8x128xf32>
    %468 = arith.divf %466, %467 : vector<8x128xf32>
    %469 = math.tanh %463 : vector<8x128xf32>
    %470 = vector.extract_strided_slice %468 {offsets = [0, 32], sizes = [8, 32], strides = [1, 1]} : vector<8x128xf32> to vector<8x32xf32>
    %471 = arith.mulf %470, %452 : vector<8x32xf32>
    %472 = vector.extract_strided_slice %468 {offsets = [0, 0], sizes = [8, 32], strides = [1, 1]} : vector<8x128xf32> to vector<8x32xf32>
    %473 = vector.extract_strided_slice %469 {offsets = [0, 64], sizes = [8, 32], strides = [1, 1]} : vector<8x128xf32> to vector<8x32xf32>
    %474 = arith.mulf %472, %473 : vector<8x32xf32>
    %475 = arith.addf %471, %474 : vector<8x32xf32>
    %476 = vector.extract_strided_slice %468 {offsets = [0, 96], sizes = [8, 32], strides = [1, 1]} : vector<8x128xf32> to vector<8x32xf32>
    %477 = math.tanh %475 : vector<8x32xf32>
    %478 = arith.mulf %476, %477 : vector<8x32xf32>
    %479 = vector.extract_strided_slice %478 {offsets = [0, 0], sizes = [8, 16], strides = [1, 1]} : vector<8x32xf32> to vector<8x16xf32>
    %c56_119 = arith.constant 56 : index
    %c0_120 = arith.constant 0 : index
    %480 = vector.load %arg14[%c56_119, %c0_120] : memref<64x32xf32, #tpu.memory_space<vmem>>, vector<8x16xf32>
    tpu.vector_store %arg14[%c56_119, %c0_120], %479 {strides = array<i32>} : memref<64x32xf32, #tpu.memory_space<vmem>>, vector<8x16xf32>,
    %481 = vector.extract_strided_slice %478 {offsets = [0, 16], sizes = [8, 16], strides = [1, 1]} : vector<8x32xf32> to vector<8x16xf32>
    %c0_121 = arith.constant 0 : index
    %c16_122 = arith.constant 16 : index
    %482 = vector.load %arg14[%c0_121, %c16_122] : memref<64x32xf32, #tpu.memory_space<vmem>>, vector<8x16xf32>
    tpu.vector_store %arg14[%c0_121, %c16_122], %481 {strides = array<i32>} : memref<64x32xf32, #tpu.memory_space<vmem>>, vector<8x16xf32>,
    %c0_123 = arith.constant 0 : index
    %c0_124 = arith.constant 0 : index
    %483 = vector.load %arg14[%c0_123, %c0_124] : memref<64x32xf32, #tpu.memory_space<vmem>>, vector<64x32xf32>
    %484 = arith.truncf %483 : vector<64x32xf32> to vector<64x32xbf16>
    %c0_125 = arith.constant 0 : index
    %c0_126 = arith.constant 0 : index
    %485 = vector.load %arg10[%c0_125, %c0_126] : memref<32x128xbf16, #tpu.memory_space<vmem>>, vector<32x128xbf16>
    %cst_127 = arith.constant dense<0.000000e+00> : vector<64x128xf32>
    %486 = tpu.matmul %484, %485, %cst_127 {dimension_numbers = #tpu.dot_dimension_numbers<[1], [0], [0], [1], [0, 0, 1, 1], [], []>} : vector<64x32xbf16>, vector<32x128xbf16>, vector<64x128xf32> -> vector<64x128xf32>
    %c0_128 = arith.constant 0 : index
    %c0_129 = arith.constant 0 : index
    %487 = vector.load %arg11[%c0_128, %c0_129] : memref<1x128xf32, #tpu.memory_space<vmem>>, vector<1x128xf32>
    %488 = vector.broadcast %487 : vector<1x128xf32> to vector<64x128xf32>
    %489 = arith.addf %486, %488 : vector<64x128xf32>
    %490 = vector.shape_cast %489 : vector<64x128xf32> to vector<8x8x128xf32>
    %c0_130 = arith.constant 0 : index
    %c0_131 = arith.constant 0 : index
    %c0_132 = arith.constant 0 : index
    %c0_133 = arith.constant 0 : index
    %491 = vector.load %arg12[%c0_130, %c0_131, %c0_132, %c0_133] : memref<1x8x8x128xf32, #tpu.memory_space<vmem>>, vector<1x8x8x128xf32>
    %492 = vector.shape_cast %491 : vector<1x8x8x128xf32> to vector<8x8x128xf32>
    %493 = vector.shape_cast %490 : vector<8x8x128xf32> to vector<1x8x8x128xf32>
    tpu.vector_store %arg12[%c0_130, %c0_131, %c0_132, %c0_133], %493 {strides = array<i32>} : memref<1x8x8x128xf32, #tpu.memory_space<vmem>>, vector<1x8x8x128xf32>,
    return
  }
  func.func @transform_0(%arg0: i32) -> (i32, i32, i32, i32) {
    %c0_i32 = arith.constant 0 : i32
    %c0_i32_0 = arith.constant 0 : i32
    %c0_i32_1 = arith.constant 0 : i32
    %c0_i32_2 = arith.constant 0 : i32
    return %arg0, %c0_i32, %c0_i32_0, %c0_i32_1 : i32, i32, i32, i32
  }
  func.func @transform_1(%arg0: i32) -> (i32, i32) {
    %c0_i32 = arith.constant 0 : i32
    %c0_i32_0 = arith.constant 0 : i32
    %c0_i32_1 = arith.constant 0 : i32
    return %c0_i32, %c0_i32_0 : i32, i32
  }
  func.func @transform_2(%arg0: i32) -> (i32, i32) {
    %c0_i32 = arith.constant 0 : i32
    %c0_i32_0 = arith.constant 0 : i32
    %c0_i32_1 = arith.constant 0 : i32
    return %c0_i32, %c0_i32_0 : i32, i32
  }
  func.func @transform_3(%arg0: i32) -> (i32, i32) {
    %c0_i32 = arith.constant 0 : i32
    %c0_i32_0 = arith.constant 0 : i32
    %c0_i32_1 = arith.constant 0 : i32
    return %c0_i32, %c0_i32_0 : i32, i32
  }
  func.func @transform_4(%arg0: i32) -> (i32, i32) {
    %c0_i32 = arith.constant 0 : i32
    %c0_i32_0 = arith.constant 0 : i32
    %c0_i32_1 = arith.constant 0 : i32
    return %c0_i32, %c0_i32_0 : i32, i32
  }
  func.func @transform_5(%arg0: i32) -> (i32, i32) {
    %c0_i32 = arith.constant 0 : i32
    %c0_i32_0 = arith.constant 0 : i32
    %c0_i32_1 = arith.constant 0 : i32
    return %c0_i32, %c0_i32_0 : i32, i32
  }
  func.func @transform_6(%arg0: i32) -> (i32, i32) {
    %c0_i32 = arith.constant 0 : i32
    %c0_i32_0 = arith.constant 0 : i32
    %c0_i32_1 = arith.constant 0 : i32
    return %c0_i32, %c0_i32_0 : i32, i32
  }
  func.func @transform_7(%arg0: i32) -> (i32, i32) {
    %c0_i32 = arith.constant 0 : i32
    %c0_i32_0 = arith.constant 0 : i32
    %c0_i32_1 = arith.constant 0 : i32
    return %c0_i32, %c0_i32_0 : i32, i32
  }
  func.func @transform_8(%arg0: i32) -> (i32, i32) {
    %c0_i32 = arith.constant 0 : i32
    %c0_i32_0 = arith.constant 0 : i32
    %c0_i32_1 = arith.constant 0 : i32
    return %c0_i32, %c0_i32_0 : i32, i32
  }
  func.func @transform_9(%arg0: i32) -> (i32, i32) {
    %c0_i32 = arith.constant 0 : i32
    %c0_i32_0 = arith.constant 0 : i32
    %c0_i32_1 = arith.constant 0 : i32
    return %c0_i32, %c0_i32_0 : i32, i32
  }
  func.func @transform_10(%arg0: i32) -> (i32, i32) {
    %c0_i32 = arith.constant 0 : i32
    %c0_i32_0 = arith.constant 0 : i32
    %c0_i32_1 = arith.constant 0 : i32
    return %c0_i32, %c0_i32_0 : i32, i32
  }
  func.func @transform_11(%arg0: i32) -> (i32, i32, i32, i32) {
    %c0_i32 = arith.constant 0 : i32
    %c0_i32_0 = arith.constant 0 : i32
    %c0_i32_1 = arith.constant 0 : i32
    %c0_i32_2 = arith.constant 0 : i32
    return %arg0, %c0_i32, %c0_i32_0, %c0_i32_1 : i32, i32, i32, i32
  }
}

</mosaic_0001>

<llo_original>
// kernel: tpu_custom_call.1
$region0: #{tpu_custom_call.1}
  #allocation0 [shape = 'u32[]', space=smem, size = 0x4, offset = 0x4, fixed_abs, tag = 'smem constant byte address 0x4 - core index']
  #allocation1 [shape = 'u32[144,128]{1,0:T(1,128)}', space=vmem, size = 0x12000, scoped, tag = 'internal scratch']
  #allocation2 [shape = 'f32[64,32]{1,0:T(8,128)}', space=vmem, size = 0x8000, scoped, tag = 'scratch operand']
  #allocation3 [shape = 'f32[64,32]{1,0:T(8,128)}', space=vmem, size = 0x8000, scoped, tag = 'scratch operand']
  %s0 = inlined_call_operand.hbm [shape: f32[1,8,8,32], index: 0, kind: input, shape index: {}]
  %s1 = inlined_call_operand.vmem [shape: f32[1,32], index: 1, kind: input, shape index: {}]
  %s2 = inlined_call_operand.vmem [shape: f32[1,32], index: 2, kind: input, shape index: {}]
  %s3 = inlined_call_operand.hbm [shape: bf16[32,128], index: 3, kind: input, shape index: {}]
  %s4 = inlined_call_operand.hbm [shape: bf16[32,128], index: 4, kind: input, shape index: {}]
  %s5 = inlined_call_operand.hbm [shape: f32[1,128], index: 5, kind: input, shape index: {}]
  %s6 = inlined_call_operand.vmem [shape: bf16[32,128], index: 6, kind: input, shape index: {}]
  %s7 = inlined_call_operand.hbm [shape: bf16[32,128], index: 7, kind: input, shape index: {}]
  %s8 = inlined_call_operand.hbm [shape: f32[1,128], index: 8, kind: input, shape index: {}]
  %s9 = inlined_call_operand.vmem [shape: bf16[32,128], index: 9, kind: input, shape index: {}]
  %s10 = inlined_call_operand.vmem [shape: f32[1,128], index: 10, kind: input, shape index: {}]
  %s11 = inlined_call_operand.hbm [shape: f32[1,8,8,128], index: 11, kind: output, shape index: {}]
  %s12 = sld [smem:[#allocation0]]
  $region78: #{tpu_custom_call.1} parent=0
    _
  %s14 = ssub.s32 1, %s12
  %s15 = scalar_select 0, %s14, %s12
  $region1: #{tpu_custom_call.1} parent=0
    #allocation4 [shape = 'u8[32768]{0}', space=vmem, size = 0x8000, scoped, tag = 'input window, operand 0, single buffered']
    #allocation5 [shape = 's32[1]{0}', space=sflag, size = 0x4, scoped, tag = 'scoped memory for tpu_custom_call.1']
    #allocation6 [shape = 's32[1]{0}', space=sflag, size = 0x4, scoped, tag = 'scoped memory for tpu_custom_call.1']
    #allocation7 [shape = 'u8[8192]{0}', space=vmem, size = 0x2000, scoped, tag = 'input window, operand 3, single buffered']
    #allocation8 [shape = 's32[1]{0}', space=sflag, size = 0x4, scoped, tag = 'scoped memory for tpu_custom_call.1']
    #allocation9 [shape = 'u8[8192]{0}', space=vmem, size = 0x2000, scoped, tag = 'input window, operand 4, single buffered']
    #allocation10 [shape = 'u8[512]{0}', space=vmem, size = 0x400, scoped, tag = 'input window, operand 5, single buffered']
    #allocation11 [shape = 's32[1]{0}', space=sflag, size = 0x4, scoped, tag = 'scoped memory for tpu_custom_call.1']
    #allocation12 [shape = 'u8[8192]{0}', space=vmem, size = 0x2000, scoped, tag = 'input window, operand 7, single buffered']
    #allocation13 [shape = 'u8[512]{0}', space=vmem, size = 0x400, scoped, tag = 'input window, operand 8, single buffered']
    #allocation14 [shape = 's32[1]{0}', space=sflag, size = 0x4, scoped, tag = 'scoped memory for tpu_custom_call.1']
    #allocation15 [shape = 'u8[32768]{0}', space=vmem, size = 0x8000, scoped, tag = 'output window, operand 0, single buffered']
    %16 = vsyncpa [#allocation5], 0
    %17 = vsyncpa [#allocation8], 0
    %18 = vsyncpa [#allocation11], 0
    %19 = vsyncpa [#allocation14], 0
    %20 = vsyncpa [#allocation6], 0
    // Predicated region
    $region2: #{tpu_custom_call.1} parent=1 // pred_check
      _
    $region3: #{tpu_custom_call.1} parent=1 // pred_check_branch
      %22 = sbr.rel (0) target = $region5
    $region4: #{tpu_custom_call.1} parent=1 // pred_region
      %s24 = ssub.s32 1024, 1024
      %25 = vsyncadd [#allocation5], %s24
      %s26 = sshll.u32 [#allocation4], 4
      %s27 = int_to_ptr.vmem [resolvable:$true] %s26
      %32 = dma.hbm_to_vmem [thread:$0]  %s0, 1024, %s27, [#allocation5], 128, 128, 8
    $region5: #{tpu_custom_call.1} parent=1 // pred_fallthru
      _
    // Predicated region
    $region6: #{tpu_custom_call.1} parent=1 // pred_check
      _
    $region7: #{tpu_custom_call.1} parent=1 // pred_check_branch
      %34 = sbr.rel (0) target = $region9
    $region8: #{tpu_custom_call.1} parent=1 // pred_region
      _
    $region9: #{tpu_custom_call.1} parent=1 // pred_fallthru
      _
    // Predicated region
    $region10: #{tpu_custom_call.1} parent=1 // pred_check
      _
    $region11: #{tpu_custom_call.1} parent=1 // pred_check_branch
      %36 = sbr.rel (0) target = $region13
    $region12: #{tpu_custom_call.1} parent=1 // pred_region
      _
    $region13: #{tpu_custom_call.1} parent=1 // pred_fallthru
      _
    // Predicated region
    $region14: #{tpu_custom_call.1} parent=1 // pred_check
      _
    $region15: #{tpu_custom_call.1} parent=1 // pred_check_branch
      %38 = sbr.rel (0) target = $region17
    $region16: #{tpu_custom_call.1} parent=1 // pred_region
      %s40 = ssub.s32 256, 256
      %41 = vsyncadd [#allocation8], %s40
      %s42 = sshll.u32 [#allocation7], 4
      %s43 = int_to_ptr.vmem [resolvable:$true] %s42
      %48 = dma.hbm_to_vmem [thread:$0]  %s3, 256, %s43, [#allocation8], 64, 64, 4
    $region17: #{tpu_custom_call.1} parent=1 // pred_fallthru
      _
    // Predicated region
    $region18: #{tpu_custom_call.1} parent=1 // pred_check
      _
    $region19: #{tpu_custom_call.1} parent=1 // pred_check_branch
      %50 = sbr.rel (0) target = $region21
    $region20: #{tpu_custom_call.1} parent=1 // pred_region
      %s52 = ssub.s32 256, 256
      %53 = vsyncadd [#allocation8], %s52
      %s54 = sshll.u32 [#allocation9], 4
      %s55 = int_to_ptr.vmem [resolvable:$true] %s54
      %60 = dma.hbm_to_vmem [thread:$0]  %s4, 256, %s55, [#allocation8], 64, 64, 4
    $region21: #{tpu_custom_call.1} parent=1 // pred_fallthru
      _
    // Predicated region
    $region22: #{tpu_custom_call.1} parent=1 // pred_check
      _
    $region23: #{tpu_custom_call.1} parent=1 // pred_check_branch
      %62 = sbr.rel (0) target = $region25
    $region24: #{tpu_custom_call.1} parent=1 // pred_region
      %s64 = ssub.s32 16, 16
      %65 = vsyncadd [#allocation11], %s64
      %s67 = sshll.u32 [#allocation10], 4
      %s68 = int_to_ptr.vmem [resolvable:$true] %s67
      %70 = dma.hbm_to_vmem [thread:$0]  %s5, 16, %s68, [#allocation11]
    $region25: #{tpu_custom_call.1} parent=1 // pred_fallthru
      _
    // Predicated region
    $region26: #{tpu_custom_call.1} parent=1 // pred_check
      _
    $region27: #{tpu_custom_call.1} parent=1 // pred_check_branch
      %72 = sbr.rel (0) target = $region29
    $region28: #{tpu_custom_call.1} parent=1 // pred_region
      _
    $region29: #{tpu_custom_call.1} parent=1 // pred_fallthru
      _
    // Predicated region
    $region30: #{tpu_custom_call.1} parent=1 // pred_check
      _
    $region31: #{tpu_custom_call.1} parent=1 // pred_check_branch
      %74 = sbr.rel (0) target = $region33
    $region32: #{tpu_custom_call.1} parent=1 // pred_region
      %s76 = ssub.s32 256, 256
      %77 = vsyncadd [#allocation11], %s76
      %s78 = sshll.u32 [#allocation12], 4
      %s79 = int_to_ptr.vmem [resolvable:$true] %s78
      %84 = dma.hbm_to_vmem [thread:$0]  %s7, 256, %s79, [#allocation11], 64, 64, 4
    $region33: #{tpu_custom_call.1} parent=1 // pred_fallthru
      _
    // Predicated region
    $region34: #{tpu_custom_call.1} parent=1 // pred_check
      _
    $region35: #{tpu_custom_call.1} parent=1 // pred_check_branch
      %86 = sbr.rel (0) target = $region37
    $region36: #{tpu_custom_call.1} parent=1 // pred_region
      %s88 = ssub.s32 16, 16
      %89 = vsyncadd [#allocation14], %s88
      %s91 = sshll.u32 [#allocation13], 4
      %s92 = int_to_ptr.vmem [resolvable:$true] %s91
      %94 = dma.hbm_to_vmem [thread:$0]  %s8, 16, %s92, [#allocation14]
    $region37: #{tpu_custom_call.1} parent=1 // pred_fallthru
      _
    // Predicated region
    $region38: #{tpu_custom_call.1} parent=1 // pred_check
      _
    $region39: #{tpu_custom_call.1} parent=1 // pred_check_branch
      %96 = sbr.rel (0) target = $region41
    $region40: #{tpu_custom_call.1} parent=1 // pred_region
      _
    $region41: #{tpu_custom_call.1} parent=1 // pred_fallthru
      _
    // Predicated region
    $region42: #{tpu_custom_call.1} parent=1 // pred_check
      _
    $region43: #{tpu_custom_call.1} parent=1 // pred_check_branch
      %98 = sbr.rel (0) target = $region45
    $region44: #{tpu_custom_call.1} parent=1 // pred_region
      _
    $region45: #{tpu_custom_call.1} parent=1 // pred_fallthru
      _
    // Predicated region
    $region46: #{tpu_custom_call.1} parent=1 // pred_check
      _
    $region47: #{tpu_custom_call.1} parent=1 // pred_check_branch
      %100 = sbr.rel (0) target = $region49
    $region48: #{tpu_custom_call.1} parent=1 // pred_region
      %101 = dma.done [#allocation5], 1024
    $region49: #{tpu_custom_call.1} parent=1 // pred_fallthru
      _
    // Predicated region
    $region50: #{tpu_custom_call.1} parent=1 // pred_check
      _
    $region51: #{tpu_custom_call.1} parent=1 // pred_check_branch
      %103 = sbr.rel (0) target = $region53
    $region52: #{tpu_custom_call.1} parent=1 // pred_region
      %104 = dma.done [#allocation8], 256
    $region53: #{tpu_custom_call.1} parent=1 // pred_fallthru
      _
    // Predicated region
    $region54: #{tpu_custom_call.1} parent=1 // pred_check
      _
    $region55: #{tpu_custom_call.1} parent=1 // pred_check_branch
      %106 = sbr.rel (0) target = $region57
    $region56: #{tpu_custom_call.1} parent=1 // pred_region
      %107 = dma.done [#allocation8], 256
    $region57: #{tpu_custom_call.1} parent=1 // pred_fallthru
      _
    // Predicated region
    $region58: #{tpu_custom_call.1} parent=1 // pred_check
      _
    $region59: #{tpu_custom_call.1} parent=1 // pred_check_branch
      %109 = sbr.rel (0) target = $region61
    $region60: #{tpu_custom_call.1} parent=1 // pred_region
      %110 = dma.done [#allocation11], 16
    $region61: #{tpu_custom_call.1} parent=1 // pred_fallthru
      _
    // Predicated region
    $region62: #{tpu_custom_call.1} parent=1 // pred_check
      _
    $region63: #{tpu_custom_call.1} parent=1 // pred_check_branch
      %112 = sbr.rel (0) target = $region65
    $region64: #{tpu_custom_call.1} parent=1 // pred_region
      %113 = dma.done [#allocation11], 256
    $region65: #{tpu_custom_call.1} parent=1 // pred_fallthru
      _
    // Predicated region
    $region66: #{tpu_custom_call.1} parent=1 // pred_check
      _
    $region67: #{tpu_custom_call.1} parent=1 // pred_check_branch
      %115 = sbr.rel (0) target = $region69
    $region68: #{tpu_custom_call.1} parent=1 // pred_region
      %116 = dma.done [#allocation14], 16
    $region69: #{tpu_custom_call.1} parent=1 // pred_fallthru
      _
    %v118 = vld [vmem:[#allocation4] sm:$0xff]
    %v119 = vld [vmem:[#allocation4 + $0x8] sm:$0xff]
    %v120 = vld [vmem:[#allocation4 + $0x10] sm:$0xff]
    %v121 = vld [vmem:[#allocation4 + $0x18] sm:$0xff]
    %v122 = vld [vmem:[#allocation4 + $0x20] sm:$0xff]
    %v123 = vld [vmem:[#allocation4 + $0x28] sm:$0xff]
    %v124 = vld [vmem:[#allocation4 + $0x30] sm:$0xff]
    %v125 = vld [vmem:[#allocation4 + $0x38] sm:$0xff]
    %vm126 = vcmask 261120
    %v127 = vsel %vm126, %v118, 0.0
    %128 = vadd.xlane.f32.xlu0 %v127
    %v129 = vpop.xlane.xlu0 %128
    %v130 = vsel %vm126, %v119, 0.0
    %131 = vadd.xlane.f32.xlu0 %v130
    %v132 = vpop.xlane.xlu0 %131
    %v133 = vsel %vm126, %v120, 0.0
    %134 = vadd.xlane.f32.xlu0 %v133
    %v135 = vpop.xlane.xlu0 %134
    %v136 = vsel %vm126, %v121, 0.0
    %137 = vadd.xlane.f32.xlu0 %v136
    %v138 = vpop.xlane.xlu0 %137
    %v139 = vsel %vm126, %v122, 0.0
    %140 = vadd.xlane.f32.xlu0 %v139
    %v141 = vpop.xlane.xlu0 %140
    %v142 = vsel %vm126, %v123, 0.0
    %143 = vadd.xlane.f32.xlu0 %v142
    %v144 = vpop.xlane.xlu0 %143
    %v145 = vsel %vm126, %v124, 0.0
    %146 = vadd.xlane.f32.xlu0 %v145
    %v147 = vpop.xlane.xlu0 %146
    %v148 = vsel %vm126, %v125, 0.0
    %149 = vadd.xlane.f32.xlu0 %v148
    %v150 = vpop.xlane.xlu0 %149
    %v151 = vrcp.pop 32.0
    %v152 = vmul.f32 %v129, %v151
    %v153 = vmul.f32 %v132, %v151
    %v154 = vmul.f32 %v135, %v151
    %v155 = vmul.f32 %v138, %v151
    %v156 = vmul.f32 %v141, %v151
    %v157 = vmul.f32 %v144, %v151
    %v158 = vmul.f32 %v147, %v151
    %v159 = vmul.f32 %v150, %v151
    %v160 = vsub.f32 %v118, %v152
    %v161 = vsub.f32 %v119, %v153
    %v162 = vsub.f32 %v120, %v154
    %v163 = vsub.f32 %v121, %v155
    %v164 = vsub.f32 %v122, %v156
    %v165 = vsub.f32 %v123, %v157
    %v166 = vsub.f32 %v124, %v158
    %v167 = vsub.f32 %v125, %v159
    %v168 = vmul.f32 %v160, %v160
    %v169 = vmul.f32 %v161, %v161
    %v170 = vmul.f32 %v162, %v162
    %v171 = vmul.f32 %v163, %v163
    %v172 = vmul.f32 %v164, %v164
    %v173 = vmul.f32 %v165, %v165
    %v174 = vmul.f32 %v166, %v166
    %v175 = vmul.f32 %v167, %v167
    %v176 = vsel %vm126, %v168, 0.0
    %177 = vadd.xlane.f32.xlu0 %v176
    %v178 = vpop.xlane.xlu0 %177
    %v179 = vsel %vm126, %v169, 0.0
    %180 = vadd.xlane.f32.xlu0 %v179
    %v181 = vpop.xlane.xlu0 %180
    %v182 = vsel %vm126, %v170, 0.0
    %183 = vadd.xlane.f32.xlu0 %v182
    %v184 = vpop.xlane.xlu0 %183
    %v185 = vsel %vm126, %v171, 0.0
    %186 = vadd.xlane.f32.xlu0 %v185
    %v187 = vpop.xlane.xlu0 %186
    %v188 = vsel %vm126, %v172, 0.0
    %189 = vadd.xlane.f32.xlu0 %v188
    %v190 = vpop.xlane.xlu0 %189
    %v191 = vsel %vm126, %v173, 0.0
    %192 = vadd.xlane.f32.xlu0 %v191
    %v193 = vpop.xlane.xlu0 %192
    %v194 = vsel %vm126, %v174, 0.0
    %195 = vadd.xlane.f32.xlu0 %v194
    %v196 = vpop.xlane.xlu0 %195
    %v197 = vsel %vm126, %v175, 0.0
    %198 = vadd.xlane.f32.xlu0 %v197
    %v199 = vpop.xlane.xlu0 %198
    %v200 = vmul.f32 %v178, %v151
    %v201 = vmul.f32 %v181, %v151
    %v202 = vmul.f32 %v184, %v151
    %v203 = vmul.f32 %v187, %v151
    %v204 = vmul.f32 %v190, %v151
    %v205 = vmul.f32 %v193, %v151
    %v206 = vmul.f32 %v196, %v151
    %v207 = vmul.f32 %v199, %v151
    %v208 = vadd.f32 %v200, 1e-12
    %v209 = vadd.f32 %v201, 1e-12
    %v210 = vadd.f32 %v202, 1e-12
    %v211 = vadd.f32 %v203, 1e-12
    %v212 = vadd.f32 %v204, 1e-12
    %v213 = vadd.f32 %v205, 1e-12
    %v214 = vadd.f32 %v206, 1e-12
    %v215 = vadd.f32 %v207, 1e-12
    %v216 = vrsqrt.pop %v208
    %v217 = vrsqrt.pop %v209
    %v218 = vrsqrt.pop %v210
    %v219 = vrsqrt.pop %v211
    %v220 = vrsqrt.pop %v212
    %v221 = vrsqrt.pop %v213
    %v222 = vrsqrt.pop %v214
    %v223 = vrsqrt.pop %v215
    %v224 = vmul.f32 %v160, %v216
    %v225 = vmul.f32 %v161, %v217
    %v226 = vmul.f32 %v162, %v218
    %v227 = vmul.f32 %v163, %v219
    %v228 = vmul.f32 %v164, %v220
    %v229 = vmul.f32 %v165, %v221
    %v230 = vmul.f32 %v166, %v222
    %v231 = vmul.f32 %v167, %v223
    %v232 = vld [vmem:[%s1] sm:$0x1]
    %v234 = vlaneseq
    %v235 = vshrl.u32 %v234, 7
    %v236 = vsub.s32 0, %v235
    %v237 = vrot.slane %v232, %v236
    %v239 = vmul.f32 %v224, %v237
    %v240 = vmul.f32 %v225, %v237
    %v241 = vmul.f32 %v226, %v237
    %v242 = vmul.f32 %v227, %v237
    %v243 = vmul.f32 %v228, %v237
    %v244 = vmul.f32 %v229, %v237
    %v245 = vmul.f32 %v230, %v237
    %v246 = vmul.f32 %v231, %v237
    %v247 = vld [vmem:[%s2] sm:$0x1]
    %v249 = vlaneseq
    %v250 = vshrl.u32 %v249, 7
    %v251 = vsub.s32 0, %v250
    %v252 = vrot.slane %v247, %v251
    %v254 = vadd.f32 %v239, %v252
    %v255 = vadd.f32 %v240, %v252
    %v256 = vadd.f32 %v241, %v252
    %v257 = vadd.f32 %v242, %v252
    %v258 = vadd.f32 %v243, %v252
    %v259 = vadd.f32 %v244, %v252
    %v260 = vadd.f32 %v245, %v252
    %v261 = vadd.f32 %v246, %v252
    %v262 = vlaneseq
    %v263 = vand.u32 %v262, 127
    %vm264 = vcmp.lt.s32.totalorder %v263, 0
    %v265 = vsub.s32 0, %v263
    %v266 = vsel %vm264, %v265, %v263
    %v267 = vshrl.u32 %v266, 5
    %v268 = vand.u32 %v266, 31
    %v269 = vsub.s32 0, %v268
    %v270 = vsel %vm264, %v269, %v268
    %vm271 = vcmp.ne.s32.totalorder %v270, 0
    %vm272 = vcmp.lt.s32.totalorder %v270, 0
    %vm273 = vmand %vm272, %vm271
    %v274 = vadd.s32 %v270, 32
    %v275 = vsel %vm273, %v274, %v270
    %vm276 = vcmp.lt.s32.totalorder %v275, 16
    %v277 = vpack.c.bf16 %v255, %v254
    %v278 = vpack.c.bf16 %v257, %v256
    %v279 = vpack.c.bf16 %v259, %v258
    %v280 = vpack.c.bf16 %v261, %v260
    %v281 = vld [vmem:[#allocation7] sm:$0xf]
    %v282 = vld [vmem:[#allocation7 + $0x4] sm:$0xf]
    %v283 = vld [vmem:[#allocation7 + $0x8] sm:$0xf]
    %v284 = vld [vmem:[#allocation7 + $0xc] sm:$0xf]
    %v285 = vld [vmem:[#allocation10] sm:$0x1]
    %v287 = vlaneseq
    %v288 = vshrl.u32 %v287, 7
    %v289 = vsub.s32 0, %v288
    %v290 = vrot.slane %v285, %v289
    %v296 = vunpack.c.l.b16 %v281
    %v297 = vunpack.c.l.b16 %v282
    %v298 = vunpack.c.l.b16 %v283
    %v299 = vunpack.c.l.b16 %v284
    %v300 = vpack.c.b16 %v297, %v296
    %v301 = vpack.c.b16 %v299, %v298
    %v305 = vsel %vm126, %v277, 0
    %v308 = vsel %vm126, %v278, 0
    %v311 = vsel %vm126, %v279, 0
    %v314 = vsel %vm126, %v280, 0
    %316 = vmatprep.subr.bf16.mxu0 0
    %317 = vmatpush1.bf16.msra.mxu0 %v300
    %318 = vmatprep.subr.bf16.mxu0 0
    %319 = vmatpush1.bf16.msra.mxu0 %v301
    %320 = vmatprep.subr.bf16.mxu0 0
    %321 = vmatpush1.bf16.msra.mxu0 0
    %322 = vmatprep.subr.bf16.mxu0 0
    %323 = vmatpush1.bf16.msra.mxu0 0
    %324 = vmatprep.subr.bf16.mxu0 0
    %325 = vmatpush1.bf16.msra.mxu0 0
    %326 = vmatprep.subr.bf16.mxu0 0
    %327 = vmatpush1.bf16.msra.mxu0 0
    %328 = vmatprep.subr.bf16.mxu0 0
    %329 = vmatpush1.bf16.msra.mxu0 0
    %330 = vmatprep.subr.bf16.mxu0 0
    %331 = vmatpush1.bf16.msra.mxu0 0
    %332 = vmatprep.subr.bf16.mxu0 0
    %333 = vmatpush1.bf16.msra.mxu0 0
    %334 = vmatprep.subr.bf16.mxu0 0
    %335 = vmatpush1.bf16.msra.mxu0 0
    %336 = vmatprep.subr.bf16.mxu0 0
    %337 = vmatpush1.bf16.msra.mxu0 0
    %338 = vmatprep.subr.bf16.mxu0 0
    %339 = vmatpush1.bf16.msra.mxu0 0
    %340 = vmatprep.subr.bf16.mxu0 0
    %341 = vmatpush1.bf16.msra.mxu0 0
    %342 = vmatprep.subr.bf16.mxu0 0
    %343 = vmatpush1.bf16.msra.mxu0 0
    %344 = vmatprep.subr.bf16.mxu0 0
    %345 = vmatpush1.bf16.msra.mxu0 0
    %346 = vmatprep.subr.bf16.mxu0 0
    %347 = vmatpush1.bf16.msra.mxu0 0
    %348 = vmatprep.mubr.bf16.mxu0 0
    %349 = vmatmul.mubr.bf16.gmra.mrb[0].mxu0 %v305
    %v350 = vpop.f32.mrb[0].mxu0
    %v351 = vadd.f32 %v290, %v350
    %v352 = vpop.f32.mrb[0].mxu0
    %v353 = vpop.f32.mrb[0].mxu0
    %v354 = vadd.f32 %v290, %v353
    %v355 = vpop.f32.mrb[0].mxu0
    %356 = vmatprep.mubr.bf16.mxu0 0
    %357 = vmatmul.mubr.bf16.gmra.mrb[0].mxu0 %v308
    %v358 = vpop.f32.mrb[0].mxu0
    %v359 = vadd.f32 %v290, %v358
    %v360 = vpop.f32.mrb[0].mxu0
    %v361 = vpop.f32.mrb[0].mxu0
    %v362 = vadd.f32 %v290, %v361
    %v363 = vpop.f32.mrb[0].mxu0
    %364 = vmatprep.mubr.bf16.mxu0 0
    %365 = vmatmul.mubr.bf16.gmra.mrb[0].mxu0 %v311
    %v366 = vpop.f32.mrb[0].mxu0
    %v367 = vadd.f32 %v290, %v366
    %v368 = vpop.f32.mrb[0].mxu0
    %v369 = vpop.f32.mrb[0].mxu0
    %v370 = vadd.f32 %v290, %v369
    %v371 = vpop.f32.mrb[0].mxu0
    %372 = vmatprep.mubr.bf16.mxu0 0
    %373 = vmatmul.mubr.bf16.gmra.mrb[0].mxu0 %v314
    %v374 = vpop.f32.mrb[0].mxu0
    %v375 = vadd.f32 %v290, %v374
    %v376 = vpop.f32.mrb[0].mxu0
    %v377 = vpop.f32.mrb[0].mxu0
    %v378 = vadd.f32 %v290, %v377
    %v379 = vpop.f32.mrb[0].mxu0
    %380 = vdwg.mxu0
    %v381 = vsel %vm276, %v351, %v378
    %v382 = vsel %vm276, %v354, %v375
    %v383 = vsel %vm276, %v359, %v370
    %v384 = vsel %vm276, %v362, %v367
    %v385 = vsel %vm276, %v367, %v362
    %v386 = vsel %vm276, %v370, %v359
    %v387 = vsel %vm276, %v375, %v354
    %v388 = vsel %vm276, %v378, %v351
    %v389 = vld [vmem:[#allocation9] sm:$0xf]
    %v390 = vld [vmem:[#allocation9 + $0x4] sm:$0xf]
    %v391 = vld [vmem:[#allocation9 + $0x8] sm:$0xf]
    %v392 = vld [vmem:[#allocation9 + $0xc] sm:$0xf]
    %v397 = vunpack.c.l.b16 %v389
    %v398 = vunpack.c.l.b16 %v390
    %v399 = vunpack.c.l.b16 %v391
    %v400 = vunpack.c.l.b16 %v392
    %v401 = vpack.c.b16 %v398, %v397
    %v402 = vpack.c.b16 %v400, %v399
    %v406 = vsel %vm126, 0, 0
    %408 = vmatprep.subr.bf16.mxu0 0
    %409 = vmatpush1.bf16.msra.mxu0 %v401
    %410 = vmatprep.subr.bf16.mxu0 0
    %411 = vmatpush1.bf16.msra.mxu0 %v402
    %412 = vmatprep.subr.bf16.mxu0 0
    %413 = vmatpush1.bf16.msra.mxu0 0
    %414 = vmatprep.subr.bf16.mxu0 0
    %415 = vmatpush1.bf16.msra.mxu0 0
    %416 = vmatprep.subr.bf16.mxu0 0
    %417 = vmatpush1.bf16.msra.mxu0 0
    %418 = vmatprep.subr.bf16.mxu0 0
    %419 = vmatpush1.bf16.msra.mxu0 0
    %420 = vmatprep.subr.bf16.mxu0 0
    %421 = vmatpush1.bf16.msra.mxu0 0
    %422 = vmatprep.subr.bf16.mxu0 0
    %423 = vmatpush1.bf16.msra.mxu0 0
    %424 = vmatprep.subr.bf16.mxu0 0
    %425 = vmatpush1.bf16.msra.mxu0 0
    %426 = vmatprep.subr.bf16.mxu0 0
    %427 = vmatpush1.bf16.msra.mxu0 0
    %428 = vmatprep.subr.bf16.mxu0 0
    %429 = vmatpush1.bf16.msra.mxu0 0
    %430 = vmatprep.subr.bf16.mxu0 0
    %431 = vmatpush1.bf16.msra.mxu0 0
    %432 = vmatprep.subr.bf16.mxu0 0
    %433 = vmatpush1.bf16.msra.mxu0 0
    %434 = vmatprep.subr.bf16.mxu0 0
    %435 = vmatpush1.bf16.msra.mxu0 0
    %436 = vmatprep.subr.bf16.mxu0 0
    %437 = vmatpush1.bf16.msra.mxu0 0
    %438 = vmatprep.subr.bf16.mxu0 0
    %439 = vmatpush1.bf16.msra.mxu0 0
    %440 = vmatprep.mubr.bf16.mxu0 0
    %441 = vmatmul.mubr.bf16.gmra.mrb[0].mxu0 %v406
    %v442 = vpop.f32.mrb[0].mxu0
    %v443 = vadd.f32 0.0, %v442
    %v444 = vpop.f32.mrb[0].mxu0
    %v445 = vpop.f32.mrb[0].mxu0
    %v446 = vpop.f32.mrb[0].mxu0
    %447 = vdwg.mxu0
    %v448 = vadd.f32 %v381, %v443
    %v449 = vxor.u32 %v448, 2147483648
    %v450 = vmul.f32 %v449, 1.442695
    %v451 = vpow.pop %v450
    %v452 = vadd.f32 %v451, 1.0
    %v453 = vrcp.pop %v452
    %v454 = vmul.f32 1.0, %v453
    %v455 = vtanh.pop %v448
    %v456 = vmul.f32 %v454, 0.0
    %458 = vrot.lane.b32.xlu0 %v455, 64
    %v459 = vpop.permute.xlu0 %458
    %v461 = vmul.f32 %v454, %v459
    %463 = vrot.lane.b32.xlu0 %v461, 32
    %v464 = vpop.permute.xlu0 %463
    %v466 = vadd.f32 %v456, %v464
    %v467 = vtanh.pop %v466
    %469 = vrot.lane.b32.xlu0 %v467, 64
    %v470 = vpop.permute.xlu0 %469
    %v472 = vmul.f32 %v454, %v470
    %474 = vrot.lane.b32.xlu0 %v472, 32
    %v475 = vpop.permute.xlu0 %474
    %vm477 = vcmask 130048
    %478 = vst.msk [vmem:[#allocation2] sm:$0xff] %vm477, %v475
    %vm479 = vcmask 261248
    %480 = vst.msk [vmem:[#allocation2 + $0x38] sm:$0xff] %vm479, %v475
    %v481 = vpack.c.bf16 %v472, %v472
    %483 = vrot.lane.b32.xlu0 %v481, 32
    %v484 = vpop.permute.xlu0 %483
    %v486 = vsel %vm126, %v484, 0
    %488 = vmatprep.subr.bf16.mxu0 0
    %489 = vmatpush1.bf16.msra.mxu0 %v401
    %490 = vmatprep.subr.bf16.mxu0 0
    %491 = vmatpush1.bf16.msra.mxu0 %v402
    %492 = vmatprep.subr.bf16.mxu0 0
    %493 = vmatpush1.bf16.msra.mxu0 0
    %494 = vmatprep.subr.bf16.mxu0 0
    %495 = vmatpush1.bf16.msra.mxu0 0
    %496 = vmatprep.subr.bf16.mxu0 0
    %497 = vmatpush1.bf16.msra.mxu0 0
    %498 = vmatprep.subr.bf16.mxu0 0
    %499 = vmatpush1.bf16.msra.mxu0 0
    %500 = vmatprep.subr.bf16.mxu0 0
    %501 = vmatpush1.bf16.msra.mxu0 0
    %502 = vmatprep.subr.bf16.mxu0 0
    %503 = vmatpush1.bf16.msra.mxu0 0
    %504 = vmatprep.subr.bf16.mxu0 0
    %505 = vmatpush1.bf16.msra.mxu0 0
    %506 = vmatprep.subr.bf16.mxu0 0
    %507 = vmatpush1.bf16.msra.mxu0 0
    %508 = vmatprep.subr.bf16.mxu0 0
    %509 = vmatpush1.bf16.msra.mxu0 0
    %510 = vmatprep.subr.bf16.mxu0 0
    %511 = vmatpush1.bf16.msra.mxu0 0
    %512 = vmatprep.subr.bf16.mxu0 0
    %513 = vmatpush1.bf16.msra.mxu0 0
    %514 = vmatprep.subr.bf16.mxu0 0
    %515 = vmatpush1.bf16.msra.mxu0 0
    %516 = vmatprep.subr.bf16.mxu0 0
    %517 = vmatpush1.bf16.msra.mxu0 0
    %518 = vmatprep.subr.bf16.mxu0 0
    %519 = vmatpush1.bf16.msra.mxu0 0
    %520 = vmatprep.mubr.bf16.mxu0 0
    %521 = vmatmul.mubr.bf16.gmra.mrb[0].mxu0 %v486
    %v522 = vpop.f32.mrb[0].mxu0
    %v523 = vadd.f32 0.0, %v522
    %v524 = vpop.f32.mrb[0].mxu0
    %v525 = vpop.f32.mrb[0].mxu0
    %v526 = vpop.f32.mrb[0].mxu0
    %527 = vdwg.mxu0
    %v528 = vadd.f32 %v382, %v523
    %v529 = vxor.u32 %v528, 2147483648
    %v530 = vmul.f32 %v529, 1.442695
    %v531 = vpow.pop %v530
    %v532 = vadd.f32 %v531, 1.0
    %v533 = vrcp.pop %v532
    %v534 = vmul.f32 1.0, %v533
    %v535 = vtanh.pop %v528
    %v536 = vmul.f32 %v534, %v466
    %538 = vrot.lane.b32.xlu0 %v535, 64
    %v539 = vpop.permute.xlu0 %538
    %v541 = vmul.f32 %v534, %v539
    %543 = vrot.lane.b32.xlu0 %v541, 32
    %v544 = vpop.permute.xlu0 %543
    %v546 = vadd.f32 %v536, %v544
    %v547 = vtanh.pop %v546
    %549 = vrot.lane.b32.xlu0 %v547, 64
    %v550 = vpop.permute.xlu0 %549
    %v552 = vmul.f32 %v534, %v550
    %554 = vrot.lane.b32.xlu0 %v552, 32
    %v555 = vpop.permute.xlu0 %554
    %557 = vst.msk [vmem:[#allocation2 + $0x8] sm:$0xff] %vm477, %v555
    %558 = vst.msk [vmem:[#allocation2 + $0x30] sm:$0xff] %vm479, %v555
    %v559 = vpack.c.bf16 %v552, %v552
    %561 = vrot.lane.b32.xlu0 %v559, 32
    %v562 = vpop.permute.xlu0 %561
    %v564 = vsel %vm126, %v562, 0
    %566 = vmatprep.subr.bf16.mxu0 0
    %567 = vmatpush1.bf16.msra.mxu0 %v401
    %568 = vmatprep.subr.bf16.mxu0 0
    %569 = vmatpush1.bf16.msra.mxu0 %v402
    %570 = vmatprep.subr.bf16.mxu0 0
    %571 = vmatpush1.bf16.msra.mxu0 0
    %572 = vmatprep.subr.bf16.mxu0 0
    %573 = vmatpush1.bf16.msra.mxu0 0
    %574 = vmatprep.subr.bf16.mxu0 0
    %575 = vmatpush1.bf16.msra.mxu0 0
    %576 = vmatprep.subr.bf16.mxu0 0
    %577 = vmatpush1.bf16.msra.mxu0 0
    %578 = vmatprep.subr.bf16.mxu0 0
    %579 = vmatpush1.bf16.msra.mxu0 0
    %580 = vmatprep.subr.bf16.mxu0 0
    %581 = vmatpush1.bf16.msra.mxu0 0
    %582 = vmatprep.subr.bf16.mxu0 0
    %583 = vmatpush1.bf16.msra.mxu0 0
    %584 = vmatprep.subr.bf16.mxu0 0
    %585 = vmatpush1.bf16.msra.mxu0 0
    %586 = vmatprep.subr.bf16.mxu0 0
    %587 = vmatpush1.bf16.msra.mxu0 0
    %588 = vmatprep.subr.bf16.mxu0 0
    %589 = vmatpush1.bf16.msra.mxu0 0
    %590 = vmatprep.subr.bf16.mxu0 0
    %591 = vmatpush1.bf16.msra.mxu0 0
    %592 = vmatprep.subr.bf16.mxu0 0
    %593 = vmatpush1.bf16.msra.mxu0 0
    %594 = vmatprep.subr.bf16.mxu0 0
    %595 = vmatpush1.bf16.msra.mxu0 0
    %596 = vmatprep.subr.bf16.mxu0 0
    %597 = vmatpush1.bf16.msra.mxu0 0
    %598 = vmatprep.mubr.bf16.mxu0 0
    %599 = vmatmul.mubr.bf16.gmra.mrb[0].mxu0 %v564
    %v600 = vpop.f32.mrb[0].mxu0
    %v601 = vadd.f32 0.0, %v600
    %v602 = vpop.f32.mrb[0].mxu0
    %v603 = vpop.f32.mrb[0].mxu0
    %v604 = vpop.f32.mrb[0].mxu0
    %605 = vdwg.mxu0
    %v606 = vadd.f32 %v383, %v601
    %v607 = vxor.u32 %v606, 2147483648
    %v608 = vmul.f32 %v607, 1.442695
    %v609 = vpow.pop %v608
    %v610 = vadd.f32 %v609, 1.0
    %v611 = vrcp.pop %v610
    %v612 = vmul.f32 1.0, %v611
    %v613 = vtanh.pop %v606
    %v614 = vmul.f32 %v612, %v546
    %616 = vrot.lane.b32.xlu0 %v613, 64
    %v617 = vpop.permute.xlu0 %616
    %v619 = vmul.f32 %v612, %v617
    %621 = vrot.lane.b32.xlu0 %v619, 32
    %v622 = vpop.permute.xlu0 %621
    %v624 = vadd.f32 %v614, %v622
    %v625 = vtanh.pop %v624
    %627 = vrot.lane.b32.xlu0 %v625, 64
    %v628 = vpop.permute.xlu0 %627
    %v630 = vmul.f32 %v612, %v628
    %632 = vrot.lane.b32.xlu0 %v630, 32
    %v633 = vpop.permute.xlu0 %632
    %635 = vst.msk [vmem:[#allocation2 + $0x10] sm:$0xff] %vm477, %v633
    %636 = vst.msk [vmem:[#allocation2 + $0x28] sm:$0xff] %vm479, %v633
    %v637 = vpack.c.bf16 %v630, %v630
    %639 = vrot.lane.b32.xlu0 %v637, 32
    %v640 = vpop.permute.xlu0 %639
    %v642 = vsel %vm126, %v640, 0
    %644 = vmatprep.subr.bf16.mxu0 0
    %645 = vmatpush1.bf16.msra.mxu0 %v401
    %646 = vmatprep.subr.bf16.mxu0 0
    %647 = vmatpush1.bf16.msra.mxu0 %v402
    %648 = vmatprep.subr.bf16.mxu0 0
    %649 = vmatpush1.bf16.msra.mxu0 0
    %650 = vmatprep.subr.bf16.mxu0 0
    %651 = vmatpush1.bf16.msra.mxu0 0
    %652 = vmatprep.subr.bf16.mxu0 0
    %653 = vmatpush1.bf16.msra.mxu0 0
    %654 = vmatprep.subr.bf16.mxu0 0
    %655 = vmatpush1.bf16.msra.mxu0 0
    %656 = vmatprep.subr.bf16.mxu0 0
    %657 = vmatpush1.bf16.msra.mxu0 0
    %658 = vmatprep.subr.bf16.mxu0 0
    %659 = vmatpush1.bf16.msra.mxu0 0
    %660 = vmatprep.subr.bf16.mxu0 0
    %661 = vmatpush1.bf16.msra.mxu0 0
    %662 = vmatprep.subr.bf16.mxu0 0
    %663 = vmatpush1.bf16.msra.mxu0 0
    %664 = vmatprep.subr.bf16.mxu0 0
    %665 = vmatpush1.bf16.msra.mxu0 0
    %666 = vmatprep.subr.bf16.mxu0 0
    %667 = vmatpush1.bf16.msra.mxu0 0
    %668 = vmatprep.subr.bf16.mxu0 0
    %669 = vmatpush1.bf16.msra.mxu0 0
    %670 = vmatprep.subr.bf16.mxu0 0
    %671 = vmatpush1.bf16.msra.mxu0 0
    %672 = vmatprep.subr.bf16.mxu0 0
    %673 = vmatpush1.bf16.msra.mxu0 0
    %674 = vmatprep.subr.bf16.mxu0 0
    %675 = vmatpush1.bf16.msra.mxu0 0
    %676 = vmatprep.mubr.bf16.mxu0 0
    %677 = vmatmul.mubr.bf16.gmra.mrb[0].mxu0 %v642
    %v678 = vpop.f32.mrb[0].mxu0
    %v679 = vadd.f32 0.0, %v678
    %v680 = vpop.f32.mrb[0].mxu0
    %v681 = vpop.f32.mrb[0].mxu0
    %v682 = vpop.f32.mrb[0].mxu0
    %683 = vdwg.mxu0
    %v684 = vadd.f32 %v384, %v679
    %v685 = vxor.u32 %v684, 2147483648
    %v686 = vmul.f32 %v685, 1.442695
    %v687 = vpow.pop %v686
    %v688 = vadd.f32 %v687, 1.0
    %v689 = vrcp.pop %v688
    %v690 = vmul.f32 1.0, %v689
    %v691 = vtanh.pop %v684
    %v692 = vmul.f32 %v690, %v624
    %694 = vrot.lane.b32.xlu0 %v691, 64
    %v695 = vpop.permute.xlu0 %694
    %v697 = vmul.f32 %v690, %v695
    %699 = vrot.lane.b32.xlu0 %v697, 32
    %v700 = vpop.permute.xlu0 %699
    %v702 = vadd.f32 %v692, %v700
    %v703 = vtanh.pop %v702
    %705 = vrot.lane.b32.xlu0 %v703, 64
    %v706 = vpop.permute.xlu0 %705
    %v708 = vmul.f32 %v690, %v706
    %710 = vrot.lane.b32.xlu0 %v708, 32
    %v711 = vpop.permute.xlu0 %710
    %713 = vst.msk [vmem:[#allocation2 + $0x18] sm:$0xff] %vm477, %v711
    %714 = vst.msk [vmem:[#allocation2 + $0x20] sm:$0xff] %vm479, %v711
    %v715 = vpack.c.bf16 %v708, %v708
    %717 = vrot.lane.b32.xlu0 %v715, 32
    %v718 = vpop.permute.xlu0 %717
    %v720 = vsel %vm126, %v718, 0
    %722 = vmatprep.subr.bf16.mxu0 0
    %723 = vmatpush1.bf16.msra.mxu0 %v401
    %724 = vmatprep.subr.bf16.mxu0 0
    %725 = vmatpush1.bf16.msra.mxu0 %v402
    %726 = vmatprep.subr.bf16.mxu0 0
    %727 = vmatpush1.bf16.msra.mxu0 0
    %728 = vmatprep.subr.bf16.mxu0 0
    %729 = vmatpush1.bf16.msra.mxu0 0
    %730 = vmatprep.subr.bf16.mxu0 0
    %731 = vmatpush1.bf16.msra.mxu0 0
    %732 = vmatprep.subr.bf16.mxu0 0
    %733 = vmatpush1.bf16.msra.mxu0 0
    %734 = vmatprep.subr.bf16.mxu0 0
    %735 = vmatpush1.bf16.msra.mxu0 0
    %736 = vmatprep.subr.bf16.mxu0 0
    %737 = vmatpush1.bf16.msra.mxu0 0
    %738 = vmatprep.subr.bf16.mxu0 0
    %739 = vmatpush1.bf16.msra.mxu0 0
    %740 = vmatprep.subr.bf16.mxu0 0
    %741 = vmatpush1.bf16.msra.mxu0 0
    %742 = vmatprep.subr.bf16.mxu0 0
    %743 = vmatpush1.bf16.msra.mxu0 0
    %744 = vmatprep.subr.bf16.mxu0 0
    %745 = vmatpush1.bf16.msra.mxu0 0
    %746 = vmatprep.subr.bf16.mxu0 0
    %747 = vmatpush1.bf16.msra.mxu0 0
    %748 = vmatprep.subr.bf16.mxu0 0
    %749 = vmatpush1.bf16.msra.mxu0 0
    %750 = vmatprep.subr.bf16.mxu0 0
    %751 = vmatpush1.bf16.msra.mxu0 0
    %752 = vmatprep.subr.bf16.mxu0 0
    %753 = vmatpush1.bf16.msra.mxu0 0
    %754 = vmatprep.mubr.bf16.mxu0 0
    %755 = vmatmul.mubr.bf16.gmra.mrb[0].mxu0 %v720
    %v756 = vpop.f32.mrb[0].mxu0
    %v757 = vadd.f32 0.0, %v756
    %v758 = vpop.f32.mrb[0].mxu0
    %v759 = vpop.f32.mrb[0].mxu0
    %v760 = vpop.f32.mrb[0].mxu0
    %761 = vdwg.mxu0
    %v762 = vadd.f32 %v385, %v757
    %v763 = vxor.u32 %v762, 2147483648
    %v764 = vmul.f32 %v763, 1.442695
    %v765 = vpow.pop %v764
    %v766 = vadd.f32 %v765, 1.0
    %v767 = vrcp.pop %v766
    %v768 = vmul.f32 1.0, %v767
    %v769 = vtanh.pop %v762
    %v770 = vmul.f32 %v768, %v702
    %772 = vrot.lane.b32.xlu0 %v769, 64
    %v773 = vpop.permute.xlu0 %772
    %v775 = vmul.f32 %v768, %v773
    %777 = vrot.lane.b32.xlu0 %v775, 32
    %v778 = vpop.permute.xlu0 %777
    %v780 = vadd.f32 %v770, %v778
    %v781 = vtanh.pop %v780
    %783 = vrot.lane.b32.xlu0 %v781, 64
    %v784 = vpop.permute.xlu0 %783
    %v786 = vmul.f32 %v768, %v784
    %788 = vrot.lane.b32.xlu0 %v786, 32
    %v789 = vpop.permute.xlu0 %788
    %791 = vst.msk [vmem:[#allocation2 + $0x20] sm:$0xff] %vm477, %v789
    %792 = vst.msk [vmem:[#allocation2 + $0x18] sm:$0xff] %vm479, %v789
    %v793 = vpack.c.bf16 %v786, %v786
    %795 = vrot.lane.b32.xlu0 %v793, 32
    %v796 = vpop.permute.xlu0 %795
    %v798 = vsel %vm126, %v796, 0
    %800 = vmatprep.subr.bf16.mxu0 0
    %801 = vmatpush1.bf16.msra.mxu0 %v401
    %802 = vmatprep.subr.bf16.mxu0 0
    %803 = vmatpush1.bf16.msra.mxu0 %v402
    %804 = vmatprep.subr.bf16.mxu0 0
    %805 = vmatpush1.bf16.msra.mxu0 0
    %806 = vmatprep.subr.bf16.mxu0 0
    %807 = vmatpush1.bf16.msra.mxu0 0
    %808 = vmatprep.subr.bf16.mxu0 0
    %809 = vmatpush1.bf16.msra.mxu0 0
    %810 = vmatprep.subr.bf16.mxu0 0
    %811 = vmatpush1.bf16.msra.mxu0 0
    %812 = vmatprep.subr.bf16.mxu0 0
    %813 = vmatpush1.bf16.msra.mxu0 0
    %814 = vmatprep.subr.bf16.mxu0 0
    %815 = vmatpush1.bf16.msra.mxu0 0
    %816 = vmatprep.subr.bf16.mxu0 0
    %817 = vmatpush1.bf16.msra.mxu0 0
    %818 = vmatprep.subr.bf16.mxu0 0
    %819 = vmatpush1.bf16.msra.mxu0 0
    %820 = vmatprep.subr.bf16.mxu0 0
    %821 = vmatpush1.bf16.msra.mxu0 0
    %822 = vmatprep.subr.bf16.mxu0 0
    %823 = vmatpush1.bf16.msra.mxu0 0
    %824 = vmatprep.subr.bf16.mxu0 0
    %825 = vmatpush1.bf16.msra.mxu0 0
    %826 = vmatprep.subr.bf16.mxu0 0
    %827 = vmatpush1.bf16.msra.mxu0 0
    %828 = vmatprep.subr.bf16.mxu0 0
    %829 = vmatpush1.bf16.msra.mxu0 0
    %830 = vmatprep.subr.bf16.mxu0 0
    %831 = vmatpush1.bf16.msra.mxu0 0
    %832 = vmatprep.mubr.bf16.mxu0 0
    %833 = vmatmul.mubr.bf16.gmra.mrb[0].mxu0 %v798
    %v834 = vpop.f32.mrb[0].mxu0
    %v835 = vadd.f32 0.0, %v834
    %v836 = vpop.f32.mrb[0].mxu0
    %v837 = vpop.f32.mrb[0].mxu0
    %v838 = vpop.f32.mrb[0].mxu0
    %839 = vdwg.mxu0
    %v840 = vadd.f32 %v386, %v835
    %v841 = vxor.u32 %v840, 2147483648
    %v842 = vmul.f32 %v841, 1.442695
    %v843 = vpow.pop %v842
    %v844 = vadd.f32 %v843, 1.0
    %v845 = vrcp.pop %v844
    %v846 = vmul.f32 1.0, %v845
    %v847 = vtanh.pop %v840
    %v848 = vmul.f32 %v846, %v780
    %850 = vrot.lane.b32.xlu0 %v847, 64
    %v851 = vpop.permute.xlu0 %850
    %v853 = vmul.f32 %v846, %v851
    %855 = vrot.lane.b32.xlu0 %v853, 32
    %v856 = vpop.permute.xlu0 %855
    %v858 = vadd.f32 %v848, %v856
    %v859 = vtanh.pop %v858
    %861 = vrot.lane.b32.xlu0 %v859, 64
    %v862 = vpop.permute.xlu0 %861
    %v864 = vmul.f32 %v846, %v862
    %866 = vrot.lane.b32.xlu0 %v864, 32
    %v867 = vpop.permute.xlu0 %866
    %869 = vst.msk [vmem:[#allocation2 + $0x28] sm:$0xff] %vm477, %v867
    %870 = vst.msk [vmem:[#allocation2 + $0x10] sm:$0xff] %vm479, %v867
    %v871 = vpack.c.bf16 %v864, %v864
    %873 = vrot.lane.b32.xlu0 %v871, 32
    %v874 = vpop.permute.xlu0 %873
    %v876 = vsel %vm126, %v874, 0
    %878 = vmatprep.subr.bf16.mxu0 0
    %879 = vmatpush1.bf16.msra.mxu0 %v401
    %880 = vmatprep.subr.bf16.mxu0 0
    %881 = vmatpush1.bf16.msra.mxu0 %v402
    %882 = vmatprep.subr.bf16.mxu0 0
    %883 = vmatpush1.bf16.msra.mxu0 0
    %884 = vmatprep.subr.bf16.mxu0 0
    %885 = vmatpush1.bf16.msra.mxu0 0
    %886 = vmatprep.subr.bf16.mxu0 0
    %887 = vmatpush1.bf16.msra.mxu0 0
    %888 = vmatprep.subr.bf16.mxu0 0
    %889 = vmatpush1.bf16.msra.mxu0 0
    %890 = vmatprep.subr.bf16.mxu0 0
    %891 = vmatpush1.bf16.msra.mxu0 0
    %892 = vmatprep.subr.bf16.mxu0 0
    %893 = vmatpush1.bf16.msra.mxu0 0
    %894 = vmatprep.subr.bf16.mxu0 0
    %895 = vmatpush1.bf16.msra.mxu0 0
    %896 = vmatprep.subr.bf16.mxu0 0
    %897 = vmatpush1.bf16.msra.mxu0 0
    %898 = vmatprep.subr.bf16.mxu0 0
    %899 = vmatpush1.bf16.msra.mxu0 0
    %900 = vmatprep.subr.bf16.mxu0 0
    %901 = vmatpush1.bf16.msra.mxu0 0
    %902 = vmatprep.subr.bf16.mxu0 0
    %903 = vmatpush1.bf16.msra.mxu0 0
    %904 = vmatprep.subr.bf16.mxu0 0
    %905 = vmatpush1.bf16.msra.mxu0 0
    %906 = vmatprep.subr.bf16.mxu0 0
    %907 = vmatpush1.bf16.msra.mxu0 0
    %908 = vmatprep.subr.bf16.mxu0 0
    %909 = vmatpush1.bf16.msra.mxu0 0
    %910 = vmatprep.mubr.bf16.mxu0 0
    %911 = vmatmul.mubr.bf16.gmra.mrb[0].mxu0 %v876
    %v912 = vpop.f32.mrb[0].mxu0
    %v913 = vadd.f32 0.0, %v912
    %v914 = vpop.f32.mrb[0].mxu0
    %v915 = vpop.f32.mrb[0].mxu0
    %v916 = vpop.f32.mrb[0].mxu0
    %917 = vdwg.mxu0
    %v918 = vadd.f32 %v387, %v913
    %v919 = vxor.u32 %v918, 2147483648
    %v920 = vmul.f32 %v919, 1.442695
    %v921 = vpow.pop %v920
    %v922 = vadd.f32 %v921, 1.0
    %v923 = vrcp.pop %v922
    %v924 = vmul.f32 1.0, %v923
    %v925 = vtanh.pop %v918
    %v926 = vmul.f32 %v924, %v858
    %928 = vrot.lane.b32.xlu0 %v925, 64
    %v929 = vpop.permute.xlu0 %928
    %v931 = vmul.f32 %v924, %v929
    %933 = vrot.lane.b32.xlu0 %v931, 32
    %v934 = vpop.permute.xlu0 %933
    %v936 = vadd.f32 %v926, %v934
    %v937 = vtanh.pop %v936
    %939 = vrot.lane.b32.xlu0 %v937, 64
    %v940 = vpop.permute.xlu0 %939
    %v942 = vmul.f32 %v924, %v940
    %944 = vrot.lane.b32.xlu0 %v942, 32
    %v945 = vpop.permute.xlu0 %944
    %947 = vst.msk [vmem:[#allocation2 + $0x30] sm:$0xff] %vm477, %v945
    %948 = vst.msk [vmem:[#allocation2 + $0x8] sm:$0xff] %vm479, %v945
    %v949 = vpack.c.bf16 %v942, %v942
    %951 = vrot.lane.b32.xlu0 %v949, 32
    %v952 = vpop.permute.xlu0 %951
    %v954 = vsel %vm126, %v952, 0
    %956 = vmatprep.subr.bf16.mxu0 0
    %957 = vmatpush1.bf16.msra.mxu0 %v401
    %958 = vmatprep.subr.bf16.mxu0 0
    %959 = vmatpush1.bf16.msra.mxu0 %v402
    %960 = vmatprep.subr.bf16.mxu0 0
    %961 = vmatpush1.bf16.msra.mxu0 0
    %962 = vmatprep.subr.bf16.mxu0 0
    %963 = vmatpush1.bf16.msra.mxu0 0
    %964 = vmatprep.subr.bf16.mxu0 0
    %965 = vmatpush1.bf16.msra.mxu0 0
    %966 = vmatprep.subr.bf16.mxu0 0
    %967 = vmatpush1.bf16.msra.mxu0 0
    %968 = vmatprep.subr.bf16.mxu0 0
    %969 = vmatpush1.bf16.msra.mxu0 0
    %970 = vmatprep.subr.bf16.mxu0 0
    %971 = vmatpush1.bf16.msra.mxu0 0
    %972 = vmatprep.subr.bf16.mxu0 0
    %973 = vmatpush1.bf16.msra.mxu0 0
    %974 = vmatprep.subr.bf16.mxu0 0
    %975 = vmatpush1.bf16.msra.mxu0 0
    %976 = vmatprep.subr.bf16.mxu0 0
    %977 = vmatpush1.bf16.msra.mxu0 0
    %978 = vmatprep.subr.bf16.mxu0 0
    %979 = vmatpush1.bf16.msra.mxu0 0
    %980 = vmatprep.subr.bf16.mxu0 0
    %981 = vmatpush1.bf16.msra.mxu0 0
    %982 = vmatprep.subr.bf16.mxu0 0
    %983 = vmatpush1.bf16.msra.mxu0 0
    %984 = vmatprep.subr.bf16.mxu0 0
    %985 = vmatpush1.bf16.msra.mxu0 0
    %986 = vmatprep.subr.bf16.mxu0 0
    %987 = vmatpush1.bf16.msra.mxu0 0
    %988 = vmatprep.mubr.bf16.mxu0 0
    %989 = vmatmul.mubr.bf16.gmra.mrb[0].mxu0 %v954
    %v990 = vpop.f32.mrb[0].mxu0
    %v991 = vadd.f32 0.0, %v990
    %v992 = vpop.f32.mrb[0].mxu0
    %v993 = vpop.f32.mrb[0].mxu0
    %v994 = vpop.f32.mrb[0].mxu0
    %995 = vdwg.mxu0
    %v996 = vadd.f32 %v388, %v991
    %v997 = vxor.u32 %v996, 2147483648
    %v998 = vmul.f32 %v997, 1.442695
    %v999 = vpow.pop %v998
    %v1000 = vadd.f32 %v999, 1.0
    %v1001 = vrcp.pop %v1000
    %v1002 = vmul.f32 1.0, %v1001
    %v1003 = vtanh.pop %v996
    %v1004 = vmul.f32 %v1002, %v936
    %1006 = vrot.lane.b32.xlu0 %v1003, 64
    %v1007 = vpop.permute.xlu0 %1006
    %v1009 = vmul.f32 %v1002, %v1007
    %1011 = vrot.lane.b32.xlu0 %v1009, 32
    %v1012 = vpop.permute.xlu0 %1011
    %v1014 = vadd.f32 %v1004, %v1012
    %v1015 = vtanh.pop %v1014
    %1017 = vrot.lane.b32.xlu0 %v1015, 64
    %v1018 = vpop.permute.xlu0 %1017
    %v1020 = vmul.f32 %v1002, %v1018
    %1022 = vrot.lane.b32.xlu0 %v1020, 32
    %v1023 = vpop.permute.xlu0 %1022
    %1025 = vst.msk [vmem:[#allocation2 + $0x38] sm:$0xff] %vm477, %v1023
    %1026 = vst.msk [vmem:[#allocation2] sm:$0xff] %vm479, %v1023
    %v1027 = vld [vmem:[#allocation2] sm:$0xff]
    %v1028 = vld [vmem:[#allocation2 + $0x8] sm:$0xff]
    %v1029 = vld [vmem:[#allocation2 + $0x10] sm:$0xff]
    %v1030 = vld [vmem:[#allocation2 + $0x18] sm:$0xff]
    %v1031 = vld [vmem:[#allocation2 + $0x20] sm:$0xff]
    %v1032 = vld [vmem:[#allocation2 + $0x28] sm:$0xff]
    %v1033 = vld [vmem:[#allocation2 + $0x30] sm:$0xff]
    %v1034 = vld [vmem:[#allocation2 + $0x38] sm:$0xff]
    %v1035 = vpack.c.bf16 %v1028, %v1027
    %v1036 = vpack.c.bf16 %v1030, %v1029
    %v1037 = vpack.c.bf16 %v1032, %v1031
    %v1038 = vpack.c.bf16 %v1034, %v1033
    %v1039 = vld [vmem:[%s6] sm:$0xf]
    %v1040 = vld [vmem:[%s6 + $0x4] sm:$0xf]
    %v1041 = vld [vmem:[%s6 + $0x8] sm:$0xf]
    %v1042 = vld [vmem:[%s6 + $0xc] sm:$0xf]
    %v1043 = vld [vmem:[#allocation13] sm:$0x1]
    %v1045 = vlaneseq
    %v1046 = vshrl.u32 %v1045, 7
    %v1047 = vsub.s32 0, %v1046
    %v1048 = vrot.slane %v1043, %v1047
    %v1054 = vunpack.c.l.b16 %v1039
    %v1055 = vunpack.c.l.b16 %v1040
    %v1056 = vunpack.c.l.b16 %v1041
    %v1057 = vunpack.c.l.b16 %v1042
    %v1058 = vpack.c.b16 %v1055, %v1054
    %v1059 = vpack.c.b16 %v1057, %v1056
    %v1063 = vsel %vm126, %v1035, 0
    %v1066 = vsel %vm126, %v1036, 0
    %v1069 = vsel %vm126, %v1037, 0
    %v1072 = vsel %vm126, %v1038, 0
    %1074 = vmatprep.subr.bf16.mxu0 0
    %1075 = vmatpush1.bf16.msra.mxu0 %v1058
    %1076 = vmatprep.subr.bf16.mxu0 0
    %1077 = vmatpush1.bf16.msra.mxu0 %v1059
    %1078 = vmatprep.subr.bf16.mxu0 0
    %1079 = vmatpush1.bf16.msra.mxu0 0
    %1080 = vmatprep.subr.bf16.mxu0 0
    %1081 = vmatpush1.bf16.msra.mxu0 0
    %1082 = vmatprep.subr.bf16.mxu0 0
    %1083 = vmatpush1.bf16.msra.mxu0 0
    %1084 = vmatprep.subr.bf16.mxu0 0
    %1085 = vmatpush1.bf16.msra.mxu0 0
    %1086 = vmatprep.subr.bf16.mxu0 0
    %1087 = vmatpush1.bf16.msra.mxu0 0
    %1088 = vmatprep.subr.bf16.mxu0 0
    %1089 = vmatpush1.bf16.msra.mxu0 0
    %1090 = vmatprep.subr.bf16.mxu0 0
    %1091 = vmatpush1.bf16.msra.mxu0 0
    %1092 = vmatprep.subr.bf16.mxu0 0
    %1093 = vmatpush1.bf16.msra.mxu0 0
    %1094 = vmatprep.subr.bf16.mxu0 0
    %1095 = vmatpush1.bf16.msra.mxu0 0
    %1096 = vmatprep.subr.bf16.mxu0 0
    %1097 = vmatpush1.bf16.msra.mxu0 0
    %1098 = vmatprep.subr.bf16.mxu0 0
    %1099 = vmatpush1.bf16.msra.mxu0 0
    %1100 = vmatprep.subr.bf16.mxu0 0
    %1101 = vmatpush1.bf16.msra.mxu0 0
    %1102 = vmatprep.subr.bf16.mxu0 0
    %1103 = vmatpush1.bf16.msra.mxu0 0
    %1104 = vmatprep.subr.bf16.mxu0 0
    %1105 = vmatpush1.bf16.msra.mxu0 0
    %1106 = vmatprep.mubr.bf16.mxu0 0
    %1107 = vmatmul.mubr.bf16.gmra.mrb[0].mxu0 %v1063
    %v1108 = vpop.f32.mrb[0].mxu0
    %v1109 = vadd.f32 %v1048, %v1108
    %v1110 = vpop.f32.mrb[0].mxu0
    %v1111 = vpop.f32.mrb[0].mxu0
    %v1112 = vadd.f32 %v1048, %v1111
    %v1113 = vpop.f32.mrb[0].mxu0
    %1114 = vmatprep.mubr.bf16.mxu0 0
    %1115 = vmatmul.mubr.bf16.gmra.mrb[0].mxu0 %v1066
    %v1116 = vpop.f32.mrb[0].mxu0
    %v1117 = vadd.f32 %v1048, %v1116
    %v1118 = vpop.f32.mrb[0].mxu0
    %v1119 = vpop.f32.mrb[0].mxu0
    %v1120 = vadd.f32 %v1048, %v1119
    %v1121 = vpop.f32.mrb[0].mxu0
    %1122 = vmatprep.mubr.bf16.mxu0 0
    %1123 = vmatmul.mubr.bf16.gmra.mrb[0].mxu0 %v1069
    %v1124 = vpop.f32.mrb[0].mxu0
    %v1125 = vadd.f32 %v1048, %v1124
    %v1126 = vpop.f32.mrb[0].mxu0
    %v1127 = vpop.f32.mrb[0].mxu0
    %v1128 = vadd.f32 %v1048, %v1127
    %v1129 = vpop.f32.mrb[0].mxu0
    %1130 = vmatprep.mubr.bf16.mxu0 0
    %1131 = vmatmul.mubr.bf16.gmra.mrb[0].mxu0 %v1072
    %v1132 = vpop.f32.mrb[0].mxu0
    %v1133 = vadd.f32 %v1048, %v1132
    %v1134 = vpop.f32.mrb[0].mxu0
    %v1135 = vpop.f32.mrb[0].mxu0
    %v1136 = vadd.f32 %v1048, %v1135
    %v1137 = vpop.f32.mrb[0].mxu0
    %1138 = vdwg.mxu0
    %v1139 = vsel %vm276, %v1109, %v1136
    %v1140 = vsel %vm276, %v1112, %v1133
    %v1141 = vsel %vm276, %v1117, %v1128
    %v1142 = vsel %vm276, %v1120, %v1125
    %v1143 = vsel %vm276, %v1125, %v1120
    %v1144 = vsel %vm276, %v1128, %v1117
    %v1145 = vsel %vm276, %v1133, %v1112
    %v1146 = vsel %vm276, %v1136, %v1109
    %v1147 = vld [vmem:[#allocation12] sm:$0xf]
    %v1148 = vld [vmem:[#allocation12 + $0x4] sm:$0xf]
    %v1149 = vld [vmem:[#allocation12 + $0x8] sm:$0xf]
    %v1150 = vld [vmem:[#allocation12 + $0xc] sm:$0xf]
    %v1155 = vunpack.c.l.b16 %v1147
    %v1156 = vunpack.c.l.b16 %v1148
    %v1157 = vunpack.c.l.b16 %v1149
    %v1158 = vunpack.c.l.b16 %v1150
    %v1159 = vpack.c.b16 %v1156, %v1155
    %v1160 = vpack.c.b16 %v1158, %v1157
    %1163 = vmatprep.subr.bf16.mxu0 0
    %1164 = vmatpush1.bf16.msra.mxu0 %v1159
    %1165 = vmatprep.subr.bf16.mxu0 0
    %1166 = vmatpush1.bf16.msra.mxu0 %v1160
    %1167 = vmatprep.subr.bf16.mxu0 0
    %1168 = vmatpush1.bf16.msra.mxu0 0
    %1169 = vmatprep.subr.bf16.mxu0 0
    %1170 = vmatpush1.bf16.msra.mxu0 0
    %1171 = vmatprep.subr.bf16.mxu0 0
    %1172 = vmatpush1.bf16.msra.mxu0 0
    %1173 = vmatprep.subr.bf16.mxu0 0
    %1174 = vmatpush1.bf16.msra.mxu0 0
    %1175 = vmatprep.subr.bf16.mxu0 0
    %1176 = vmatpush1.bf16.msra.mxu0 0
    %1177 = vmatprep.subr.bf16.mxu0 0
    %1178 = vmatpush1.bf16.msra.mxu0 0
    %1179 = vmatprep.subr.bf16.mxu0 0
    %1180 = vmatpush1.bf16.msra.mxu0 0
    %1181 = vmatprep.subr.bf16.mxu0 0
    %1182 = vmatpush1.bf16.msra.mxu0 0
    %1183 = vmatprep.subr.bf16.mxu0 0
    %1184 = vmatpush1.bf16.msra.mxu0 0
    %1185 = vmatprep.subr.bf16.mxu0 0
    %1186 = vmatpush1.bf16.msra.mxu0 0
    %1187 = vmatprep.subr.bf16.mxu0 0
    %1188 = vmatpush1.bf16.msra.mxu0 0
    %1189 = vmatprep.subr.bf16.mxu0 0
    %1190 = vmatpush1.bf16.msra.mxu0 0
    %1191 = vmatprep.subr.bf16.mxu0 0
    %1192 = vmatpush1.bf16.msra.mxu0 0
    %1193 = vmatprep.subr.bf16.mxu0 0
    %1194 = vmatpush1.bf16.msra.mxu0 0
    %1195 = vmatprep.mubr.bf16.mxu0 0
    %1196 = vmatmul.mubr.bf16.gmra.mrb[0].mxu0 %v406
    %v1197 = vpop.f32.mrb[0].mxu0
    %v1198 = vadd.f32 0.0, %v1197
    %v1199 = vpop.f32.mrb[0].mxu0
    %v1200 = vpop.f32.mrb[0].mxu0
    %v1201 = vpop.f32.mrb[0].mxu0
    %1202 = vdwg.mxu0
    %v1203 = vadd.f32 %v1139, %v1198
    %v1204 = vxor.u32 %v1203, 2147483648
    %v1205 = vmul.f32 %v1204, 1.442695
    %v1206 = vpow.pop %v1205
    %v1207 = vadd.f32 %v1206, 1.0
    %v1208 = vrcp.pop %v1207
    %v1209 = vmul.f32 1.0, %v1208
    %v1210 = vtanh.pop %v1203
    %v1211 = vmul.f32 %v1209, 0.0
    %1213 = vrot.lane.b32.xlu0 %v1210, 64
    %v1214 = vpop.permute.xlu0 %1213
    %v1216 = vmul.f32 %v1209, %v1214
    %1218 = vrot.lane.b32.xlu0 %v1216, 32
    %v1219 = vpop.permute.xlu0 %1218
    %v1221 = vadd.f32 %v1211, %v1219
    %v1222 = vtanh.pop %v1221
    %1224 = vrot.lane.b32.xlu0 %v1222, 64
    %v1225 = vpop.permute.xlu0 %1224
    %v1227 = vmul.f32 %v1209, %v1225
    %1229 = vrot.lane.b32.xlu0 %v1227, 32
    %v1230 = vpop.permute.xlu0 %1229
    %1232 = vst.msk [vmem:[#allocation3] sm:$0xff] %vm477, %v1230
    %1233 = vst.msk [vmem:[#allocation3 + $0x38] sm:$0xff] %vm479, %v1230
    %v1234 = vpack.c.bf16 %v1227, %v1227
    %1236 = vrot.lane.b32.xlu0 %v1234, 32
    %v1237 = vpop.permute.xlu0 %1236
    %v1239 = vsel %vm126, %v1237, 0
    %1241 = vmatprep.subr.bf16.mxu0 0
    %1242 = vmatpush1.bf16.msra.mxu0 %v1159
    %1243 = vmatprep.subr.bf16.mxu0 0
    %1244 = vmatpush1.bf16.msra.mxu0 %v1160
    %1245 = vmatprep.subr.bf16.mxu0 0
    %1246 = vmatpush1.bf16.msra.mxu0 0
    %1247 = vmatprep.subr.bf16.mxu0 0
    %1248 = vmatpush1.bf16.msra.mxu0 0
    %1249 = vmatprep.subr.bf16.mxu0 0
    %1250 = vmatpush1.bf16.msra.mxu0 0
    %1251 = vmatprep.subr.bf16.mxu0 0
    %1252 = vmatpush1.bf16.msra.mxu0 0
    %1253 = vmatprep.subr.bf16.mxu0 0
    %1254 = vmatpush1.bf16.msra.mxu0 0
    %1255 = vmatprep.subr.bf16.mxu0 0
    %1256 = vmatpush1.bf16.msra.mxu0 0
    %1257 = vmatprep.subr.bf16.mxu0 0
    %1258 = vmatpush1.bf16.msra.mxu0 0
    %1259 = vmatprep.subr.bf16.mxu0 0
    %1260 = vmatpush1.bf16.msra.mxu0 0
    %1261 = vmatprep.subr.bf16.mxu0 0
    %1262 = vmatpush1.bf16.msra.mxu0 0
    %1263 = vmatprep.subr.bf16.mxu0 0
    %1264 = vmatpush1.bf16.msra.mxu0 0
    %1265 = vmatprep.subr.bf16.mxu0 0
    %1266 = vmatpush1.bf16.msra.mxu0 0
    %1267 = vmatprep.subr.bf16.mxu0 0
    %1268 = vmatpush1.bf16.msra.mxu0 0
    %1269 = vmatprep.subr.bf16.mxu0 0
    %1270 = vmatpush1.bf16.msra.mxu0 0
    %1271 = vmatprep.subr.bf16.mxu0 0
    %1272 = vmatpush1.bf16.msra.mxu0 0
    %1273 = vmatprep.mubr.bf16.mxu0 0
    %1274 = vmatmul.mubr.bf16.gmra.mrb[0].mxu0 %v1239
    %v1275 = vpop.f32.mrb[0].mxu0
    %v1276 = vadd.f32 0.0, %v1275
    %v1277 = vpop.f32.mrb[0].mxu0
    %v1278 = vpop.f32.mrb[0].mxu0
    %v1279 = vpop.f32.mrb[0].mxu0
    %1280 = vdwg.mxu0
    %v1281 = vadd.f32 %v1140, %v1276
    %v1282 = vxor.u32 %v1281, 2147483648
    %v1283 = vmul.f32 %v1282, 1.442695
    %v1284 = vpow.pop %v1283
    %v1285 = vadd.f32 %v1284, 1.0
    %v1286 = vrcp.pop %v1285
    %v1287 = vmul.f32 1.0, %v1286
    %v1288 = vtanh.pop %v1281
    %v1289 = vmul.f32 %v1287, %v1221
    %1291 = vrot.lane.b32.xlu0 %v1288, 64
    %v1292 = vpop.permute.xlu0 %1291
    %v1294 = vmul.f32 %v1287, %v1292
    %1296 = vrot.lane.b32.xlu0 %v1294, 32
    %v1297 = vpop.permute.xlu0 %1296
    %v1299 = vadd.f32 %v1289, %v1297
    %v1300 = vtanh.pop %v1299
    %1302 = vrot.lane.b32.xlu0 %v1300, 64
    %v1303 = vpop.permute.xlu0 %1302
    %v1305 = vmul.f32 %v1287, %v1303
    %1307 = vrot.lane.b32.xlu0 %v1305, 32
    %v1308 = vpop.permute.xlu0 %1307
    %1310 = vst.msk [vmem:[#allocation3 + $0x8] sm:$0xff] %vm477, %v1308
    %1311 = vst.msk [vmem:[#allocation3 + $0x30] sm:$0xff] %vm479, %v1308
    %v1312 = vpack.c.bf16 %v1305, %v1305
    %1314 = vrot.lane.b32.xlu0 %v1312, 32
    %v1315 = vpop.permute.xlu0 %1314
    %v1317 = vsel %vm126, %v1315, 0
    %1319 = vmatprep.subr.bf16.mxu0 0
    %1320 = vmatpush1.bf16.msra.mxu0 %v1159
    %1321 = vmatprep.subr.bf16.mxu0 0
    %1322 = vmatpush1.bf16.msra.mxu0 %v1160
    %1323 = vmatprep.subr.bf16.mxu0 0
    %1324 = vmatpush1.bf16.msra.mxu0 0
    %1325 = vmatprep.subr.bf16.mxu0 0
    %1326 = vmatpush1.bf16.msra.mxu0 0
    %1327 = vmatprep.subr.bf16.mxu0 0
    %1328 = vmatpush1.bf16.msra.mxu0 0
    %1329 = vmatprep.subr.bf16.mxu0 0
    %1330 = vmatpush1.bf16.msra.mxu0 0
    %1331 = vmatprep.subr.bf16.mxu0 0
    %1332 = vmatpush1.bf16.msra.mxu0 0
    %1333 = vmatprep.subr.bf16.mxu0 0
    %1334 = vmatpush1.bf16.msra.mxu0 0
    %1335 = vmatprep.subr.bf16.mxu0 0
    %1336 = vmatpush1.bf16.msra.mxu0 0
    %1337 = vmatprep.subr.bf16.mxu0 0
    %1338 = vmatpush1.bf16.msra.mxu0 0
    %1339 = vmatprep.subr.bf16.mxu0 0
    %1340 = vmatpush1.bf16.msra.mxu0 0
    %1341 = vmatprep.subr.bf16.mxu0 0
    %1342 = vmatpush1.bf16.msra.mxu0 0
    %1343 = vmatprep.subr.bf16.mxu0 0
    %1344 = vmatpush1.bf16.msra.mxu0 0
    %1345 = vmatprep.subr.bf16.mxu0 0
    %1346 = vmatpush1.bf16.msra.mxu0 0
    %1347 = vmatprep.subr.bf16.mxu0 0
    %1348 = vmatpush1.bf16.msra.mxu0 0
    %1349 = vmatprep.subr.bf16.mxu0 0
    %1350 = vmatpush1.bf16.msra.mxu0 0
    %1351 = vmatprep.mubr.bf16.mxu0 0
    %1352 = vmatmul.mubr.bf16.gmra.mrb[0].mxu0 %v1317
    %v1353 = vpop.f32.mrb[0].mxu0
    %v1354 = vadd.f32 0.0, %v1353
    %v1355 = vpop.f32.mrb[0].mxu0
    %v1356 = vpop.f32.mrb[0].mxu0
    %v1357 = vpop.f32.mrb[0].mxu0
    %1358 = vdwg.mxu0
    %v1359 = vadd.f32 %v1141, %v1354
    %v1360 = vxor.u32 %v1359, 2147483648
    %v1361 = vmul.f32 %v1360, 1.442695
    %v1362 = vpow.pop %v1361
    %v1363 = vadd.f32 %v1362, 1.0
    %v1364 = vrcp.pop %v1363
    %v1365 = vmul.f32 1.0, %v1364
    %v1366 = vtanh.pop %v1359
    %v1367 = vmul.f32 %v1365, %v1299
    %1369 = vrot.lane.b32.xlu0 %v1366, 64
    %v1370 = vpop.permute.xlu0 %1369
    %v1372 = vmul.f32 %v1365, %v1370
    %1374 = vrot.lane.b32.xlu0 %v1372, 32
    %v1375 = vpop.permute.xlu0 %1374
    %v1377 = vadd.f32 %v1367, %v1375
    %v1378 = vtanh.pop %v1377
    %1380 = vrot.lane.b32.xlu0 %v1378, 64
    %v1381 = vpop.permute.xlu0 %1380
    %v1383 = vmul.f32 %v1365, %v1381
    %1385 = vrot.lane.b32.xlu0 %v1383, 32
    %v1386 = vpop.permute.xlu0 %1385
    %1388 = vst.msk [vmem:[#allocation3 + $0x10] sm:$0xff] %vm477, %v1386
    %1389 = vst.msk [vmem:[#allocation3 + $0x28] sm:$0xff] %vm479, %v1386
    %v1390 = vpack.c.bf16 %v1383, %v1383
    %1392 = vrot.lane.b32.xlu0 %v1390, 32
    %v1393 = vpop.permute.xlu0 %1392
    %v1395 = vsel %vm126, %v1393, 0
    %1397 = vmatprep.subr.bf16.mxu0 0
    %1398 = vmatpush1.bf16.msra.mxu0 %v1159
    %1399 = vmatprep.subr.bf16.mxu0 0
    %1400 = vmatpush1.bf16.msra.mxu0 %v1160
    %1401 = vmatprep.subr.bf16.mxu0 0
    %1402 = vmatpush1.bf16.msra.mxu0 0
    %1403 = vmatprep.subr.bf16.mxu0 0
    %1404 = vmatpush1.bf16.msra.mxu0 0
    %1405 = vmatprep.subr.bf16.mxu0 0
    %1406 = vmatpush1.bf16.msra.mxu0 0
    %1407 = vmatprep.subr.bf16.mxu0 0
    %1408 = vmatpush1.bf16.msra.mxu0 0
    %1409 = vmatprep.subr.bf16.mxu0 0
    %1410 = vmatpush1.bf16.msra.mxu0 0
    %1411 = vmatprep.subr.bf16.mxu0 0
    %1412 = vmatpush1.bf16.msra.mxu0 0
    %1413 = vmatprep.subr.bf16.mxu0 0
    %1414 = vmatpush1.bf16.msra.mxu0 0
    %1415 = vmatprep.subr.bf16.mxu0 0
    %1416 = vmatpush1.bf16.msra.mxu0 0
    %1417 = vmatprep.subr.bf16.mxu0 0
    %1418 = vmatpush1.bf16.msra.mxu0 0
    %1419 = vmatprep.subr.bf16.mxu0 0
    %1420 = vmatpush1.bf16.msra.mxu0 0
    %1421 = vmatprep.subr.bf16.mxu0 0
    %1422 = vmatpush1.bf16.msra.mxu0 0
    %1423 = vmatprep.subr.bf16.mxu0 0
    %1424 = vmatpush1.bf16.msra.mxu0 0
    %1425 = vmatprep.subr.bf16.mxu0 0
    %1426 = vmatpush1.bf16.msra.mxu0 0
    %1427 = vmatprep.subr.bf16.mxu0 0
    %1428 = vmatpush1.bf16.msra.mxu0 0
    %1429 = vmatprep.mubr.bf16.mxu0 0
    %1430 = vmatmul.mubr.bf16.gmra.mrb[0].mxu0 %v1395
    %v1431 = vpop.f32.mrb[0].mxu0
    %v1432 = vadd.f32 0.0, %v1431
    %v1433 = vpop.f32.mrb[0].mxu0
    %v1434 = vpop.f32.mrb[0].mxu0
    %v1435 = vpop.f32.mrb[0].mxu0
    %1436 = vdwg.mxu0
    %v1437 = vadd.f32 %v1142, %v1432
    %v1438 = vxor.u32 %v1437, 2147483648
    %v1439 = vmul.f32 %v1438, 1.442695
    %v1440 = vpow.pop %v1439
    %v1441 = vadd.f32 %v1440, 1.0
    %v1442 = vrcp.pop %v1441
    %v1443 = vmul.f32 1.0, %v1442
    %v1444 = vtanh.pop %v1437
    %v1445 = vmul.f32 %v1443, %v1377
    %1447 = vrot.lane.b32.xlu0 %v1444, 64
    %v1448 = vpop.permute.xlu0 %1447
    %v1450 = vmul.f32 %v1443, %v1448
    %1452 = vrot.lane.b32.xlu0 %v1450, 32
    %v1453 = vpop.permute.xlu0 %1452
    %v1455 = vadd.f32 %v1445, %v1453
    %v1456 = vtanh.pop %v1455
    %1458 = vrot.lane.b32.xlu0 %v1456, 64
    %v1459 = vpop.permute.xlu0 %1458
    %v1461 = vmul.f32 %v1443, %v1459
    %1463 = vrot.lane.b32.xlu0 %v1461, 32
    %v1464 = vpop.permute.xlu0 %1463
    %1466 = vst.msk [vmem:[#allocation3 + $0x18] sm:$0xff] %vm477, %v1464
    %1467 = vst.msk [vmem:[#allocation3 + $0x20] sm:$0xff] %vm479, %v1464
    %v1468 = vpack.c.bf16 %v1461, %v1461
    %1470 = vrot.lane.b32.xlu0 %v1468, 32
    %v1471 = vpop.permute.xlu0 %1470
    %v1473 = vsel %vm126, %v1471, 0
    %1475 = vmatprep.subr.bf16.mxu0 0
    %1476 = vmatpush1.bf16.msra.mxu0 %v1159
    %1477 = vmatprep.subr.bf16.mxu0 0
    %1478 = vmatpush1.bf16.msra.mxu0 %v1160
    %1479 = vmatprep.subr.bf16.mxu0 0
    %1480 = vmatpush1.bf16.msra.mxu0 0
    %1481 = vmatprep.subr.bf16.mxu0 0
    %1482 = vmatpush1.bf16.msra.mxu0 0
    %1483 = vmatprep.subr.bf16.mxu0 0
    %1484 = vmatpush1.bf16.msra.mxu0 0
    %1485 = vmatprep.subr.bf16.mxu0 0
    %1486 = vmatpush1.bf16.msra.mxu0 0
    %1487 = vmatprep.subr.bf16.mxu0 0
    %1488 = vmatpush1.bf16.msra.mxu0 0
    %1489 = vmatprep.subr.bf16.mxu0 0
    %1490 = vmatpush1.bf16.msra.mxu0 0
    %1491 = vmatprep.subr.bf16.mxu0 0
    %1492 = vmatpush1.bf16.msra.mxu0 0
    %1493 = vmatprep.subr.bf16.mxu0 0
    %1494 = vmatpush1.bf16.msra.mxu0 0
    %1495 = vmatprep.subr.bf16.mxu0 0
    %1496 = vmatpush1.bf16.msra.mxu0 0
    %1497 = vmatprep.subr.bf16.mxu0 0
    %1498 = vmatpush1.bf16.msra.mxu0 0
    %1499 = vmatprep.subr.bf16.mxu0 0
    %1500 = vmatpush1.bf16.msra.mxu0 0
    %1501 = vmatprep.subr.bf16.mxu0 0
    %1502 = vmatpush1.bf16.msra.mxu0 0
    %1503 = vmatprep.subr.bf16.mxu0 0
    %1504 = vmatpush1.bf16.msra.mxu0 0
    %1505 = vmatprep.subr.bf16.mxu0 0
    %1506 = vmatpush1.bf16.msra.mxu0 0
    %1507 = vmatprep.mubr.bf16.mxu0 0
    %1508 = vmatmul.mubr.bf16.gmra.mrb[0].mxu0 %v1473
    %v1509 = vpop.f32.mrb[0].mxu0
    %v1510 = vadd.f32 0.0, %v1509
    %v1511 = vpop.f32.mrb[0].mxu0
    %v1512 = vpop.f32.mrb[0].mxu0
    %v1513 = vpop.f32.mrb[0].mxu0
    %1514 = vdwg.mxu0
    %v1515 = vadd.f32 %v1143, %v1510
    %v1516 = vxor.u32 %v1515, 2147483648
    %v1517 = vmul.f32 %v1516, 1.442695
    %v1518 = vpow.pop %v1517
    %v1519 = vadd.f32 %v1518, 1.0
    %v1520 = vrcp.pop %v1519
    %v1521 = vmul.f32 1.0, %v1520
    %v1522 = vtanh.pop %v1515
    %v1523 = vmul.f32 %v1521, %v1455
    %1525 = vrot.lane.b32.xlu0 %v1522, 64
    %v1526 = vpop.permute.xlu0 %1525
    %v1528 = vmul.f32 %v1521, %v1526
    %1530 = vrot.lane.b32.xlu0 %v1528, 32
    %v1531 = vpop.permute.xlu0 %1530
    %v1533 = vadd.f32 %v1523, %v1531
    %v1534 = vtanh.pop %v1533
    %1536 = vrot.lane.b32.xlu0 %v1534, 64
    %v1537 = vpop.permute.xlu0 %1536
    %v1539 = vmul.f32 %v1521, %v1537
    %1541 = vrot.lane.b32.xlu0 %v1539, 32
    %v1542 = vpop.permute.xlu0 %1541
    %1544 = vst.msk [vmem:[#allocation3 + $0x20] sm:$0xff] %vm477, %v1542
    %1545 = vst.msk [vmem:[#allocation3 + $0x18] sm:$0xff] %vm479, %v1542
    %v1546 = vpack.c.bf16 %v1539, %v1539
    %1548 = vrot.lane.b32.xlu0 %v1546, 32
    %v1549 = vpop.permute.xlu0 %1548
    %v1551 = vsel %vm126, %v1549, 0
    %1553 = vmatprep.subr.bf16.mxu0 0
    %1554 = vmatpush1.bf16.msra.mxu0 %v1159
    %1555 = vmatprep.subr.bf16.mxu0 0
    %1556 = vmatpush1.bf16.msra.mxu0 %v1160
    %1557 = vmatprep.subr.bf16.mxu0 0
    %1558 = vmatpush1.bf16.msra.mxu0 0
    %1559 = vmatprep.subr.bf16.mxu0 0
    %1560 = vmatpush1.bf16.msra.mxu0 0
    %1561 = vmatprep.subr.bf16.mxu0 0
    %1562 = vmatpush1.bf16.msra.mxu0 0
    %1563 = vmatprep.subr.bf16.mxu0 0
    %1564 = vmatpush1.bf16.msra.mxu0 0
    %1565 = vmatprep.subr.bf16.mxu0 0
    %1566 = vmatpush1.bf16.msra.mxu0 0
    %1567 = vmatprep.subr.bf16.mxu0 0
    %1568 = vmatpush1.bf16.msra.mxu0 0
    %1569 = vmatprep.subr.bf16.mxu0 0
    %1570 = vmatpush1.bf16.msra.mxu0 0
    %1571 = vmatprep.subr.bf16.mxu0 0
    %1572 = vmatpush1.bf16.msra.mxu0 0
    %1573 = vmatprep.subr.bf16.mxu0 0
    %1574 = vmatpush1.bf16.msra.mxu0 0
    %1575 = vmatprep.subr.bf16.mxu0 0
    %1576 = vmatpush1.bf16.msra.mxu0 0
    %1577 = vmatprep.subr.bf16.mxu0 0
    %1578 = vmatpush1.bf16.msra.mxu0 0
    %1579 = vmatprep.subr.bf16.mxu0 0
    %1580 = vmatpush1.bf16.msra.mxu0 0
    %1581 = vmatprep.subr.bf16.mxu0 0
    %1582 = vmatpush1.bf16.msra.mxu0 0
    %1583 = vmatprep.subr.bf16.mxu0 0
    %1584 = vmatpush1.bf16.msra.mxu0 0
    %1585 = vmatprep.mubr.bf16.mxu0 0
    %1586 = vmatmul.mubr.bf16.gmra.mrb[0].mxu0 %v1551
    %v1587 = vpop.f32.mrb[0].mxu0
    %v1588 = vadd.f32 0.0, %v1587
    %v1589 = vpop.f32.mrb[0].mxu0
    %v1590 = vpop.f32.mrb[0].mxu0
    %v1591 = vpop.f32.mrb[0].mxu0
    %1592 = vdwg.mxu0
    %v1593 = vadd.f32 %v1144, %v1588
    %v1594 = vxor.u32 %v1593, 2147483648
    %v1595 = vmul.f32 %v1594, 1.442695
    %v1596 = vpow.pop %v1595
    %v1597 = vadd.f32 %v1596, 1.0
    %v1598 = vrcp.pop %v1597
    %v1599 = vmul.f32 1.0, %v1598
    %v1600 = vtanh.pop %v1593
    %v1601 = vmul.f32 %v1599, %v1533
    %1603 = vrot.lane.b32.xlu0 %v1600, 64
    %v1604 = vpop.permute.xlu0 %1603
    %v1606 = vmul.f32 %v1599, %v1604
    %1608 = vrot.lane.b32.xlu0 %v1606, 32
    %v1609 = vpop.permute.xlu0 %1608
    %v1611 = vadd.f32 %v1601, %v1609
    %v1612 = vtanh.pop %v1611
    %1614 = vrot.lane.b32.xlu0 %v1612, 64
    %v1615 = vpop.permute.xlu0 %1614
    %v1617 = vmul.f32 %v1599, %v1615
    %1619 = vrot.lane.b32.xlu0 %v1617, 32
    %v1620 = vpop.permute.xlu0 %1619
    %1622 = vst.msk [vmem:[#allocation3 + $0x28] sm:$0xff] %vm477, %v1620
    %1623 = vst.msk [vmem:[#allocation3 + $0x10] sm:$0xff] %vm479, %v1620
    %v1624 = vpack.c.bf16 %v1617, %v1617
    %1626 = vrot.lane.b32.xlu0 %v1624, 32
    %v1627 = vpop.permute.xlu0 %1626
    %v1629 = vsel %vm126, %v1627, 0
    %1631 = vmatprep.subr.bf16.mxu0 0
    %1632 = vmatpush1.bf16.msra.mxu0 %v1159
    %1633 = vmatprep.subr.bf16.mxu0 0
    %1634 = vmatpush1.bf16.msra.mxu0 %v1160
    %1635 = vmatprep.subr.bf16.mxu0 0
    %1636 = vmatpush1.bf16.msra.mxu0 0
    %1637 = vmatprep.subr.bf16.mxu0 0
    %1638 = vmatpush1.bf16.msra.mxu0 0
    %1639 = vmatprep.subr.bf16.mxu0 0
    %1640 = vmatpush1.bf16.msra.mxu0 0
    %1641 = vmatprep.subr.bf16.mxu0 0
    %1642 = vmatpush1.bf16.msra.mxu0 0
    %1643 = vmatprep.subr.bf16.mxu0 0
    %1644 = vmatpush1.bf16.msra.mxu0 0
    %1645 = vmatprep.subr.bf16.mxu0 0
    %1646 = vmatpush1.bf16.msra.mxu0 0
    %1647 = vmatprep.subr.bf16.mxu0 0
    %1648 = vmatpush1.bf16.msra.mxu0 0
    %1649 = vmatprep.subr.bf16.mxu0 0
    %1650 = vmatpush1.bf16.msra.mxu0 0
    %1651 = vmatprep.subr.bf16.mxu0 0
    %1652 = vmatpush1.bf16.msra.mxu0 0
    %1653 = vmatprep.subr.bf16.mxu0 0
    %1654 = vmatpush1.bf16.msra.mxu0 0
    %1655 = vmatprep.subr.bf16.mxu0 0
    %1656 = vmatpush1.bf16.msra.mxu0 0
    %1657 = vmatprep.subr.bf16.mxu0 0
    %1658 = vmatpush1.bf16.msra.mxu0 0
    %1659 = vmatprep.subr.bf16.mxu0 0
    %1660 = vmatpush1.bf16.msra.mxu0 0
    %1661 = vmatprep.subr.bf16.mxu0 0
    %1662 = vmatpush1.bf16.msra.mxu0 0
    %1663 = vmatprep.mubr.bf16.mxu0 0
    %1664 = vmatmul.mubr.bf16.gmra.mrb[0].mxu0 %v1629
    %v1665 = vpop.f32.mrb[0].mxu0
    %v1666 = vadd.f32 0.0, %v1665
    %v1667 = vpop.f32.mrb[0].mxu0
    %v1668 = vpop.f32.mrb[0].mxu0
    %v1669 = vpop.f32.mrb[0].mxu0
    %1670 = vdwg.mxu0
    %v1671 = vadd.f32 %v1145, %v1666
    %v1672 = vxor.u32 %v1671, 2147483648
    %v1673 = vmul.f32 %v1672, 1.442695
    %v1674 = vpow.pop %v1673
    %v1675 = vadd.f32 %v1674, 1.0
    %v1676 = vrcp.pop %v1675
    %v1677 = vmul.f32 1.0, %v1676
    %v1678 = vtanh.pop %v1671
    %v1679 = vmul.f32 %v1677, %v1611
    %1681 = vrot.lane.b32.xlu0 %v1678, 64
    %v1682 = vpop.permute.xlu0 %1681
    %v1684 = vmul.f32 %v1677, %v1682
    %1686 = vrot.lane.b32.xlu0 %v1684, 32
    %v1687 = vpop.permute.xlu0 %1686
    %v1689 = vadd.f32 %v1679, %v1687
    %v1690 = vtanh.pop %v1689
    %1692 = vrot.lane.b32.xlu0 %v1690, 64
    %v1693 = vpop.permute.xlu0 %1692
    %v1695 = vmul.f32 %v1677, %v1693
    %1697 = vrot.lane.b32.xlu0 %v1695, 32
    %v1698 = vpop.permute.xlu0 %1697
    %1700 = vst.msk [vmem:[#allocation3 + $0x30] sm:$0xff] %vm477, %v1698
    %1701 = vst.msk [vmem:[#allocation3 + $0x8] sm:$0xff] %vm479, %v1698
    %v1702 = vpack.c.bf16 %v1695, %v1695
    %1704 = vrot.lane.b32.xlu0 %v1702, 32
    %v1705 = vpop.permute.xlu0 %1704
    %v1707 = vsel %vm126, %v1705, 0
    %1709 = vmatprep.subr.bf16.mxu0 0
    %1710 = vmatpush1.bf16.msra.mxu0 %v1159
    %1711 = vmatprep.subr.bf16.mxu0 0
    %1712 = vmatpush1.bf16.msra.mxu0 %v1160
    %1713 = vmatprep.subr.bf16.mxu0 0
    %1714 = vmatpush1.bf16.msra.mxu0 0
    %1715 = vmatprep.subr.bf16.mxu0 0
    %1716 = vmatpush1.bf16.msra.mxu0 0
    %1717 = vmatprep.subr.bf16.mxu0 0
    %1718 = vmatpush1.bf16.msra.mxu0 0
    %1719 = vmatprep.subr.bf16.mxu0 0
    %1720 = vmatpush1.bf16.msra.mxu0 0
    %1721 = vmatprep.subr.bf16.mxu0 0
    %1722 = vmatpush1.bf16.msra.mxu0 0
    %1723 = vmatprep.subr.bf16.mxu0 0
    %1724 = vmatpush1.bf16.msra.mxu0 0
    %1725 = vmatprep.subr.bf16.mxu0 0
    %1726 = vmatpush1.bf16.msra.mxu0 0
    %1727 = vmatprep.subr.bf16.mxu0 0
    %1728 = vmatpush1.bf16.msra.mxu0 0
    %1729 = vmatprep.subr.bf16.mxu0 0
    %1730 = vmatpush1.bf16.msra.mxu0 0
    %1731 = vmatprep.subr.bf16.mxu0 0
    %1732 = vmatpush1.bf16.msra.mxu0 0
    %1733 = vmatprep.subr.bf16.mxu0 0
    %1734 = vmatpush1.bf16.msra.mxu0 0
    %1735 = vmatprep.subr.bf16.mxu0 0
    %1736 = vmatpush1.bf16.msra.mxu0 0
    %1737 = vmatprep.subr.bf16.mxu0 0
    %1738 = vmatpush1.bf16.msra.mxu0 0
    %1739 = vmatprep.subr.bf16.mxu0 0
    %1740 = vmatpush1.bf16.msra.mxu0 0
    %1741 = vmatprep.mubr.bf16.mxu0 0
    %1742 = vmatmul.mubr.bf16.gmra.mrb[0].mxu0 %v1707
    %v1743 = vpop.f32.mrb[0].mxu0
    %v1744 = vadd.f32 0.0, %v1743
    %v1745 = vpop.f32.mrb[0].mxu0
    %v1746 = vpop.f32.mrb[0].mxu0
    %v1747 = vpop.f32.mrb[0].mxu0
    %1748 = vdwg.mxu0
    %v1749 = vadd.f32 %v1146, %v1744
    %v1750 = vxor.u32 %v1749, 2147483648
    %v1751 = vmul.f32 %v1750, 1.442695
    %v1752 = vpow.pop %v1751
    %v1753 = vadd.f32 %v1752, 1.0
    %v1754 = vrcp.pop %v1753
    %v1755 = vmul.f32 1.0, %v1754
    %v1756 = vtanh.pop %v1749
    %v1757 = vmul.f32 %v1755, %v1689
    %1759 = vrot.lane.b32.xlu0 %v1756, 64
    %v1760 = vpop.permute.xlu0 %1759
    %v1762 = vmul.f32 %v1755, %v1760
    %1764 = vrot.lane.b32.xlu0 %v1762, 32
    %v1765 = vpop.permute.xlu0 %1764
    %v1767 = vadd.f32 %v1757, %v1765
    %v1768 = vtanh.pop %v1767
    %1770 = vrot.lane.b32.xlu0 %v1768, 64
    %v1771 = vpop.permute.xlu0 %1770
    %v1773 = vmul.f32 %v1755, %v1771
    %1775 = vrot.lane.b32.xlu0 %v1773, 32
    %v1776 = vpop.permute.xlu0 %1775
    %1778 = vst.msk [vmem:[#allocation3 + $0x38] sm:$0xff] %vm477, %v1776
    %1779 = vst.msk [vmem:[#allocation3] sm:$0xff] %vm479, %v1776
    %v1780 = vld [vmem:[#allocation3] sm:$0xff]
    %v1781 = vld [vmem:[#allocation3 + $0x8] sm:$0xff]
    %v1782 = vld [vmem:[#allocation3 + $0x10] sm:$0xff]
    %v1783 = vld [vmem:[#allocation3 + $0x18] sm:$0xff]
    %v1784 = vld [vmem:[#allocation3 + $0x20] sm:$0xff]
    %v1785 = vld [vmem:[#allocation3 + $0x28] sm:$0xff]
    %v1786 = vld [vmem:[#allocation3 + $0x30] sm:$0xff]
    %v1787 = vld [vmem:[#allocation3 + $0x38] sm:$0xff]
    %v1788 = vpack.c.bf16 %v1781, %v1780
    %v1789 = vpack.c.bf16 %v1783, %v1782
    %v1790 = vpack.c.bf16 %v1785, %v1784
    %v1791 = vpack.c.bf16 %v1787, %v1786
    %v1792 = vld [vmem:[%s9] sm:$0xf]
    %v1793 = vld [vmem:[%s9 + $0x4] sm:$0xf]
    %v1794 = vld [vmem:[%s9 + $0x8] sm:$0xf]
    %v1795 = vld [vmem:[%s9 + $0xc] sm:$0xf]
    %v1796 = vld [vmem:[%s10] sm:$0x1]
    %v1798 = vlaneseq
    %v1799 = vshrl.u32 %v1798, 7
    %v1800 = vsub.s32 0, %v1799
    %v1801 = vrot.slane %v1796, %v1800
    %v1807 = vunpack.c.l.b16 %v1792
    %v1808 = vunpack.c.l.b16 %v1793
    %v1809 = vunpack.c.l.b16 %v1794
    %v1810 = vunpack.c.l.b16 %v1795
    %v1811 = vpack.c.b16 %v1808, %v1807
    %v1812 = vpack.c.b16 %v1810, %v1809
    %v1816 = vsel %vm126, %v1788, 0
    %v1819 = vsel %vm126, %v1789, 0
    %v1822 = vsel %vm126, %v1790, 0
    %v1825 = vsel %vm126, %v1791, 0
    %1827 = vmatprep.subr.bf16.mxu0 0
    %1828 = vmatpush1.bf16.msra.mxu0 %v1811
    %1829 = vmatprep.subr.bf16.mxu0 0
    %1830 = vmatpush1.bf16.msra.mxu0 %v1812
    %1831 = vmatprep.subr.bf16.mxu0 0
    %1832 = vmatpush1.bf16.msra.mxu0 0
    %1833 = vmatprep.subr.bf16.mxu0 0
    %1834 = vmatpush1.bf16.msra.mxu0 0
    %1835 = vmatprep.subr.bf16.mxu0 0
    %1836 = vmatpush1.bf16.msra.mxu0 0
    %1837 = vmatprep.subr.bf16.mxu0 0
    %1838 = vmatpush1.bf16.msra.mxu0 0
    %1839 = vmatprep.subr.bf16.mxu0 0
    %1840 = vmatpush1.bf16.msra.mxu0 0
    %1841 = vmatprep.subr.bf16.mxu0 0
    %1842 = vmatpush1.bf16.msra.mxu0 0
    %1843 = vmatprep.subr.bf16.mxu0 0
    %1844 = vmatpush1.bf16.msra.mxu0 0
    %1845 = vmatprep.subr.bf16.mxu0 0
    %1846 = vmatpush1.bf16.msra.mxu0 0
    %1847 = vmatprep.subr.bf16.mxu0 0
    %1848 = vmatpush1.bf16.msra.mxu0 0
    %1849 = vmatprep.subr.bf16.mxu0 0
    %1850 = vmatpush1.bf16.msra.mxu0 0
    %1851 = vmatprep.subr.bf16.mxu0 0
    %1852 = vmatpush1.bf16.msra.mxu0 0
    %1853 = vmatprep.subr.bf16.mxu0 0
    %1854 = vmatpush1.bf16.msra.mxu0 0
    %1855 = vmatprep.subr.bf16.mxu0 0
    %1856 = vmatpush1.bf16.msra.mxu0 0
    %1857 = vmatprep.subr.bf16.mxu0 0
    %1858 = vmatpush1.bf16.msra.mxu0 0
    %1859 = vmatprep.mubr.bf16.mxu0 0
    %1860 = vmatmul.mubr.bf16.gmra.mrb[0].mxu0 %v1816
    %v1861 = vpop.f32.mrb[0].mxu0
    %v1862 = vadd.f32 %v1801, %v1861
    %v1863 = vpop.f32.mrb[0].mxu0
    %v1864 = vpop.f32.mrb[0].mxu0
    %v1865 = vadd.f32 %v1801, %v1864
    %v1866 = vpop.f32.mrb[0].mxu0
    %1867 = vmatprep.mubr.bf16.mxu0 0
    %1868 = vmatmul.mubr.bf16.gmra.mrb[0].mxu0 %v1819
    %v1869 = vpop.f32.mrb[0].mxu0
    %v1870 = vadd.f32 %v1801, %v1869
    %v1871 = vpop.f32.mrb[0].mxu0
    %v1872 = vpop.f32.mrb[0].mxu0
    %v1873 = vadd.f32 %v1801, %v1872
    %v1874 = vpop.f32.mrb[0].mxu0
    %1875 = vmatprep.mubr.bf16.mxu0 0
    %1876 = vmatmul.mubr.bf16.gmra.mrb[0].mxu0 %v1822
    %v1877 = vpop.f32.mrb[0].mxu0
    %v1878 = vadd.f32 %v1801, %v1877
    %v1879 = vpop.f32.mrb[0].mxu0
    %v1880 = vpop.f32.mrb[0].mxu0
    %v1881 = vadd.f32 %v1801, %v1880
    %v1882 = vpop.f32.mrb[0].mxu0
    %1883 = vmatprep.mubr.bf16.mxu0 0
    %1884 = vmatmul.mubr.bf16.gmra.mrb[0].mxu0 %v1825
    %v1885 = vpop.f32.mrb[0].mxu0
    %v1886 = vadd.f32 %v1801, %v1885
    %v1887 = vpop.f32.mrb[0].mxu0
    %v1888 = vpop.f32.mrb[0].mxu0
    %v1889 = vadd.f32 %v1801, %v1888
    %v1890 = vpop.f32.mrb[0].mxu0
    %1891 = vdwg.mxu0
    %1892 = vst [vmem:[#allocation15] sm:$0xff] %v1862
    %1893 = vst [vmem:[#allocation15 + $0x8] sm:$0xff] %v1865
    %1894 = vst [vmem:[#allocation15 + $0x10] sm:$0xff] %v1870
    %1895 = vst [vmem:[#allocation15 + $0x18] sm:$0xff] %v1873
    %1896 = vst [vmem:[#allocation15 + $0x20] sm:$0xff] %v1878
    %1897 = vst [vmem:[#allocation15 + $0x28] sm:$0xff] %v1881
    %1898 = vst [vmem:[#allocation15 + $0x30] sm:$0xff] %v1886
    %1899 = vst [vmem:[#allocation15 + $0x38] sm:$0xff] %v1889
    // Predicated region
    $region70: #{tpu_custom_call.1} parent=1 // pred_check
      _
    $region71: #{tpu_custom_call.1} parent=1 // pred_check_branch
      %1901 = sbr.rel (0) target = $region73
    $region72: #{tpu_custom_call.1} parent=1 // pred_region
      %s1903 = ssub.s32 1024, 1024
      %1904 = vsyncadd [#allocation6], %s1903
      %s1905 = sshll.u32 [#allocation15], 4
      %s1906 = int_to_ptr.vmem [resolvable:$true] %s1905
      %1911 = dma.vmem_to_hbm [thread:$0]  %s1906, 1024, %s11, [#allocation6], 128, 128, 8
    $region73: #{tpu_custom_call.1} parent=1 // pred_fallthru
      _
    // Predicated region
    $region74: #{tpu_custom_call.1} parent=1 // pred_check
      _
    $region75: #{tpu_custom_call.1} parent=1 // pred_check_branch
      %1913 = sbr.rel (0) target = $region77
    $region76: #{tpu_custom_call.1} parent=1 // pred_region
      %1914 = dma.done [#allocation6], 1024
    $region77: #{tpu_custom_call.1} parent=1 // pred_fallthru
      _
    %1915 = vsyncpa [#allocation5], 1
    %1916 = vsyncpa [#allocation8], 1
    %1917 = vsyncpa [#allocation11], 1
    %1918 = vsyncpa [#allocation14], 1
    %1919 = vsyncpa [#allocation6], 1

</llo_original>
